<compile_context>
chip_gen: v7x
topology: tpu7x:2x2x1
jax: 0.10.0
libtpu: 0.0.40
codegen_flags: <defaults>
</compile_context>

<pallas_src>
import jax
import jax.numpy as jnp
from jax.experimental import pallas as pl
from jax.experimental.pallas import tpu as pltpu


def _round_up(v, m):
    return ((v + m - 1) // m) * m


# ----------------------------------------------------------------------------
# Fused kernel: one GEMM for all branches + SiLU + MXU pool + classifier head.
# ----------------------------------------------------------------------------
def _make_fused_kernel(n_br, B, NC):
    def kernel(p_ref, cw_ref, cb_ref, pool_ref, hw_ref, hb_ref, o_ref):
        # im2col GEMM for all 3 branches at once: bf16 MXU, f32 accumulation.
        conv = jnp.dot(p_ref[...], cw_ref[...],
                       preferred_element_type=jnp.float32)     # (M, Fp) f32
        conv = conv + cb_ref[...]                               # (1, Fp) bcast

        # SiLU in f32 (VPU mul + EUP sigmoid).
        y = conv * jax.nn.sigmoid(conv)                         # (M, Fp)

        # Global average pool as an MXU contraction with a constant
        # block-diagonal 1/HW matrix, then the head:
        #   hstack([f0,f1,f2]) @ W  ==  sum_br f_br @ W[br*F:(br+1)*F]
        total = None
        for br in range(n_br):
            pooled = jnp.dot(pool_ref[br], y,
                             preferred_element_type=jnp.float32)     # (B, Fp)
            contrib = jnp.dot(pooled, hw_ref[br],
                              preferred_element_type=jnp.float32)    # (B, NC)
            total = contrib if total is None else total + contrib

        o_ref[...] = total + hb_ref[...]

    return kernel


# ----------------------------------------------------------------------------
# Full multi-task forward (flag is a static Python string, as in PyTorch).
# ----------------------------------------------------------------------------
def multitask_forward(x_list, flag, params):
    n_br = len(x_list)                                   # 3 branches
    x = jnp.stack(x_list, axis=0)                        # (3, B, C, H, W)
    _, B, C, H, W = x.shape
    HW = H * W
    M = n_br * B * HW

    conv_w = params["conv_w"]                            # (3, 3, C, F)
    F = conv_w.shape[-1]
    K = 9 * C
    Kp = _round_up(K, 128)                               # 36  -> 128
    Fp = _round_up(F, 128)                               # 32  -> 128

    # ---- lane-dense bf16 im2col patch slab built by XLA (outside kernel) ----
    xn = jnp.transpose(x, (0, 1, 3, 4, 2))               # (3, B, H, W, C)
    xp = jnp.pad(xn, ((0, 0), (0, 0), (1, 1), (1, 1), (0, 0)))
    cols = [xp[:, :, kh:kh + H, kw:kw + W, :]
            for kh in range(3) for kw in range(3)]
    patches = jnp.concatenate(cols, axis=-1).reshape(M, K)
    patches = jnp.pad(patches, ((0, 0), (0, Kp - K))).astype(jnp.bfloat16)

    # ---- conv weight/bias: zero-padded to MXU-friendly shapes, bf16 once ----
    cw = jnp.pad(conv_w.reshape(K, F),
                 ((0, Kp - K), (0, Fp - F))).astype(jnp.bfloat16)    # (Kp, Fp)
    cb = jnp.pad(params["conv_b"], (0, Fp - F)).reshape(1, Fp)       # (1, Fp)
    cb = cb.astype(jnp.float32)

    # ---- pooling matrix: (n_br, B, M), block-diagonal 1/HW -------------------
    g_rows = jnp.arange(M, dtype=jnp.int32) // HW        # GEMM-row group id
    g_tgt = (jnp.arange(n_br, dtype=jnp.int32)[:, None] * B
             + jnp.arange(B, dtype=jnp.int32)[None, :])  # (n_br, B)
    pool = (g_tgt[:, :, None] == g_rows[None, None, :]).astype(jnp.float32)
    pool = pool * (1.0 / HW)                             # (n_br, B, M)

    # ---- selected classifier head: rows regrouped to padded F per branch ----
    # branch2/branch3 are deepcopies of branch1 -> identical parameters.
    # classifier[0] (Dropout) is identity at inference -> pre_logits == feats.
    if flag == "duanlie":
        hw_, hb_ = params["cls1_w"], params["cls1_b"]
    else:
        hw_, hb_ = params["cls2_w"], params["cls2_b"]
    NC = hw_.shape[1]
    hw3 = jnp.pad(hw_.reshape(n_br, F, NC),
                  ((0, 0), (0, Fp - F), (0, 0))).astype(jnp.float32)  # (3,Fp,NC)
    hb = hb_.reshape(1, NC).astype(jnp.float32)

    kernel = _make_fused_kernel(n_br, B, NC)
    return pl.pallas_call(
        kernel,
        out_shape=jax.ShapeDtypeStruct((B, NC), jnp.float32),
        grid=(1,),
        in_specs=[
            pl.BlockSpec((M, Kp), lambda i: (0, 0)),              # patch slab
            pl.BlockSpec((Kp, Fp), lambda i: (0, 0)),             # conv W
            pl.BlockSpec((1, Fp), lambda i: (0, 0)),              # conv b
            pl.BlockSpec((n_br, B, M), lambda i: (0, 0, 0)),      # pool matrix
            pl.BlockSpec((n_br, Fp, NC), lambda i: (0, 0, 0)),    # head W (3 slices)
            pl.BlockSpec((1, NC), lambda i: (0, 0)),              # head b
        ],
        out_specs=pl.BlockSpec((B, NC), lambda i: (0, 0)),
        compiler_params=pltpu.CompilerParams(
            dimension_semantics=("arbitrary",),
            vmem_limit_bytes=64 * 1024 * 1024),
    )(patches, cw, cb, pool, hw3, hb)


# ----------------------------------------------------------------------------
# Pure-JAX reference (same math, f32) for validation.
# ----------------------------------------------------------------------------
def _reference(x_list, flag, params):
    conv_w = params["conv_w"]
    F = conv_w.shape[-1]
    feats = []
    for xi in x_list:
        xn = jnp.transpose(xi, (0, 2, 3, 1))
        B, H, W, C = xn.shape
        xp = jnp.pad(xn, ((0, 0), (1, 1), (1, 1), (0, 0)))
        cols = [xp[:, kh:kh + H, kw:kw + W, :]
                for kh in range(3) for kw in range(3)]
        patches = jnp.concatenate(cols, axis=-1).reshape(B * H * W, 9 * C)
        conv = patches @ conv_w.reshape(9 * C, F) + params["conv_b"][None, :]
        y = conv * jax.nn.sigmoid(conv)
        feats.append(jnp.mean(y.reshape(B, H * W, F), axis=1))
    out = jnp.concatenate(feats, axis=1)
    if flag == "duanlie":
        return out @ params["cls1_w"] + params["cls1_b"]
    return out @ params["cls2_w"] + params["cls2_b"]


if __name__ == "__main__":
    key = jax.random.PRNGKey(0)
    B, C, H, W = 2, 4, 16, 16     # small synthetic input, NCHW like PyTorch
    F = 32                        # backbone.classifier[1].in_features
    NC1, NC2 = 5, 3               # num_classes1, num_classes2

    ks = jax.random.split(key, 8)
    x_list = [jax.random.normal(ks[i], (B, C, H, W), jnp.float32)
              for i in range(3)]

    params = {
        "conv_w": 0.1 * jax.random.normal(ks[3], (3, 3, C, F), jnp.float32),
        "conv_b": 0.1 * jax.random.normal(ks[4], (F,), jnp.float32),
        "cls1_w": 0.1 * jax.random.normal(ks[5], (3 * F, NC1), jnp.float32),
        "cls1_b": 0.05 * jax.random.normal(ks[6], (NC1,), jnp.float32),
        "cls2_w": 0.1 * jax.random.normal(ks[7], (3 * F, NC2), jnp.float32),
        "cls2_b": jnp.zeros((NC2,), jnp.float32),
    }

    out1 = multitask_forward(x_list, "duanlie", params)   # -> (B, NC1)
    out2 = multitask_forward(x_list, "other", params)     # -> (B, NC2)
    jax.block_until_ready((out1, out2))

    ref1 = _reference(x_list, "duanlie", params)
    ref2 = _reference(x_list, "other", params)

    assert out1.shape == (B, NC1) and out2.shape == (B, NC2)
    assert jnp.all(jnp.isfinite(out1)) and jnp.all(jnp.isfinite(out2))
    # NOTE: patches/conv weights run through bf16 on the MXU (intentional
    # inference-precision change), hence the loose tolerance vs. f32 reference.
    assert jnp.allclose(out1, ref1, atol=5e-2, rtol=5e-2), \
        float(jnp.max(jnp.abs(out1 - ref1)))
    assert jnp.allclose(out2, ref2, atol=5e-2, rtol=5e-2), \
        float(jnp.max(jnp.abs(out2 - ref2)))
    print("KERNEL_OK")
</pallas_src>

<mosaic_0001>
module attributes {stable_mosaic.version = 11 : i64} {
  func.func @kernel(%arg0: i32, %arg1: memref<1536x128xbf16, #tpu.memory_space<vmem>>, %arg2: memref<128x128xbf16, #tpu.memory_space<vmem>>, %arg3: memref<1x128xf32, #tpu.memory_space<vmem>>, %arg4: memref<3x2x1536xf32, #tpu.memory_space<vmem>>, %arg5: memref<3x128x5xf32, #tpu.memory_space<vmem>>, %arg6: memref<1x5xf32, #tpu.memory_space<vmem>>, %arg7: memref<2x5xf32, #tpu.memory_space<vmem>>) attributes {dimension_semantics = [#tpu.dimension_semantics<arbitrary>], iteration_bounds = array<i64: 1>, scalar_prefetch = 0 : i64, scratch_operands = 0 : i64, tpu.core_type = #tpu.core_type<tc>, window_params = [{pipeline_mode = #tpu.pipeline_mode<synchronous>, transform_indices = @transform_0, window_bounds = array<i64: 1536, 128>}, {pipeline_mode = #tpu.pipeline_mode<synchronous>, transform_indices = @transform_1, window_bounds = array<i64: 128, 128>}, {pipeline_mode = #tpu.pipeline_mode<synchronous>, transform_indices = @transform_2, window_bounds = array<i64: 1, 128>}, {pipeline_mode = #tpu.pipeline_mode<synchronous>, transform_indices = @transform_3, window_bounds = array<i64: 3, 2, 1536>}, {pipeline_mode = #tpu.pipeline_mode<synchronous>, transform_indices = @transform_4, window_bounds = array<i64: 3, 128, 5>}, {pipeline_mode = #tpu.pipeline_mode<synchronous>, transform_indices = @transform_5, window_bounds = array<i64: 1, 5>}, {pipeline_mode = #tpu.pipeline_mode<synchronous>, transform_indices = @transform_6, window_bounds = array<i64: 2, 5>}]} {
    %c0 = arith.constant 0 : index
    %c0_0 = arith.constant 0 : index
    %0 = vector.load %arg1[%c0, %c0_0] : memref<1536x128xbf16, #tpu.memory_space<vmem>>, vector<1536x128xbf16>
    %c0_1 = arith.constant 0 : index
    %c0_2 = arith.constant 0 : index
    %1 = vector.load %arg2[%c0_1, %c0_2] : memref<128x128xbf16, #tpu.memory_space<vmem>>, vector<128x128xbf16>
    %cst = arith.constant dense<0.000000e+00> : vector<1536x128xf32>
    %2 = tpu.matmul %0, %1, %cst {dimension_numbers = #tpu.dot_dimension_numbers<[1], [0], [0], [1], [0, 0, 1, 1], [], []>} : vector<1536x128xbf16>, vector<128x128xbf16>, vector<1536x128xf32> -> vector<1536x128xf32>
    %c0_3 = arith.constant 0 : index
    %c0_4 = arith.constant 0 : index
    %3 = vector.load %arg3[%c0_3, %c0_4] : memref<1x128xf32, #tpu.memory_space<vmem>>, vector<1x128xf32>
    %4 = vector.broadcast %3 : vector<1x128xf32> to vector<1536x128xf32>
    %5 = arith.addf %2, %4 : vector<1536x128xf32>
    %6 = arith.negf %5 : vector<1536x128xf32>
    %7 = math.exp %6 : vector<1536x128xf32>
    %cst_5 = arith.constant 1.000000e+00 : f32
    %8 = vector.broadcast %cst_5 : f32 to vector<1536x128xf32>
    %9 = arith.addf %8, %7 : vector<1536x128xf32>
    %10 = arith.divf %8, %9 : vector<1536x128xf32>
    %11 = arith.mulf %5, %10 : vector<1536x128xf32>
    %c0_6 = arith.constant 0 : index
    %c0_7 = arith.constant 0 : index
    %c0_8 = arith.constant 0 : index
    %12 = vector.load %arg4[%c0_6, %c0_7, %c0_8] : memref<3x2x1536xf32, #tpu.memory_space<vmem>>, vector<1x2x1536xf32>
    %13 = vector.shape_cast %12 : vector<1x2x1536xf32> to vector<2x1536xf32>
    %cst_9 = arith.constant dense<0.000000e+00> : vector<2x128xf32>
    %14 = tpu.matmul %13, %11, %cst_9 {dimension_numbers = #tpu.dot_dimension_numbers<[1], [0], [0], [1], [0, 0, 1, 1], [], []>} : vector<2x1536xf32>, vector<1536x128xf32>, vector<2x128xf32> -> vector<2x128xf32>
    %c0_10 = arith.constant 0 : index
    %c0_11 = arith.constant 0 : index
    %c0_12 = arith.constant 0 : index
    %15 = vector.load %arg5[%c0_10, %c0_11, %c0_12] : memref<3x128x5xf32, #tpu.memory_space<vmem>>, vector<1x128x5xf32>
    %16 = vector.shape_cast %15 : vector<1x128x5xf32> to vector<128x5xf32>
    %cst_13 = arith.constant dense<0.000000e+00> : vector<2x5xf32>
    %17 = tpu.matmul %14, %16, %cst_13 {dimension_numbers = #tpu.dot_dimension_numbers<[1], [0], [0], [1], [0, 0, 1, 1], [], []>} : vector<2x128xf32>, vector<128x5xf32>, vector<2x5xf32> -> vector<2x5xf32>
    %c1 = arith.constant 1 : index
    %c0_14 = arith.constant 0 : index
    %c0_15 = arith.constant 0 : index
    %18 = vector.load %arg4[%c1, %c0_14, %c0_15] : memref<3x2x1536xf32, #tpu.memory_space<vmem>>, vector<1x2x1536xf32>
    %19 = vector.shape_cast %18 : vector<1x2x1536xf32> to vector<2x1536xf32>
    %cst_16 = arith.constant dense<0.000000e+00> : vector<2x128xf32>
    %20 = tpu.matmul %19, %11, %cst_16 {dimension_numbers = #tpu.dot_dimension_numbers<[1], [0], [0], [1], [0, 0, 1, 1], [], []>} : vector<2x1536xf32>, vector<1536x128xf32>, vector<2x128xf32> -> vector<2x128xf32>
    %c1_17 = arith.constant 1 : index
    %c0_18 = arith.constant 0 : index
    %c0_19 = arith.constant 0 : index
    %21 = vector.load %arg5[%c1_17, %c0_18, %c0_19] : memref<3x128x5xf32, #tpu.memory_space<vmem>>, vector<1x128x5xf32>
    %22 = vector.shape_cast %21 : vector<1x128x5xf32> to vector<128x5xf32>
    %cst_20 = arith.constant dense<0.000000e+00> : vector<2x5xf32>
    %23 = tpu.matmul %20, %22, %cst_20 {dimension_numbers = #tpu.dot_dimension_numbers<[1], [0], [0], [1], [0, 0, 1, 1], [], []>} : vector<2x128xf32>, vector<128x5xf32>, vector<2x5xf32> -> vector<2x5xf32>
    %24 = arith.addf %17, %23 : vector<2x5xf32>
    %c2 = arith.constant 2 : index
    %c0_21 = arith.constant 0 : index
    %c0_22 = arith.constant 0 : index
    %25 = vector.load %arg4[%c2, %c0_21, %c0_22] : memref<3x2x1536xf32, #tpu.memory_space<vmem>>, vector<1x2x1536xf32>
    %26 = vector.shape_cast %25 : vector<1x2x1536xf32> to vector<2x1536xf32>
    %cst_23 = arith.constant dense<0.000000e+00> : vector<2x128xf32>
    %27 = tpu.matmul %26, %11, %cst_23 {dimension_numbers = #tpu.dot_dimension_numbers<[1], [0], [0], [1], [0, 0, 1, 1], [], []>} : vector<2x1536xf32>, vector<1536x128xf32>, vector<2x128xf32> -> vector<2x128xf32>
    %c2_24 = arith.constant 2 : index
    %c0_25 = arith.constant 0 : index
    %c0_26 = arith.constant 0 : index
    %28 = vector.load %arg5[%c2_24, %c0_25, %c0_26] : memref<3x128x5xf32, #tpu.memory_space<vmem>>, vector<1x128x5xf32>
    %29 = vector.shape_cast %28 : vector<1x128x5xf32> to vector<128x5xf32>
    %cst_27 = arith.constant dense<0.000000e+00> : vector<2x5xf32>
    %30 = tpu.matmul %27, %29, %cst_27 {dimension_numbers = #tpu.dot_dimension_numbers<[1], [0], [0], [1], [0, 0, 1, 1], [], []>} : vector<2x128xf32>, vector<128x5xf32>, vector<2x5xf32> -> vector<2x5xf32>
    %31 = arith.addf %24, %30 : vector<2x5xf32>
    %c0_28 = arith.constant 0 : index
    %c0_29 = arith.constant 0 : index
    %32 = vector.load %arg6[%c0_28, %c0_29] : memref<1x5xf32, #tpu.memory_space<vmem>>, vector<1x5xf32>
    %33 = vector.broadcast %32 : vector<1x5xf32> to vector<2x5xf32>
    %34 = arith.addf %31, %33 : vector<2x5xf32>
    %c0_30 = arith.constant 0 : index
    %c0_31 = arith.constant 0 : index
    %35 = vector.load %arg7[%c0_30, %c0_31] : memref<2x5xf32, #tpu.memory_space<vmem>>, vector<2x5xf32>
    tpu.vector_store %arg7[%c0_30, %c0_31], %34 {strides = array<i32>} : memref<2x5xf32, #tpu.memory_space<vmem>>, vector<2x5xf32>,
    return
  }
  func.func @transform_0(%arg0: i32) -> (i32, i32) {
    %c0_i32 = arith.constant 0 : i32
    %c0_i32_0 = arith.constant 0 : i32
    %c0_i32_1 = arith.constant 0 : i32
    return %c0_i32, %c0_i32_0 : i32, i32
  }
  func.func @transform_1(%arg0: i32) -> (i32, i32) {
    %c0_i32 = arith.constant 0 : i32
    %c0_i32_0 = arith.constant 0 : i32
    %c0_i32_1 = arith.constant 0 : i32
    return %c0_i32, %c0_i32_0 : i32, i32
  }
  func.func @transform_2(%arg0: i32) -> (i32, i32) {
    %c0_i32 = arith.constant 0 : i32
    %c0_i32_0 = arith.constant 0 : i32
    %c0_i32_1 = arith.constant 0 : i32
    return %c0_i32, %c0_i32_0 : i32, i32
  }
  func.func @transform_3(%arg0: i32) -> (i32, i32, i32) {
    %c0_i32 = arith.constant 0 : i32
    %c0_i32_0 = arith.constant 0 : i32
    %c0_i32_1 = arith.constant 0 : i32
    %c0_i32_2 = arith.constant 0 : i32
    return %c0_i32, %c0_i32_0, %c0_i32_1 : i32, i32, i32
  }
  func.func @transform_4(%arg0: i32) -> (i32, i32, i32) {
    %c0_i32 = arith.constant 0 : i32
    %c0_i32_0 = arith.constant 0 : i32
    %c0_i32_1 = arith.constant 0 : i32
    %c0_i32_2 = arith.constant 0 : i32
    return %c0_i32, %c0_i32_0, %c0_i32_1 : i32, i32, i32
  }
  func.func @transform_5(%arg0: i32) -> (i32, i32) {
    %c0_i32 = arith.constant 0 : i32
    %c0_i32_0 = arith.constant 0 : i32
    %c0_i32_1 = arith.constant 0 : i32
    return %c0_i32, %c0_i32_0 : i32, i32
  }
  func.func @transform_6(%arg0: i32) -> (i32, i32) {
    %c0_i32 = arith.constant 0 : i32
    %c0_i32_0 = arith.constant 0 : i32
    %c0_i32_1 = arith.constant 0 : i32
    return %c0_i32, %c0_i32_0 : i32, i32
  }
}

</mosaic_0001>

<llo_original>
// kernel: tpu_custom_call.1
$region0: #{tpu_custom_call.1}
  #allocation0 [shape = 'u32[]', space=smem, size = 0x4, offset = 0x4, fixed_abs, tag = 'smem constant byte address 0x4 - core index']
  #allocation1 [shape = 'u32[144,128]{1,0:T(1,128)}', space=vmem, size = 0x12000, scoped, tag = 'internal scratch']
  %s0 = inlined_call_operand.hbm [shape: bf16[1536,128], index: 0, kind: input, shape index: {}]
  %s1 = inlined_call_operand.hbm [shape: bf16[128,128], index: 1, kind: input, shape index: {}]
  %s2 = inlined_call_operand.hbm [shape: f32[1,128], index: 2, kind: input, shape index: {}]
  %s3 = inlined_call_operand.hbm [shape: f32[3,2,1536], index: 3, kind: input, shape index: {}]
  %s4 = inlined_call_operand.hbm [shape: f32[3,128,5], index: 4, kind: input, shape index: {}]
  %s5 = inlined_call_operand.hbm [shape: f32[1,5], index: 5, kind: input, shape index: {}]
  %s6 = inlined_call_operand.hbm [shape: f32[2,5], index: 6, kind: output, shape index: {}]
  %s7 = sld [smem:[#allocation0]]
  $region58: #{tpu_custom_call.1} parent=0
    _
  %s9 = ssub.s32 1, %s7
  %s10 = scalar_select 0, %s9, %s7
  $region1: #{tpu_custom_call.1} parent=0
    #allocation2 [shape = 'u8[393216]{0}', space=vmem, size = 0x60000, scoped, tag = 'input window, operand 0, single buffered']
    #allocation3 [shape = 's32[1]{0}', space=sflag, size = 0x4, scoped, tag = 'scoped memory for tpu_custom_call.1']
    #allocation4 [shape = 's32[1]{0}', space=sflag, size = 0x4, scoped, tag = 'scoped memory for tpu_custom_call.1']
    #allocation5 [shape = 'u8[32768]{0}', space=vmem, size = 0x8000, scoped, tag = 'input window, operand 1, single buffered']
    #allocation6 [shape = 's32[1]{0}', space=sflag, size = 0x4, scoped, tag = 'scoped memory for tpu_custom_call.1']
    #allocation7 [shape = 'u8[512]{0}', space=vmem, size = 0x400, scoped, tag = 'input window, operand 2, single buffered']
    #allocation8 [shape = 'u8[36864]{0}', space=vmem, size = 0x9000, scoped, tag = 'input window, operand 3, single buffered']
    #allocation9 [shape = 's32[1]{0}', space=sflag, size = 0x4, scoped, tag = 'scoped memory for tpu_custom_call.1']
    #allocation10 [shape = 'u8[196608]{0}', space=vmem, size = 0x30000, scoped, tag = 'input window, operand 4, single buffered']
    #allocation11 [shape = 'u8[512]{0}', space=vmem, size = 0x400, scoped, tag = 'input window, operand 5, single buffered']
    #allocation12 [shape = 's32[1]{0}', space=sflag, size = 0x4, scoped, tag = 'scoped memory for tpu_custom_call.1']
    #allocation13 [shape = 'u8[1024]{0}', space=vmem, size = 0x400, scoped, tag = 'output window, operand 0, single buffered']
    %11 = vsyncpa [#allocation3], 0
    %12 = vsyncpa [#allocation6], 0
    %13 = vsyncpa [#allocation9], 0
    %14 = vsyncpa [#allocation12], 0
    %15 = vsyncpa [#allocation4], 0
    // Predicated region
    $region2: #{tpu_custom_call.1} parent=1 // pred_check
      _
    $region3: #{tpu_custom_call.1} parent=1 // pred_check_branch
      %17 = sbr.rel (0) target = $region5
    $region4: #{tpu_custom_call.1} parent=1 // pred_region
      %s19 = ssub.s32 12288, 12288
      %20 = vsyncadd [#allocation3], %s19
      %s21 = sshll.u32 [#allocation2], 4
      %s22 = int_to_ptr.vmem [resolvable:$true] %s21
      %27 = dma.hbm_to_vmem [thread:$0]  %s0, 12288, %s22, [#allocation3], 64, 64, 4
    $region5: #{tpu_custom_call.1} parent=1 // pred_fallthru
      _
    // Predicated region
    $region6: #{tpu_custom_call.1} parent=1 // pred_check
      _
    $region7: #{tpu_custom_call.1} parent=1 // pred_check_branch
      %29 = sbr.rel (0) target = $region9
    $region8: #{tpu_custom_call.1} parent=1 // pred_region
      %s31 = ssub.s32 1024, 1024
      %32 = vsyncadd [#allocation6], %s31
      %s33 = sshll.u32 [#allocation5], 4
      %s34 = int_to_ptr.vmem [resolvable:$true] %s33
      %39 = dma.hbm_to_vmem [thread:$0]  %s1, 1024, %s34, [#allocation6], 64, 64, 4
    $region9: #{tpu_custom_call.1} parent=1 // pred_fallthru
      _
    // Predicated region
    $region10: #{tpu_custom_call.1} parent=1 // pred_check
      _
    $region11: #{tpu_custom_call.1} parent=1 // pred_check_branch
      %41 = sbr.rel (0) target = $region13
    $region12: #{tpu_custom_call.1} parent=1 // pred_region
      %s43 = ssub.s32 16, 16
      %44 = vsyncadd [#allocation6], %s43
      %s46 = sshll.u32 [#allocation7], 4
      %s47 = int_to_ptr.vmem [resolvable:$true] %s46
      %49 = dma.hbm_to_vmem [thread:$0]  %s2, 16, %s47, [#allocation6]
    $region13: #{tpu_custom_call.1} parent=1 // pred_fallthru
      _
    // Predicated region
    $region14: #{tpu_custom_call.1} parent=1 // pred_check
      _
    $region15: #{tpu_custom_call.1} parent=1 // pred_check_branch
      %51 = sbr.rel (0) target = $region17
    $region16: #{tpu_custom_call.1} parent=1 // pred_region
      %s53 = ssub.s32 1152, 1152
      %54 = vsyncadd [#allocation9], %s53
      %s55 = sshll.u32 [#allocation8], 4
      %s56 = int_to_ptr.vmem [resolvable:$true] %s55
      %61 = dma.hbm_to_vmem [thread:$0]  %s3, 1152, %s56, [#allocation9], 384, 384, 24
    $region17: #{tpu_custom_call.1} parent=1 // pred_fallthru
      _
    // Predicated region
    $region18: #{tpu_custom_call.1} parent=1 // pred_check
      _
    $region19: #{tpu_custom_call.1} parent=1 // pred_check_branch
      %63 = sbr.rel (0) target = $region21
    $region20: #{tpu_custom_call.1} parent=1 // pred_region
      %s65 = ssub.s32 6144, 6144
      %66 = vsyncadd [#allocation9], %s65
      %s67 = sshll.u32 [#allocation10], 4
      %s68 = int_to_ptr.vmem [resolvable:$true] %s67
      %73 = dma.hbm_to_vmem [thread:$0]  %s4, 6144, %s68, [#allocation9], 128, 128, 8
    $region21: #{tpu_custom_call.1} parent=1 // pred_fallthru
      _
    // Predicated region
    $region22: #{tpu_custom_call.1} parent=1 // pred_check
      _
    $region23: #{tpu_custom_call.1} parent=1 // pred_check_branch
      %75 = sbr.rel (0) target = $region25
    $region24: #{tpu_custom_call.1} parent=1 // pred_region
      %s77 = ssub.s32 16, 16
      %78 = vsyncadd [#allocation12], %s77
      %s80 = sshll.u32 [#allocation11], 4
      %s81 = int_to_ptr.vmem [resolvable:$true] %s80
      %83 = dma.hbm_to_vmem [thread:$0]  %s5, 16, %s81, [#allocation12]
    $region25: #{tpu_custom_call.1} parent=1 // pred_fallthru
      _
    // Predicated region
    $region26: #{tpu_custom_call.1} parent=1 // pred_check
      _
    $region27: #{tpu_custom_call.1} parent=1 // pred_check_branch
      %85 = sbr.rel (0) target = $region29
    $region28: #{tpu_custom_call.1} parent=1 // pred_region
      %86 = dma.done [#allocation3], 12288
    $region29: #{tpu_custom_call.1} parent=1 // pred_fallthru
      _
    // Predicated region
    $region30: #{tpu_custom_call.1} parent=1 // pred_check
      _
    $region31: #{tpu_custom_call.1} parent=1 // pred_check_branch
      %88 = sbr.rel (0) target = $region33
    $region32: #{tpu_custom_call.1} parent=1 // pred_region
      %89 = dma.done [#allocation6], 1024
    $region33: #{tpu_custom_call.1} parent=1 // pred_fallthru
      _
    // Predicated region
    $region34: #{tpu_custom_call.1} parent=1 // pred_check
      _
    $region35: #{tpu_custom_call.1} parent=1 // pred_check_branch
      %91 = sbr.rel (0) target = $region37
    $region36: #{tpu_custom_call.1} parent=1 // pred_region
      %92 = dma.done [#allocation6], 16
    $region37: #{tpu_custom_call.1} parent=1 // pred_fallthru
      _
    // Predicated region
    $region38: #{tpu_custom_call.1} parent=1 // pred_check
      _
    $region39: #{tpu_custom_call.1} parent=1 // pred_check_branch
      %94 = sbr.rel (0) target = $region41
    $region40: #{tpu_custom_call.1} parent=1 // pred_region
      %95 = dma.done [#allocation9], 1152
    $region41: #{tpu_custom_call.1} parent=1 // pred_fallthru
      _
    // Predicated region
    $region42: #{tpu_custom_call.1} parent=1 // pred_check
      _
    $region43: #{tpu_custom_call.1} parent=1 // pred_check_branch
      %97 = sbr.rel (0) target = $region45
    $region44: #{tpu_custom_call.1} parent=1 // pred_region
      %98 = dma.done [#allocation9], 6144
    $region45: #{tpu_custom_call.1} parent=1 // pred_fallthru
      _
    // Predicated region
    $region46: #{tpu_custom_call.1} parent=1 // pred_check
      _
    $region47: #{tpu_custom_call.1} parent=1 // pred_check_branch
      %100 = sbr.rel (0) target = $region49
    $region48: #{tpu_custom_call.1} parent=1 // pred_region
      %101 = dma.done [#allocation12], 16
    $region49: #{tpu_custom_call.1} parent=1 // pred_fallthru
      _
    %v103 = vld [vmem:[#allocation2] sm:$0xf]
    %v104 = vld [vmem:[#allocation2 + $0x4] sm:$0xf]
    %v105 = vld [vmem:[#allocation2 + $0x8] sm:$0xf]
    %v106 = vld [vmem:[#allocation2 + $0xc] sm:$0xf]
    %v107 = vld [vmem:[#allocation2 + $0x10] sm:$0xf]
    %v108 = vld [vmem:[#allocation2 + $0x14] sm:$0xf]
    %v109 = vld [vmem:[#allocation2 + $0x18] sm:$0xf]
    %v110 = vld [vmem:[#allocation2 + $0x1c] sm:$0xf]
    %v111 = vld [vmem:[#allocation2 + $0x20] sm:$0xf]
    %v112 = vld [vmem:[#allocation2 + $0x24] sm:$0xf]
    %v113 = vld [vmem:[#allocation2 + $0x28] sm:$0xf]
    %v114 = vld [vmem:[#allocation2 + $0x2c] sm:$0xf]
    %v115 = vld [vmem:[#allocation2 + $0x30] sm:$0xf]
    %v116 = vld [vmem:[#allocation2 + $0x34] sm:$0xf]
    %v117 = vld [vmem:[#allocation2 + $0x38] sm:$0xf]
    %v118 = vld [vmem:[#allocation2 + $0x3c] sm:$0xf]
    %v119 = vld [vmem:[#allocation2 + $0x40] sm:$0xf]
    %v120 = vld [vmem:[#allocation2 + $0x44] sm:$0xf]
    %v121 = vld [vmem:[#allocation2 + $0x48] sm:$0xf]
    %v122 = vld [vmem:[#allocation2 + $0x4c] sm:$0xf]
    %v123 = vld [vmem:[#allocation2 + $0x50] sm:$0xf]
    %v124 = vld [vmem:[#allocation2 + $0x54] sm:$0xf]
    %v125 = vld [vmem:[#allocation2 + $0x58] sm:$0xf]
    %v126 = vld [vmem:[#allocation2 + $0x5c] sm:$0xf]
    %v127 = vld [vmem:[#allocation2 + $0x60] sm:$0xf]
    %v128 = vld [vmem:[#allocation2 + $0x64] sm:$0xf]
    %v129 = vld [vmem:[#allocation2 + $0x68] sm:$0xf]
    %v130 = vld [vmem:[#allocation2 + $0x6c] sm:$0xf]
    %v131 = vld [vmem:[#allocation2 + $0x70] sm:$0xf]
    %v132 = vld [vmem:[#allocation2 + $0x74] sm:$0xf]
    %v133 = vld [vmem:[#allocation2 + $0x78] sm:$0xf]
    %v134 = vld [vmem:[#allocation2 + $0x7c] sm:$0xf]
    %v135 = vld [vmem:[#allocation2 + $0x80] sm:$0xf]
    %v136 = vld [vmem:[#allocation2 + $0x84] sm:$0xf]
    %v137 = vld [vmem:[#allocation2 + $0x88] sm:$0xf]
    %v138 = vld [vmem:[#allocation2 + $0x8c] sm:$0xf]
    %v139 = vld [vmem:[#allocation2 + $0x90] sm:$0xf]
    %v140 = vld [vmem:[#allocation2 + $0x94] sm:$0xf]
    %v141 = vld [vmem:[#allocation2 + $0x98] sm:$0xf]
    %v142 = vld [vmem:[#allocation2 + $0x9c] sm:$0xf]
    %v143 = vld [vmem:[#allocation2 + $0xa0] sm:$0xf]
    %v144 = vld [vmem:[#allocation2 + $0xa4] sm:$0xf]
    %v145 = vld [vmem:[#allocation2 + $0xa8] sm:$0xf]
    %v146 = vld [vmem:[#allocation2 + $0xac] sm:$0xf]
    %v147 = vld [vmem:[#allocation2 + $0xb0] sm:$0xf]
    %v148 = vld [vmem:[#allocation2 + $0xb4] sm:$0xf]
    %v149 = vld [vmem:[#allocation2 + $0xb8] sm:$0xf]
    %v150 = vld [vmem:[#allocation2 + $0xbc] sm:$0xf]
    %v151 = vld [vmem:[#allocation2 + $0xc0] sm:$0xf]
    %v152 = vld [vmem:[#allocation2 + $0xc4] sm:$0xf]
    %v153 = vld [vmem:[#allocation2 + $0xc8] sm:$0xf]
    %v154 = vld [vmem:[#allocation2 + $0xcc] sm:$0xf]
    %v155 = vld [vmem:[#allocation2 + $0xd0] sm:$0xf]
    %v156 = vld [vmem:[#allocation2 + $0xd4] sm:$0xf]
    %v157 = vld [vmem:[#allocation2 + $0xd8] sm:$0xf]
    %v158 = vld [vmem:[#allocation2 + $0xdc] sm:$0xf]
    %v159 = vld [vmem:[#allocation2 + $0xe0] sm:$0xf]
    %v160 = vld [vmem:[#allocation2 + $0xe4] sm:$0xf]
    %v161 = vld [vmem:[#allocation2 + $0xe8] sm:$0xf]
    %v162 = vld [vmem:[#allocation2 + $0xec] sm:$0xf]
    %v163 = vld [vmem:[#allocation2 + $0xf0] sm:$0xf]
    %v164 = vld [vmem:[#allocation2 + $0xf4] sm:$0xf]
    %v165 = vld [vmem:[#allocation2 + $0xf8] sm:$0xf]
    %v166 = vld [vmem:[#allocation2 + $0xfc] sm:$0xf]
    %v167 = vld [vmem:[#allocation2 + $0x100] sm:$0xf]
    %v168 = vld [vmem:[#allocation2 + $0x104] sm:$0xf]
    %v169 = vld [vmem:[#allocation2 + $0x108] sm:$0xf]
    %v170 = vld [vmem:[#allocation2 + $0x10c] sm:$0xf]
    %v171 = vld [vmem:[#allocation2 + $0x110] sm:$0xf]
    %v172 = vld [vmem:[#allocation2 + $0x114] sm:$0xf]
    %v173 = vld [vmem:[#allocation2 + $0x118] sm:$0xf]
    %v174 = vld [vmem:[#allocation2 + $0x11c] sm:$0xf]
    %v175 = vld [vmem:[#allocation2 + $0x120] sm:$0xf]
    %v176 = vld [vmem:[#allocation2 + $0x124] sm:$0xf]
    %v177 = vld [vmem:[#allocation2 + $0x128] sm:$0xf]
    %v178 = vld [vmem:[#allocation2 + $0x12c] sm:$0xf]
    %v179 = vld [vmem:[#allocation2 + $0x130] sm:$0xf]
    %v180 = vld [vmem:[#allocation2 + $0x134] sm:$0xf]
    %v181 = vld [vmem:[#allocation2 + $0x138] sm:$0xf]
    %v182 = vld [vmem:[#allocation2 + $0x13c] sm:$0xf]
    %v183 = vld [vmem:[#allocation2 + $0x140] sm:$0xf]
    %v184 = vld [vmem:[#allocation2 + $0x144] sm:$0xf]
    %v185 = vld [vmem:[#allocation2 + $0x148] sm:$0xf]
    %v186 = vld [vmem:[#allocation2 + $0x14c] sm:$0xf]
    %v187 = vld [vmem:[#allocation2 + $0x150] sm:$0xf]
    %v188 = vld [vmem:[#allocation2 + $0x154] sm:$0xf]
    %v189 = vld [vmem:[#allocation2 + $0x158] sm:$0xf]
    %v190 = vld [vmem:[#allocation2 + $0x15c] sm:$0xf]
    %v191 = vld [vmem:[#allocation2 + $0x160] sm:$0xf]
    %v192 = vld [vmem:[#allocation2 + $0x164] sm:$0xf]
    %v193 = vld [vmem:[#allocation2 + $0x168] sm:$0xf]
    %v194 = vld [vmem:[#allocation2 + $0x16c] sm:$0xf]
    %v195 = vld [vmem:[#allocation2 + $0x170] sm:$0xf]
    %v196 = vld [vmem:[#allocation2 + $0x174] sm:$0xf]
    %v197 = vld [vmem:[#allocation2 + $0x178] sm:$0xf]
    %v198 = vld [vmem:[#allocation2 + $0x17c] sm:$0xf]
    %v199 = vld [vmem:[#allocation2 + $0x180] sm:$0xf]
    %v200 = vld [vmem:[#allocation2 + $0x184] sm:$0xf]
    %v201 = vld [vmem:[#allocation2 + $0x188] sm:$0xf]
    %v202 = vld [vmem:[#allocation2 + $0x18c] sm:$0xf]
    %v203 = vld [vmem:[#allocation2 + $0x190] sm:$0xf]
    %v204 = vld [vmem:[#allocation2 + $0x194] sm:$0xf]
    %v205 = vld [vmem:[#allocation2 + $0x198] sm:$0xf]
    %v206 = vld [vmem:[#allocation2 + $0x19c] sm:$0xf]
    %v207 = vld [vmem:[#allocation2 + $0x1a0] sm:$0xf]
    %v208 = vld [vmem:[#allocation2 + $0x1a4] sm:$0xf]
    %v209 = vld [vmem:[#allocation2 + $0x1a8] sm:$0xf]
    %v210 = vld [vmem:[#allocation2 + $0x1ac] sm:$0xf]
    %v211 = vld [vmem:[#allocation2 + $0x1b0] sm:$0xf]
    %v212 = vld [vmem:[#allocation2 + $0x1b4] sm:$0xf]
    %v213 = vld [vmem:[#allocation2 + $0x1b8] sm:$0xf]
    %v214 = vld [vmem:[#allocation2 + $0x1bc] sm:$0xf]
    %v215 = vld [vmem:[#allocation2 + $0x1c0] sm:$0xf]
    %v216 = vld [vmem:[#allocation2 + $0x1c4] sm:$0xf]
    %v217 = vld [vmem:[#allocation2 + $0x1c8] sm:$0xf]
    %v218 = vld [vmem:[#allocation2 + $0x1cc] sm:$0xf]
    %v219 = vld [vmem:[#allocation2 + $0x1d0] sm:$0xf]
    %v220 = vld [vmem:[#allocation2 + $0x1d4] sm:$0xf]
    %v221 = vld [vmem:[#allocation2 + $0x1d8] sm:$0xf]
    %v222 = vld [vmem:[#allocation2 + $0x1dc] sm:$0xf]
    %v223 = vld [vmem:[#allocation2 + $0x1e0] sm:$0xf]
    %v224 = vld [vmem:[#allocation2 + $0x1e4] sm:$0xf]
    %v225 = vld [vmem:[#allocation2 + $0x1e8] sm:$0xf]
    %v226 = vld [vmem:[#allocation2 + $0x1ec] sm:$0xf]
    %v227 = vld [vmem:[#allocation2 + $0x1f0] sm:$0xf]
    %v228 = vld [vmem:[#allocation2 + $0x1f4] sm:$0xf]
    %v229 = vld [vmem:[#allocation2 + $0x1f8] sm:$0xf]
    %v230 = vld [vmem:[#allocation2 + $0x1fc] sm:$0xf]
    %v231 = vld [vmem:[#allocation2 + $0x200] sm:$0xf]
    %v232 = vld [vmem:[#allocation2 + $0x204] sm:$0xf]
    %v233 = vld [vmem:[#allocation2 + $0x208] sm:$0xf]
    %v234 = vld [vmem:[#allocation2 + $0x20c] sm:$0xf]
    %v235 = vld [vmem:[#allocation2 + $0x210] sm:$0xf]
    %v236 = vld [vmem:[#allocation2 + $0x214] sm:$0xf]
    %v237 = vld [vmem:[#allocation2 + $0x218] sm:$0xf]
    %v238 = vld [vmem:[#allocation2 + $0x21c] sm:$0xf]
    %v239 = vld [vmem:[#allocation2 + $0x220] sm:$0xf]
    %v240 = vld [vmem:[#allocation2 + $0x224] sm:$0xf]
    %v241 = vld [vmem:[#allocation2 + $0x228] sm:$0xf]
    %v242 = vld [vmem:[#allocation2 + $0x22c] sm:$0xf]
    %v243 = vld [vmem:[#allocation2 + $0x230] sm:$0xf]
    %v244 = vld [vmem:[#allocation2 + $0x234] sm:$0xf]
    %v245 = vld [vmem:[#allocation2 + $0x238] sm:$0xf]
    %v246 = vld [vmem:[#allocation2 + $0x23c] sm:$0xf]
    %v247 = vld [vmem:[#allocation2 + $0x240] sm:$0xf]
    %v248 = vld [vmem:[#allocation2 + $0x244] sm:$0xf]
    %v249 = vld [vmem:[#allocation2 + $0x248] sm:$0xf]
    %v250 = vld [vmem:[#allocation2 + $0x24c] sm:$0xf]
    %v251 = vld [vmem:[#allocation2 + $0x250] sm:$0xf]
    %v252 = vld [vmem:[#allocation2 + $0x254] sm:$0xf]
    %v253 = vld [vmem:[#allocation2 + $0x258] sm:$0xf]
    %v254 = vld [vmem:[#allocation2 + $0x25c] sm:$0xf]
    %v255 = vld [vmem:[#allocation2 + $0x260] sm:$0xf]
    %v256 = vld [vmem:[#allocation2 + $0x264] sm:$0xf]
    %v257 = vld [vmem:[#allocation2 + $0x268] sm:$0xf]
    %v258 = vld [vmem:[#allocation2 + $0x26c] sm:$0xf]
    %v259 = vld [vmem:[#allocation2 + $0x270] sm:$0xf]
    %v260 = vld [vmem:[#allocation2 + $0x274] sm:$0xf]
    %v261 = vld [vmem:[#allocation2 + $0x278] sm:$0xf]
    %v262 = vld [vmem:[#allocation2 + $0x27c] sm:$0xf]
    %v263 = vld [vmem:[#allocation2 + $0x280] sm:$0xf]
    %v264 = vld [vmem:[#allocation2 + $0x284] sm:$0xf]
    %v265 = vld [vmem:[#allocation2 + $0x288] sm:$0xf]
    %v266 = vld [vmem:[#allocation2 + $0x28c] sm:$0xf]
    %v267 = vld [vmem:[#allocation2 + $0x290] sm:$0xf]
    %v268 = vld [vmem:[#allocation2 + $0x294] sm:$0xf]
    %v269 = vld [vmem:[#allocation2 + $0x298] sm:$0xf]
    %v270 = vld [vmem:[#allocation2 + $0x29c] sm:$0xf]
    %v271 = vld [vmem:[#allocation2 + $0x2a0] sm:$0xf]
    %v272 = vld [vmem:[#allocation2 + $0x2a4] sm:$0xf]
    %v273 = vld [vmem:[#allocation2 + $0x2a8] sm:$0xf]
    %v274 = vld [vmem:[#allocation2 + $0x2ac] sm:$0xf]
    %v275 = vld [vmem:[#allocation2 + $0x2b0] sm:$0xf]
    %v276 = vld [vmem:[#allocation2 + $0x2b4] sm:$0xf]
    %v277 = vld [vmem:[#allocation2 + $0x2b8] sm:$0xf]
    %v278 = vld [vmem:[#allocation2 + $0x2bc] sm:$0xf]
    %v279 = vld [vmem:[#allocation2 + $0x2c0] sm:$0xf]
    %v280 = vld [vmem:[#allocation2 + $0x2c4] sm:$0xf]
    %v281 = vld [vmem:[#allocation2 + $0x2c8] sm:$0xf]
    %v282 = vld [vmem:[#allocation2 + $0x2cc] sm:$0xf]
    %v283 = vld [vmem:[#allocation2 + $0x2d0] sm:$0xf]
    %v284 = vld [vmem:[#allocation2 + $0x2d4] sm:$0xf]
    %v285 = vld [vmem:[#allocation2 + $0x2d8] sm:$0xf]
    %v286 = vld [vmem:[#allocation2 + $0x2dc] sm:$0xf]
    %v287 = vld [vmem:[#allocation2 + $0x2e0] sm:$0xf]
    %v288 = vld [vmem:[#allocation2 + $0x2e4] sm:$0xf]
    %v289 = vld [vmem:[#allocation2 + $0x2e8] sm:$0xf]
    %v290 = vld [vmem:[#allocation2 + $0x2ec] sm:$0xf]
    %v291 = vld [vmem:[#allocation2 + $0x2f0] sm:$0xf]
    %v292 = vld [vmem:[#allocation2 + $0x2f4] sm:$0xf]
    %v293 = vld [vmem:[#allocation2 + $0x2f8] sm:$0xf]
    %v294 = vld [vmem:[#allocation2 + $0x2fc] sm:$0xf]
    %v295 = vld [vmem:[#allocation5] sm:$0xf]
    %v296 = vld [vmem:[#allocation5 + $0x4] sm:$0xf]
    %v297 = vld [vmem:[#allocation5 + $0x8] sm:$0xf]
    %v298 = vld [vmem:[#allocation5 + $0xc] sm:$0xf]
    %v299 = vld [vmem:[#allocation5 + $0x10] sm:$0xf]
    %v300 = vld [vmem:[#allocation5 + $0x14] sm:$0xf]
    %v301 = vld [vmem:[#allocation5 + $0x18] sm:$0xf]
    %v302 = vld [vmem:[#allocation5 + $0x1c] sm:$0xf]
    %v303 = vld [vmem:[#allocation5 + $0x20] sm:$0xf]
    %v304 = vld [vmem:[#allocation5 + $0x24] sm:$0xf]
    %v305 = vld [vmem:[#allocation5 + $0x28] sm:$0xf]
    %v306 = vld [vmem:[#allocation5 + $0x2c] sm:$0xf]
    %v307 = vld [vmem:[#allocation5 + $0x30] sm:$0xf]
    %v308 = vld [vmem:[#allocation5 + $0x34] sm:$0xf]
    %v309 = vld [vmem:[#allocation5 + $0x38] sm:$0xf]
    %v310 = vld [vmem:[#allocation5 + $0x3c] sm:$0xf]
    %v311 = vld [vmem:[#allocation7] sm:$0x1]
    %v313 = vlaneseq
    %v314 = vshrl.u32 %v313, 7
    %v315 = vsub.s32 0, %v314
    %v316 = vrot.slane %v311, %v315
    %v510 = vunpack.c.l.b16 %v103
    %v511 = vunpack.c.l.b16 %v104
    %v512 = vunpack.c.l.b16 %v105
    %v513 = vunpack.c.l.b16 %v106
    %v514 = vunpack.c.l.b16 %v107
    %v515 = vunpack.c.l.b16 %v108
    %v516 = vunpack.c.l.b16 %v109
    %v517 = vunpack.c.l.b16 %v110
    %v518 = vunpack.c.l.b16 %v111
    %v519 = vunpack.c.l.b16 %v112
    %v520 = vunpack.c.l.b16 %v113
    %v521 = vunpack.c.l.b16 %v114
    %v522 = vunpack.c.l.b16 %v115
    %v523 = vunpack.c.l.b16 %v116
    %v524 = vunpack.c.l.b16 %v117
    %v525 = vunpack.c.l.b16 %v118
    %v526 = vunpack.c.l.b16 %v119
    %v527 = vunpack.c.l.b16 %v120
    %v528 = vunpack.c.l.b16 %v121
    %v529 = vunpack.c.l.b16 %v122
    %v530 = vunpack.c.l.b16 %v123
    %v531 = vunpack.c.l.b16 %v124
    %v532 = vunpack.c.l.b16 %v125
    %v533 = vunpack.c.l.b16 %v126
    %v534 = vunpack.c.l.b16 %v127
    %v535 = vunpack.c.l.b16 %v128
    %v536 = vunpack.c.l.b16 %v129
    %v537 = vunpack.c.l.b16 %v130
    %v538 = vunpack.c.l.b16 %v131
    %v539 = vunpack.c.l.b16 %v132
    %v540 = vunpack.c.l.b16 %v133
    %v541 = vunpack.c.l.b16 %v134
    %v542 = vunpack.c.l.b16 %v135
    %v543 = vunpack.c.l.b16 %v136
    %v544 = vunpack.c.l.b16 %v137
    %v545 = vunpack.c.l.b16 %v138
    %v546 = vunpack.c.l.b16 %v139
    %v547 = vunpack.c.l.b16 %v140
    %v548 = vunpack.c.l.b16 %v141
    %v549 = vunpack.c.l.b16 %v142
    %v550 = vunpack.c.l.b16 %v143
    %v551 = vunpack.c.l.b16 %v144
    %v552 = vunpack.c.l.b16 %v145
    %v553 = vunpack.c.l.b16 %v146
    %v554 = vunpack.c.l.b16 %v147
    %v555 = vunpack.c.l.b16 %v148
    %v556 = vunpack.c.l.b16 %v149
    %v557 = vunpack.c.l.b16 %v150
    %v558 = vunpack.c.l.b16 %v151
    %v559 = vunpack.c.l.b16 %v152
    %v560 = vunpack.c.l.b16 %v153
    %v561 = vunpack.c.l.b16 %v154
    %v562 = vunpack.c.l.b16 %v155
    %v563 = vunpack.c.l.b16 %v156
    %v564 = vunpack.c.l.b16 %v157
    %v565 = vunpack.c.l.b16 %v158
    %v566 = vunpack.c.l.b16 %v159
    %v567 = vunpack.c.l.b16 %v160
    %v568 = vunpack.c.l.b16 %v161
    %v569 = vunpack.c.l.b16 %v162
    %v570 = vunpack.c.l.b16 %v163
    %v571 = vunpack.c.l.b16 %v164
    %v572 = vunpack.c.l.b16 %v165
    %v573 = vunpack.c.l.b16 %v166
    %v574 = vunpack.c.l.b16 %v167
    %v575 = vunpack.c.l.b16 %v168
    %v576 = vunpack.c.l.b16 %v169
    %v577 = vunpack.c.l.b16 %v170
    %v578 = vunpack.c.l.b16 %v171
    %v579 = vunpack.c.l.b16 %v172
    %v580 = vunpack.c.l.b16 %v173
    %v581 = vunpack.c.l.b16 %v174
    %v582 = vunpack.c.l.b16 %v175
    %v583 = vunpack.c.l.b16 %v176
    %v584 = vunpack.c.l.b16 %v177
    %v585 = vunpack.c.l.b16 %v178
    %v586 = vunpack.c.l.b16 %v179
    %v587 = vunpack.c.l.b16 %v180
    %v588 = vunpack.c.l.b16 %v181
    %v589 = vunpack.c.l.b16 %v182
    %v590 = vunpack.c.l.b16 %v183
    %v591 = vunpack.c.l.b16 %v184
    %v592 = vunpack.c.l.b16 %v185
    %v593 = vunpack.c.l.b16 %v186
    %v594 = vunpack.c.l.b16 %v187
    %v595 = vunpack.c.l.b16 %v188
    %v596 = vunpack.c.l.b16 %v189
    %v597 = vunpack.c.l.b16 %v190
    %v598 = vunpack.c.l.b16 %v191
    %v599 = vunpack.c.l.b16 %v192
    %v600 = vunpack.c.l.b16 %v193
    %v601 = vunpack.c.l.b16 %v194
    %v602 = vunpack.c.l.b16 %v195
    %v603 = vunpack.c.l.b16 %v196
    %v604 = vunpack.c.l.b16 %v197
    %v605 = vunpack.c.l.b16 %v198
    %v606 = vunpack.c.l.b16 %v199
    %v607 = vunpack.c.l.b16 %v200
    %v608 = vunpack.c.l.b16 %v201
    %v609 = vunpack.c.l.b16 %v202
    %v610 = vunpack.c.l.b16 %v203
    %v611 = vunpack.c.l.b16 %v204
    %v612 = vunpack.c.l.b16 %v205
    %v613 = vunpack.c.l.b16 %v206
    %v614 = vunpack.c.l.b16 %v207
    %v615 = vunpack.c.l.b16 %v208
    %v616 = vunpack.c.l.b16 %v209
    %v617 = vunpack.c.l.b16 %v210
    %v618 = vunpack.c.l.b16 %v211
    %v619 = vunpack.c.l.b16 %v212
    %v620 = vunpack.c.l.b16 %v213
    %v621 = vunpack.c.l.b16 %v214
    %v622 = vunpack.c.l.b16 %v215
    %v623 = vunpack.c.l.b16 %v216
    %v624 = vunpack.c.l.b16 %v217
    %v625 = vunpack.c.l.b16 %v218
    %v626 = vunpack.c.l.b16 %v219
    %v627 = vunpack.c.l.b16 %v220
    %v628 = vunpack.c.l.b16 %v221
    %v629 = vunpack.c.l.b16 %v222
    %v630 = vunpack.c.l.b16 %v223
    %v631 = vunpack.c.l.b16 %v224
    %v632 = vunpack.c.l.b16 %v225
    %v633 = vunpack.c.l.b16 %v226
    %v634 = vunpack.c.l.b16 %v227
    %v635 = vunpack.c.l.b16 %v228
    %v636 = vunpack.c.l.b16 %v229
    %v637 = vunpack.c.l.b16 %v230
    %v638 = vunpack.c.l.b16 %v231
    %v639 = vunpack.c.l.b16 %v232
    %v640 = vunpack.c.l.b16 %v233
    %v641 = vunpack.c.l.b16 %v234
    %v642 = vunpack.c.l.b16 %v235
    %v643 = vunpack.c.l.b16 %v236
    %v644 = vunpack.c.l.b16 %v237
    %v645 = vunpack.c.l.b16 %v238
    %v646 = vunpack.c.l.b16 %v239
    %v647 = vunpack.c.l.b16 %v240
    %v648 = vunpack.c.l.b16 %v241
    %v649 = vunpack.c.l.b16 %v242
    %v650 = vunpack.c.l.b16 %v243
    %v651 = vunpack.c.l.b16 %v244
    %v652 = vunpack.c.l.b16 %v245
    %v653 = vunpack.c.l.b16 %v246
    %v654 = vunpack.c.l.b16 %v247
    %v655 = vunpack.c.l.b16 %v248
    %v656 = vunpack.c.l.b16 %v249
    %v657 = vunpack.c.l.b16 %v250
    %v658 = vunpack.c.l.b16 %v251
    %v659 = vunpack.c.l.b16 %v252
    %v660 = vunpack.c.l.b16 %v253
    %v661 = vunpack.c.l.b16 %v254
    %v662 = vunpack.c.l.b16 %v255
    %v663 = vunpack.c.l.b16 %v256
    %v664 = vunpack.c.l.b16 %v257
    %v665 = vunpack.c.l.b16 %v258
    %v666 = vunpack.c.l.b16 %v259
    %v667 = vunpack.c.l.b16 %v260
    %v668 = vunpack.c.l.b16 %v261
    %v669 = vunpack.c.l.b16 %v262
    %v670 = vunpack.c.l.b16 %v263
    %v671 = vunpack.c.l.b16 %v264
    %v672 = vunpack.c.l.b16 %v265
    %v673 = vunpack.c.l.b16 %v266
    %v674 = vunpack.c.l.b16 %v267
    %v675 = vunpack.c.l.b16 %v268
    %v676 = vunpack.c.l.b16 %v269
    %v677 = vunpack.c.l.b16 %v270
    %v678 = vunpack.c.l.b16 %v271
    %v679 = vunpack.c.l.b16 %v272
    %v680 = vunpack.c.l.b16 %v273
    %v681 = vunpack.c.l.b16 %v274
    %v682 = vunpack.c.l.b16 %v275
    %v683 = vunpack.c.l.b16 %v276
    %v684 = vunpack.c.l.b16 %v277
    %v685 = vunpack.c.l.b16 %v278
    %v686 = vunpack.c.l.b16 %v279
    %v687 = vunpack.c.l.b16 %v280
    %v688 = vunpack.c.l.b16 %v281
    %v689 = vunpack.c.l.b16 %v282
    %v690 = vunpack.c.l.b16 %v283
    %v691 = vunpack.c.l.b16 %v284
    %v692 = vunpack.c.l.b16 %v285
    %v693 = vunpack.c.l.b16 %v286
    %v694 = vunpack.c.l.b16 %v287
    %v695 = vunpack.c.l.b16 %v288
    %v696 = vunpack.c.l.b16 %v289
    %v697 = vunpack.c.l.b16 %v290
    %v698 = vunpack.c.l.b16 %v291
    %v699 = vunpack.c.l.b16 %v292
    %v700 = vunpack.c.l.b16 %v293
    %v701 = vunpack.c.l.b16 %v294
    %v702 = vpack.c.b16 %v511, %v510
    %v703 = vpack.c.b16 %v513, %v512
    %v704 = vpack.c.b16 %v515, %v514
    %v705 = vpack.c.b16 %v517, %v516
    %v706 = vpack.c.b16 %v519, %v518
    %v707 = vpack.c.b16 %v521, %v520
    %v708 = vpack.c.b16 %v523, %v522
    %v709 = vpack.c.b16 %v525, %v524
    %v710 = vpack.c.b16 %v527, %v526
    %v711 = vpack.c.b16 %v529, %v528
    %v712 = vpack.c.b16 %v531, %v530
    %v713 = vpack.c.b16 %v533, %v532
    %v714 = vpack.c.b16 %v535, %v534
    %v715 = vpack.c.b16 %v537, %v536
    %v716 = vpack.c.b16 %v539, %v538
    %v717 = vpack.c.b16 %v541, %v540
    %v718 = vpack.c.b16 %v543, %v542
    %v719 = vpack.c.b16 %v545, %v544
    %v720 = vpack.c.b16 %v547, %v546
    %v721 = vpack.c.b16 %v549, %v548
    %v722 = vpack.c.b16 %v551, %v550
    %v723 = vpack.c.b16 %v553, %v552
    %v724 = vpack.c.b16 %v555, %v554
    %v725 = vpack.c.b16 %v557, %v556
    %v726 = vpack.c.b16 %v559, %v558
    %v727 = vpack.c.b16 %v561, %v560
    %v728 = vpack.c.b16 %v563, %v562
    %v729 = vpack.c.b16 %v565, %v564
    %v730 = vpack.c.b16 %v567, %v566
    %v731 = vpack.c.b16 %v569, %v568
    %v732 = vpack.c.b16 %v571, %v570
    %v733 = vpack.c.b16 %v573, %v572
    %v734 = vpack.c.b16 %v575, %v574
    %v735 = vpack.c.b16 %v577, %v576
    %v736 = vpack.c.b16 %v579, %v578
    %v737 = vpack.c.b16 %v581, %v580
    %v738 = vpack.c.b16 %v583, %v582
    %v739 = vpack.c.b16 %v585, %v584
    %v740 = vpack.c.b16 %v587, %v586
    %v741 = vpack.c.b16 %v589, %v588
    %v742 = vpack.c.b16 %v591, %v590
    %v743 = vpack.c.b16 %v593, %v592
    %v744 = vpack.c.b16 %v595, %v594
    %v745 = vpack.c.b16 %v597, %v596
    %v746 = vpack.c.b16 %v599, %v598
    %v747 = vpack.c.b16 %v601, %v600
    %v748 = vpack.c.b16 %v603, %v602
    %v749 = vpack.c.b16 %v605, %v604
    %v750 = vpack.c.b16 %v607, %v606
    %v751 = vpack.c.b16 %v609, %v608
    %v752 = vpack.c.b16 %v611, %v610
    %v753 = vpack.c.b16 %v613, %v612
    %v754 = vpack.c.b16 %v615, %v614
    %v755 = vpack.c.b16 %v617, %v616
    %v756 = vpack.c.b16 %v619, %v618
    %v757 = vpack.c.b16 %v621, %v620
    %v758 = vpack.c.b16 %v623, %v622
    %v759 = vpack.c.b16 %v625, %v624
    %v760 = vpack.c.b16 %v627, %v626
    %v761 = vpack.c.b16 %v629, %v628
    %v762 = vpack.c.b16 %v631, %v630
    %v763 = vpack.c.b16 %v633, %v632
    %v764 = vpack.c.b16 %v635, %v634
    %v765 = vpack.c.b16 %v637, %v636
    %v766 = vpack.c.b16 %v639, %v638
    %v767 = vpack.c.b16 %v641, %v640
    %v768 = vpack.c.b16 %v643, %v642
    %v769 = vpack.c.b16 %v645, %v644
    %v770 = vpack.c.b16 %v647, %v646
    %v771 = vpack.c.b16 %v649, %v648
    %v772 = vpack.c.b16 %v651, %v650
    %v773 = vpack.c.b16 %v653, %v652
    %v774 = vpack.c.b16 %v655, %v654
    %v775 = vpack.c.b16 %v657, %v656
    %v776 = vpack.c.b16 %v659, %v658
    %v777 = vpack.c.b16 %v661, %v660
    %v778 = vpack.c.b16 %v663, %v662
    %v779 = vpack.c.b16 %v665, %v664
    %v780 = vpack.c.b16 %v667, %v666
    %v781 = vpack.c.b16 %v669, %v668
    %v782 = vpack.c.b16 %v671, %v670
    %v783 = vpack.c.b16 %v673, %v672
    %v784 = vpack.c.b16 %v675, %v674
    %v785 = vpack.c.b16 %v677, %v676
    %v786 = vpack.c.b16 %v679, %v678
    %v787 = vpack.c.b16 %v681, %v680
    %v788 = vpack.c.b16 %v683, %v682
    %v789 = vpack.c.b16 %v685, %v684
    %v790 = vpack.c.b16 %v687, %v686
    %v791 = vpack.c.b16 %v689, %v688
    %v792 = vpack.c.b16 %v691, %v690
    %v793 = vpack.c.b16 %v693, %v692
    %v794 = vpack.c.b16 %v695, %v694
    %v795 = vpack.c.b16 %v697, %v696
    %v796 = vpack.c.b16 %v699, %v698
    %v797 = vpack.c.b16 %v701, %v700
    %v910 = vunpack.c.l.b16 %v295
    %v911 = vunpack.c.l.b16 %v296
    %v912 = vunpack.c.l.b16 %v297
    %v913 = vunpack.c.l.b16 %v298
    %v914 = vunpack.c.l.b16 %v299
    %v915 = vunpack.c.l.b16 %v300
    %v916 = vunpack.c.l.b16 %v301
    %v917 = vunpack.c.l.b16 %v302
    %v918 = vunpack.c.l.b16 %v303
    %v919 = vunpack.c.l.b16 %v304
    %v920 = vunpack.c.l.b16 %v305
    %v921 = vunpack.c.l.b16 %v306
    %v922 = vunpack.c.l.b16 %v307
    %v923 = vunpack.c.l.b16 %v308
    %v924 = vunpack.c.l.b16 %v309
    %v925 = vunpack.c.l.b16 %v310
    %v926 = vpack.c.b16 %v911, %v910
    %v927 = vpack.c.b16 %v913, %v912
    %v928 = vpack.c.b16 %v915, %v914
    %v929 = vpack.c.b16 %v917, %v916
    %v930 = vpack.c.b16 %v919, %v918
    %v931 = vpack.c.b16 %v921, %v920
    %v932 = vpack.c.b16 %v923, %v922
    %v933 = vpack.c.b16 %v925, %v924
    %942 = vmatprep.subr.bf16.mxu0 0
    %943 = vmatpush1.bf16.msra.mxu0 %v926
    %944 = vmatprep.subr.bf16.mxu0 0
    %945 = vmatpush1.bf16.msra.mxu0 %v927
    %946 = vmatprep.subr.bf16.mxu0 0
    %947 = vmatpush1.bf16.msra.mxu0 %v928
    %948 = vmatprep.subr.bf16.mxu0 0
    %949 = vmatpush1.bf16.msra.mxu0 %v929
    %950 = vmatprep.subr.bf16.mxu0 0
    %951 = vmatpush1.bf16.msra.mxu0 %v930
    %952 = vmatprep.subr.bf16.mxu0 0
    %953 = vmatpush1.bf16.msra.mxu0 %v931
    %954 = vmatprep.subr.bf16.mxu0 0
    %955 = vmatpush1.bf16.msra.mxu0 %v932
    %956 = vmatprep.subr.bf16.mxu0 0
    %957 = vmatpush1.bf16.msra.mxu0 %v933
    %958 = vmatprep.subr.bf16.mxu0 0
    %959 = vmatpush1.bf16.msra.mxu0 0
    %960 = vmatprep.subr.bf16.mxu0 0
    %961 = vmatpush1.bf16.msra.mxu0 0
    %962 = vmatprep.subr.bf16.mxu0 0
    %963 = vmatpush1.bf16.msra.mxu0 0
    %964 = vmatprep.subr.bf16.mxu0 0
    %965 = vmatpush1.bf16.msra.mxu0 0
    %966 = vmatprep.subr.bf16.mxu0 0
    %967 = vmatpush1.bf16.msra.mxu0 0
    %968 = vmatprep.subr.bf16.mxu0 0
    %969 = vmatpush1.bf16.msra.mxu0 0
    %970 = vmatprep.subr.bf16.mxu0 0
    %971 = vmatpush1.bf16.msra.mxu0 0
    %972 = vmatprep.subr.bf16.mxu0 0
    %973 = vmatpush1.bf16.msra.mxu0 0
    %974 = vmatprep.mubr.bf16.mxu0 0
    %975 = vmatmul.mubr.bf16.gmra.mrb[0].mxu0 %v702
    %v976 = vpop.f32.mrb[0].mxu0
    %v977 = vadd.f32 %v316, %v976
    %v978 = vpop.f32.mrb[0].mxu0
    %v979 = vpop.f32.mrb[0].mxu0
    %v980 = vadd.f32 %v316, %v979
    %v981 = vpop.f32.mrb[0].mxu0
    %982 = vmatprep.mubr.bf16.mxu0 0
    %983 = vmatmul.mubr.bf16.gmra.mrb[0].mxu0 %v703
    %v984 = vpop.f32.mrb[0].mxu0
    %v985 = vadd.f32 %v316, %v984
    %v986 = vpop.f32.mrb[0].mxu0
    %v987 = vpop.f32.mrb[0].mxu0
    %v988 = vadd.f32 %v316, %v987
    %v989 = vpop.f32.mrb[0].mxu0
    %990 = vmatprep.mubr.bf16.mxu0 0
    %991 = vmatmul.mubr.bf16.gmra.mrb[0].mxu0 %v704
    %v992 = vpop.f32.mrb[0].mxu0
    %v993 = vadd.f32 %v316, %v992
    %v994 = vpop.f32.mrb[0].mxu0
    %v995 = vpop.f32.mrb[0].mxu0
    %v996 = vadd.f32 %v316, %v995
    %v997 = vpop.f32.mrb[0].mxu0
    %998 = vmatprep.mubr.bf16.mxu0 0
    %999 = vmatmul.mubr.bf16.gmra.mrb[0].mxu0 %v705
    %v1000 = vpop.f32.mrb[0].mxu0
    %v1001 = vadd.f32 %v316, %v1000
    %v1002 = vpop.f32.mrb[0].mxu0
    %v1003 = vpop.f32.mrb[0].mxu0
    %v1004 = vadd.f32 %v316, %v1003
    %v1005 = vpop.f32.mrb[0].mxu0
    %1006 = vmatprep.mubr.bf16.mxu0 0
    %1007 = vmatmul.mubr.bf16.gmra.mrb[0].mxu0 %v706
    %v1008 = vpop.f32.mrb[0].mxu0
    %v1009 = vadd.f32 %v316, %v1008
    %v1010 = vpop.f32.mrb[0].mxu0
    %v1011 = vpop.f32.mrb[0].mxu0
    %v1012 = vadd.f32 %v316, %v1011
    %v1013 = vpop.f32.mrb[0].mxu0
    %1014 = vmatprep.mubr.bf16.mxu0 0
    %1015 = vmatmul.mubr.bf16.gmra.mrb[0].mxu0 %v707
    %v1016 = vpop.f32.mrb[0].mxu0
    %v1017 = vadd.f32 %v316, %v1016
    %v1018 = vpop.f32.mrb[0].mxu0
    %v1019 = vpop.f32.mrb[0].mxu0
    %v1020 = vadd.f32 %v316, %v1019
    %v1021 = vpop.f32.mrb[0].mxu0
    %1022 = vmatprep.mubr.bf16.mxu0 0
    %1023 = vmatmul.mubr.bf16.gmra.mrb[0].mxu0 %v708
    %v1024 = vpop.f32.mrb[0].mxu0
    %v1025 = vadd.f32 %v316, %v1024
    %v1026 = vpop.f32.mrb[0].mxu0
    %v1027 = vpop.f32.mrb[0].mxu0
    %v1028 = vadd.f32 %v316, %v1027
    %v1029 = vpop.f32.mrb[0].mxu0
    %1030 = vmatprep.mubr.bf16.mxu0 0
    %1031 = vmatmul.mubr.bf16.gmra.mrb[0].mxu0 %v709
    %v1032 = vpop.f32.mrb[0].mxu0
    %v1033 = vadd.f32 %v316, %v1032
    %v1034 = vpop.f32.mrb[0].mxu0
    %v1035 = vpop.f32.mrb[0].mxu0
    %v1036 = vadd.f32 %v316, %v1035
    %v1037 = vpop.f32.mrb[0].mxu0
    %1038 = vmatprep.mubr.bf16.mxu0 0
    %1039 = vmatmul.mubr.bf16.gmra.mrb[0].mxu0 %v710
    %v1040 = vpop.f32.mrb[0].mxu0
    %v1041 = vadd.f32 %v316, %v1040
    %v1042 = vpop.f32.mrb[0].mxu0
    %v1043 = vpop.f32.mrb[0].mxu0
    %v1044 = vadd.f32 %v316, %v1043
    %v1045 = vpop.f32.mrb[0].mxu0
    %1046 = vmatprep.mubr.bf16.mxu0 0
    %1047 = vmatmul.mubr.bf16.gmra.mrb[0].mxu0 %v711
    %v1048 = vpop.f32.mrb[0].mxu0
    %v1049 = vadd.f32 %v316, %v1048
    %v1050 = vpop.f32.mrb[0].mxu0
    %v1051 = vpop.f32.mrb[0].mxu0
    %v1052 = vadd.f32 %v316, %v1051
    %v1053 = vpop.f32.mrb[0].mxu0
    %1054 = vmatprep.mubr.bf16.mxu0 0
    %1055 = vmatmul.mubr.bf16.gmra.mrb[0].mxu0 %v712
    %v1056 = vpop.f32.mrb[0].mxu0
    %v1057 = vadd.f32 %v316, %v1056
    %v1058 = vpop.f32.mrb[0].mxu0
    %v1059 = vpop.f32.mrb[0].mxu0
    %v1060 = vadd.f32 %v316, %v1059
    %v1061 = vpop.f32.mrb[0].mxu0
    %1062 = vmatprep.mubr.bf16.mxu0 0
    %1063 = vmatmul.mubr.bf16.gmra.mrb[0].mxu0 %v713
    %v1064 = vpop.f32.mrb[0].mxu0
    %v1065 = vadd.f32 %v316, %v1064
    %v1066 = vpop.f32.mrb[0].mxu0
    %v1067 = vpop.f32.mrb[0].mxu0
    %v1068 = vadd.f32 %v316, %v1067
    %v1069 = vpop.f32.mrb[0].mxu0
    %1070 = vmatprep.mubr.bf16.mxu0 0
    %1071 = vmatmul.mubr.bf16.gmra.mrb[0].mxu0 %v714
    %v1072 = vpop.f32.mrb[0].mxu0
    %v1073 = vadd.f32 %v316, %v1072
    %v1074 = vpop.f32.mrb[0].mxu0
    %v1075 = vpop.f32.mrb[0].mxu0
    %v1076 = vadd.f32 %v316, %v1075
    %v1077 = vpop.f32.mrb[0].mxu0
    %1078 = vmatprep.mubr.bf16.mxu0 0
    %1079 = vmatmul.mubr.bf16.gmra.mrb[0].mxu0 %v715
    %v1080 = vpop.f32.mrb[0].mxu0
    %v1081 = vadd.f32 %v316, %v1080
    %v1082 = vpop.f32.mrb[0].mxu0
    %v1083 = vpop.f32.mrb[0].mxu0
    %v1084 = vadd.f32 %v316, %v1083
    %v1085 = vpop.f32.mrb[0].mxu0
    %1086 = vmatprep.mubr.bf16.mxu0 0
    %1087 = vmatmul.mubr.bf16.gmra.mrb[0].mxu0 %v716
    %v1088 = vpop.f32.mrb[0].mxu0
    %v1089 = vadd.f32 %v316, %v1088
    %v1090 = vpop.f32.mrb[0].mxu0
    %v1091 = vpop.f32.mrb[0].mxu0
    %v1092 = vadd.f32 %v316, %v1091
    %v1093 = vpop.f32.mrb[0].mxu0
    %1094 = vmatprep.mubr.bf16.mxu0 0
    %1095 = vmatmul.mubr.bf16.gmra.mrb[0].mxu0 %v717
    %v1096 = vpop.f32.mrb[0].mxu0
    %v1097 = vadd.f32 %v316, %v1096
    %v1098 = vpop.f32.mrb[0].mxu0
    %v1099 = vpop.f32.mrb[0].mxu0
    %v1100 = vadd.f32 %v316, %v1099
    %v1101 = vpop.f32.mrb[0].mxu0
    %1102 = vmatprep.mubr.bf16.mxu0 0
    %1103 = vmatmul.mubr.bf16.gmra.mrb[0].mxu0 %v718
    %v1104 = vpop.f32.mrb[0].mxu0
    %v1105 = vadd.f32 %v316, %v1104
    %v1106 = vpop.f32.mrb[0].mxu0
    %v1107 = vpop.f32.mrb[0].mxu0
    %v1108 = vadd.f32 %v316, %v1107
    %v1109 = vpop.f32.mrb[0].mxu0
    %1110 = vmatprep.mubr.bf16.mxu0 0
    %1111 = vmatmul.mubr.bf16.gmra.mrb[0].mxu0 %v719
    %v1112 = vpop.f32.mrb[0].mxu0
    %v1113 = vadd.f32 %v316, %v1112
    %v1114 = vpop.f32.mrb[0].mxu0
    %v1115 = vpop.f32.mrb[0].mxu0
    %v1116 = vadd.f32 %v316, %v1115
    %v1117 = vpop.f32.mrb[0].mxu0
    %1118 = vmatprep.mubr.bf16.mxu0 0
    %1119 = vmatmul.mubr.bf16.gmra.mrb[0].mxu0 %v720
    %v1120 = vpop.f32.mrb[0].mxu0
    %v1121 = vadd.f32 %v316, %v1120
    %v1122 = vpop.f32.mrb[0].mxu0
    %v1123 = vpop.f32.mrb[0].mxu0
    %v1124 = vadd.f32 %v316, %v1123
    %v1125 = vpop.f32.mrb[0].mxu0
    %1126 = vmatprep.mubr.bf16.mxu0 0
    %1127 = vmatmul.mubr.bf16.gmra.mrb[0].mxu0 %v721
    %v1128 = vpop.f32.mrb[0].mxu0
    %v1129 = vadd.f32 %v316, %v1128
    %v1130 = vpop.f32.mrb[0].mxu0
    %v1131 = vpop.f32.mrb[0].mxu0
    %v1132 = vadd.f32 %v316, %v1131
    %v1133 = vpop.f32.mrb[0].mxu0
    %1134 = vmatprep.mubr.bf16.mxu0 0
    %1135 = vmatmul.mubr.bf16.gmra.mrb[0].mxu0 %v722
    %v1136 = vpop.f32.mrb[0].mxu0
    %v1137 = vadd.f32 %v316, %v1136
    %v1138 = vpop.f32.mrb[0].mxu0
    %v1139 = vpop.f32.mrb[0].mxu0
    %v1140 = vadd.f32 %v316, %v1139
    %v1141 = vpop.f32.mrb[0].mxu0
    %1142 = vmatprep.mubr.bf16.mxu0 0
    %1143 = vmatmul.mubr.bf16.gmra.mrb[0].mxu0 %v723
    %v1144 = vpop.f32.mrb[0].mxu0
    %v1145 = vadd.f32 %v316, %v1144
    %v1146 = vpop.f32.mrb[0].mxu0
    %v1147 = vpop.f32.mrb[0].mxu0
    %v1148 = vadd.f32 %v316, %v1147
    %v1149 = vpop.f32.mrb[0].mxu0
    %1150 = vmatprep.mubr.bf16.mxu0 0
    %1151 = vmatmul.mubr.bf16.gmra.mrb[0].mxu0 %v724
    %v1152 = vpop.f32.mrb[0].mxu0
    %v1153 = vadd.f32 %v316, %v1152
    %v1154 = vpop.f32.mrb[0].mxu0
    %v1155 = vpop.f32.mrb[0].mxu0
    %v1156 = vadd.f32 %v316, %v1155
    %v1157 = vpop.f32.mrb[0].mxu0
    %1158 = vmatprep.mubr.bf16.mxu0 0
    %1159 = vmatmul.mubr.bf16.gmra.mrb[0].mxu0 %v725
    %v1160 = vpop.f32.mrb[0].mxu0
    %v1161 = vadd.f32 %v316, %v1160
    %v1162 = vpop.f32.mrb[0].mxu0
    %v1163 = vpop.f32.mrb[0].mxu0
    %v1164 = vadd.f32 %v316, %v1163
    %v1165 = vpop.f32.mrb[0].mxu0
    %1166 = vmatprep.mubr.bf16.mxu0 0
    %1167 = vmatmul.mubr.bf16.gmra.mrb[0].mxu0 %v726
    %v1168 = vpop.f32.mrb[0].mxu0
    %v1169 = vadd.f32 %v316, %v1168
    %v1170 = vpop.f32.mrb[0].mxu0
    %v1171 = vpop.f32.mrb[0].mxu0
    %v1172 = vadd.f32 %v316, %v1171
    %v1173 = vpop.f32.mrb[0].mxu0
    %1174 = vmatprep.mubr.bf16.mxu0 0
    %1175 = vmatmul.mubr.bf16.gmra.mrb[0].mxu0 %v727
    %v1176 = vpop.f32.mrb[0].mxu0
    %v1177 = vadd.f32 %v316, %v1176
    %v1178 = vpop.f32.mrb[0].mxu0
    %v1179 = vpop.f32.mrb[0].mxu0
    %v1180 = vadd.f32 %v316, %v1179
    %v1181 = vpop.f32.mrb[0].mxu0
    %1182 = vmatprep.mubr.bf16.mxu0 0
    %1183 = vmatmul.mubr.bf16.gmra.mrb[0].mxu0 %v728
    %v1184 = vpop.f32.mrb[0].mxu0
    %v1185 = vadd.f32 %v316, %v1184
    %v1186 = vpop.f32.mrb[0].mxu0
    %v1187 = vpop.f32.mrb[0].mxu0
    %v1188 = vadd.f32 %v316, %v1187
    %v1189 = vpop.f32.mrb[0].mxu0
    %1190 = vmatprep.mubr.bf16.mxu0 0
    %1191 = vmatmul.mubr.bf16.gmra.mrb[0].mxu0 %v729
    %v1192 = vpop.f32.mrb[0].mxu0
    %v1193 = vadd.f32 %v316, %v1192
    %v1194 = vpop.f32.mrb[0].mxu0
    %v1195 = vpop.f32.mrb[0].mxu0
    %v1196 = vadd.f32 %v316, %v1195
    %v1197 = vpop.f32.mrb[0].mxu0
    %1198 = vmatprep.mubr.bf16.mxu0 0
    %1199 = vmatmul.mubr.bf16.gmra.mrb[0].mxu0 %v730
    %v1200 = vpop.f32.mrb[0].mxu0
    %v1201 = vadd.f32 %v316, %v1200
    %v1202 = vpop.f32.mrb[0].mxu0
    %v1203 = vpop.f32.mrb[0].mxu0
    %v1204 = vadd.f32 %v316, %v1203
    %v1205 = vpop.f32.mrb[0].mxu0
    %1206 = vmatprep.mubr.bf16.mxu0 0
    %1207 = vmatmul.mubr.bf16.gmra.mrb[0].mxu0 %v731
    %v1208 = vpop.f32.mrb[0].mxu0
    %v1209 = vadd.f32 %v316, %v1208
    %v1210 = vpop.f32.mrb[0].mxu0
    %v1211 = vpop.f32.mrb[0].mxu0
    %v1212 = vadd.f32 %v316, %v1211
    %v1213 = vpop.f32.mrb[0].mxu0
    %1214 = vmatprep.mubr.bf16.mxu0 0
    %1215 = vmatmul.mubr.bf16.gmra.mrb[0].mxu0 %v732
    %v1216 = vpop.f32.mrb[0].mxu0
    %v1217 = vadd.f32 %v316, %v1216
    %v1218 = vpop.f32.mrb[0].mxu0
    %v1219 = vpop.f32.mrb[0].mxu0
    %v1220 = vadd.f32 %v316, %v1219
    %v1221 = vpop.f32.mrb[0].mxu0
    %1222 = vmatprep.mubr.bf16.mxu0 0
    %1223 = vmatmul.mubr.bf16.gmra.mrb[0].mxu0 %v733
    %v1224 = vpop.f32.mrb[0].mxu0
    %v1225 = vadd.f32 %v316, %v1224
    %v1226 = vpop.f32.mrb[0].mxu0
    %v1227 = vpop.f32.mrb[0].mxu0
    %v1228 = vadd.f32 %v316, %v1227
    %v1229 = vpop.f32.mrb[0].mxu0
    %1230 = vmatprep.mubr.bf16.mxu0 0
    %1231 = vmatmul.mubr.bf16.gmra.mrb[0].mxu0 %v734
    %v1232 = vpop.f32.mrb[0].mxu0
    %v1233 = vadd.f32 %v316, %v1232
    %v1234 = vpop.f32.mrb[0].mxu0
    %v1235 = vpop.f32.mrb[0].mxu0
    %v1236 = vadd.f32 %v316, %v1235
    %v1237 = vpop.f32.mrb[0].mxu0
    %1238 = vmatprep.mubr.bf16.mxu0 0
    %1239 = vmatmul.mubr.bf16.gmra.mrb[0].mxu0 %v735
    %v1240 = vpop.f32.mrb[0].mxu0
    %v1241 = vadd.f32 %v316, %v1240
    %v1242 = vpop.f32.mrb[0].mxu0
    %v1243 = vpop.f32.mrb[0].mxu0
    %v1244 = vadd.f32 %v316, %v1243
    %v1245 = vpop.f32.mrb[0].mxu0
    %1246 = vmatprep.mubr.bf16.mxu0 0
    %1247 = vmatmul.mubr.bf16.gmra.mrb[0].mxu0 %v736
    %v1248 = vpop.f32.mrb[0].mxu0
    %v1249 = vadd.f32 %v316, %v1248
    %v1250 = vpop.f32.mrb[0].mxu0
    %v1251 = vpop.f32.mrb[0].mxu0
    %v1252 = vadd.f32 %v316, %v1251
    %v1253 = vpop.f32.mrb[0].mxu0
    %1254 = vmatprep.mubr.bf16.mxu0 0
    %1255 = vmatmul.mubr.bf16.gmra.mrb[0].mxu0 %v737
    %v1256 = vpop.f32.mrb[0].mxu0
    %v1257 = vadd.f32 %v316, %v1256
    %v1258 = vpop.f32.mrb[0].mxu0
    %v1259 = vpop.f32.mrb[0].mxu0
    %v1260 = vadd.f32 %v316, %v1259
    %v1261 = vpop.f32.mrb[0].mxu0
    %1262 = vmatprep.mubr.bf16.mxu0 0
    %1263 = vmatmul.mubr.bf16.gmra.mrb[0].mxu0 %v738
    %v1264 = vpop.f32.mrb[0].mxu0
    %v1265 = vadd.f32 %v316, %v1264
    %v1266 = vpop.f32.mrb[0].mxu0
    %v1267 = vpop.f32.mrb[0].mxu0
    %v1268 = vadd.f32 %v316, %v1267
    %v1269 = vpop.f32.mrb[0].mxu0
    %1270 = vmatprep.mubr.bf16.mxu0 0
    %1271 = vmatmul.mubr.bf16.gmra.mrb[0].mxu0 %v739
    %v1272 = vpop.f32.mrb[0].mxu0
    %v1273 = vadd.f32 %v316, %v1272
    %v1274 = vpop.f32.mrb[0].mxu0
    %v1275 = vpop.f32.mrb[0].mxu0
    %v1276 = vadd.f32 %v316, %v1275
    %v1277 = vpop.f32.mrb[0].mxu0
    %1278 = vmatprep.mubr.bf16.mxu0 0
    %1279 = vmatmul.mubr.bf16.gmra.mrb[0].mxu0 %v740
    %v1280 = vpop.f32.mrb[0].mxu0
    %v1281 = vadd.f32 %v316, %v1280
    %v1282 = vpop.f32.mrb[0].mxu0
    %v1283 = vpop.f32.mrb[0].mxu0
    %v1284 = vadd.f32 %v316, %v1283
    %v1285 = vpop.f32.mrb[0].mxu0
    %1286 = vmatprep.mubr.bf16.mxu0 0
    %1287 = vmatmul.mubr.bf16.gmra.mrb[0].mxu0 %v741
    %v1288 = vpop.f32.mrb[0].mxu0
    %v1289 = vadd.f32 %v316, %v1288
    %v1290 = vpop.f32.mrb[0].mxu0
    %v1291 = vpop.f32.mrb[0].mxu0
    %v1292 = vadd.f32 %v316, %v1291
    %v1293 = vpop.f32.mrb[0].mxu0
    %1294 = vmatprep.mubr.bf16.mxu0 0
    %1295 = vmatmul.mubr.bf16.gmra.mrb[0].mxu0 %v742
    %v1296 = vpop.f32.mrb[0].mxu0
    %v1297 = vadd.f32 %v316, %v1296
    %v1298 = vpop.f32.mrb[0].mxu0
    %v1299 = vpop.f32.mrb[0].mxu0
    %v1300 = vadd.f32 %v316, %v1299
    %v1301 = vpop.f32.mrb[0].mxu0
    %1302 = vmatprep.mubr.bf16.mxu0 0
    %1303 = vmatmul.mubr.bf16.gmra.mrb[0].mxu0 %v743
    %v1304 = vpop.f32.mrb[0].mxu0
    %v1305 = vadd.f32 %v316, %v1304
    %v1306 = vpop.f32.mrb[0].mxu0
    %v1307 = vpop.f32.mrb[0].mxu0
    %v1308 = vadd.f32 %v316, %v1307
    %v1309 = vpop.f32.mrb[0].mxu0
    %1310 = vmatprep.mubr.bf16.mxu0 0
    %1311 = vmatmul.mubr.bf16.gmra.mrb[0].mxu0 %v744
    %v1312 = vpop.f32.mrb[0].mxu0
    %v1313 = vadd.f32 %v316, %v1312
    %v1314 = vpop.f32.mrb[0].mxu0
    %v1315 = vpop.f32.mrb[0].mxu0
    %v1316 = vadd.f32 %v316, %v1315
    %v1317 = vpop.f32.mrb[0].mxu0
    %1318 = vmatprep.mubr.bf16.mxu0 0
    %1319 = vmatmul.mubr.bf16.gmra.mrb[0].mxu0 %v745
    %v1320 = vpop.f32.mrb[0].mxu0
    %v1321 = vadd.f32 %v316, %v1320
    %v1322 = vpop.f32.mrb[0].mxu0
    %v1323 = vpop.f32.mrb[0].mxu0
    %v1324 = vadd.f32 %v316, %v1323
    %v1325 = vpop.f32.mrb[0].mxu0
    %1326 = vmatprep.mubr.bf16.mxu0 0
    %1327 = vmatmul.mubr.bf16.gmra.mrb[0].mxu0 %v746
    %v1328 = vpop.f32.mrb[0].mxu0
    %v1329 = vadd.f32 %v316, %v1328
    %v1330 = vpop.f32.mrb[0].mxu0
    %v1331 = vpop.f32.mrb[0].mxu0
    %v1332 = vadd.f32 %v316, %v1331
    %v1333 = vpop.f32.mrb[0].mxu0
    %1334 = vmatprep.mubr.bf16.mxu0 0
    %1335 = vmatmul.mubr.bf16.gmra.mrb[0].mxu0 %v747
    %v1336 = vpop.f32.mrb[0].mxu0
    %v1337 = vadd.f32 %v316, %v1336
    %v1338 = vpop.f32.mrb[0].mxu0
    %v1339 = vpop.f32.mrb[0].mxu0
    %v1340 = vadd.f32 %v316, %v1339
    %v1341 = vpop.f32.mrb[0].mxu0
    %1342 = vmatprep.mubr.bf16.mxu0 0
    %1343 = vmatmul.mubr.bf16.gmra.mrb[0].mxu0 %v748
    %v1344 = vpop.f32.mrb[0].mxu0
    %v1345 = vadd.f32 %v316, %v1344
    %v1346 = vpop.f32.mrb[0].mxu0
    %v1347 = vpop.f32.mrb[0].mxu0
    %v1348 = vadd.f32 %v316, %v1347
    %v1349 = vpop.f32.mrb[0].mxu0
    %1350 = vmatprep.mubr.bf16.mxu0 0
    %1351 = vmatmul.mubr.bf16.gmra.mrb[0].mxu0 %v749
    %v1352 = vpop.f32.mrb[0].mxu0
    %v1353 = vadd.f32 %v316, %v1352
    %v1354 = vpop.f32.mrb[0].mxu0
    %v1355 = vpop.f32.mrb[0].mxu0
    %v1356 = vadd.f32 %v316, %v1355
    %v1357 = vpop.f32.mrb[0].mxu0
    %1358 = vmatprep.mubr.bf16.mxu0 0
    %1359 = vmatmul.mubr.bf16.gmra.mrb[0].mxu0 %v750
    %v1360 = vpop.f32.mrb[0].mxu0
    %v1361 = vadd.f32 %v316, %v1360
    %v1362 = vpop.f32.mrb[0].mxu0
    %v1363 = vpop.f32.mrb[0].mxu0
    %v1364 = vadd.f32 %v316, %v1363
    %v1365 = vpop.f32.mrb[0].mxu0
    %1366 = vmatprep.mubr.bf16.mxu0 0
    %1367 = vmatmul.mubr.bf16.gmra.mrb[0].mxu0 %v751
    %v1368 = vpop.f32.mrb[0].mxu0
    %v1369 = vadd.f32 %v316, %v1368
    %v1370 = vpop.f32.mrb[0].mxu0
    %v1371 = vpop.f32.mrb[0].mxu0
    %v1372 = vadd.f32 %v316, %v1371
    %v1373 = vpop.f32.mrb[0].mxu0
    %1374 = vmatprep.mubr.bf16.mxu0 0
    %1375 = vmatmul.mubr.bf16.gmra.mrb[0].mxu0 %v752
    %v1376 = vpop.f32.mrb[0].mxu0
    %v1377 = vadd.f32 %v316, %v1376
    %v1378 = vpop.f32.mrb[0].mxu0
    %v1379 = vpop.f32.mrb[0].mxu0
    %v1380 = vadd.f32 %v316, %v1379
    %v1381 = vpop.f32.mrb[0].mxu0
    %1382 = vmatprep.mubr.bf16.mxu0 0
    %1383 = vmatmul.mubr.bf16.gmra.mrb[0].mxu0 %v753
    %v1384 = vpop.f32.mrb[0].mxu0
    %v1385 = vadd.f32 %v316, %v1384
    %v1386 = vpop.f32.mrb[0].mxu0
    %v1387 = vpop.f32.mrb[0].mxu0
    %v1388 = vadd.f32 %v316, %v1387
    %v1389 = vpop.f32.mrb[0].mxu0
    %1390 = vmatprep.mubr.bf16.mxu0 0
    %1391 = vmatmul.mubr.bf16.gmra.mrb[0].mxu0 %v754
    %v1392 = vpop.f32.mrb[0].mxu0
    %v1393 = vadd.f32 %v316, %v1392
    %v1394 = vpop.f32.mrb[0].mxu0
    %v1395 = vpop.f32.mrb[0].mxu0
    %v1396 = vadd.f32 %v316, %v1395
    %v1397 = vpop.f32.mrb[0].mxu0
    %1398 = vmatprep.mubr.bf16.mxu0 0
    %1399 = vmatmul.mubr.bf16.gmra.mrb[0].mxu0 %v755
    %v1400 = vpop.f32.mrb[0].mxu0
    %v1401 = vadd.f32 %v316, %v1400
    %v1402 = vpop.f32.mrb[0].mxu0
    %v1403 = vpop.f32.mrb[0].mxu0
    %v1404 = vadd.f32 %v316, %v1403
    %v1405 = vpop.f32.mrb[0].mxu0
    %1406 = vmatprep.mubr.bf16.mxu0 0
    %1407 = vmatmul.mubr.bf16.gmra.mrb[0].mxu0 %v756
    %v1408 = vpop.f32.mrb[0].mxu0
    %v1409 = vadd.f32 %v316, %v1408
    %v1410 = vpop.f32.mrb[0].mxu0
    %v1411 = vpop.f32.mrb[0].mxu0
    %v1412 = vadd.f32 %v316, %v1411
    %v1413 = vpop.f32.mrb[0].mxu0
    %1414 = vmatprep.mubr.bf16.mxu0 0
    %1415 = vmatmul.mubr.bf16.gmra.mrb[0].mxu0 %v757
    %v1416 = vpop.f32.mrb[0].mxu0
    %v1417 = vadd.f32 %v316, %v1416
    %v1418 = vpop.f32.mrb[0].mxu0
    %v1419 = vpop.f32.mrb[0].mxu0
    %v1420 = vadd.f32 %v316, %v1419
    %v1421 = vpop.f32.mrb[0].mxu0
    %1422 = vmatprep.mubr.bf16.mxu0 0
    %1423 = vmatmul.mubr.bf16.gmra.mrb[0].mxu0 %v758
    %v1424 = vpop.f32.mrb[0].mxu0
    %v1425 = vadd.f32 %v316, %v1424
    %v1426 = vpop.f32.mrb[0].mxu0
    %v1427 = vpop.f32.mrb[0].mxu0
    %v1428 = vadd.f32 %v316, %v1427
    %v1429 = vpop.f32.mrb[0].mxu0
    %1430 = vmatprep.mubr.bf16.mxu0 0
    %1431 = vmatmul.mubr.bf16.gmra.mrb[0].mxu0 %v759
    %v1432 = vpop.f32.mrb[0].mxu0
    %v1433 = vadd.f32 %v316, %v1432
    %v1434 = vpop.f32.mrb[0].mxu0
    %v1435 = vpop.f32.mrb[0].mxu0
    %v1436 = vadd.f32 %v316, %v1435
    %v1437 = vpop.f32.mrb[0].mxu0
    %1438 = vmatprep.mubr.bf16.mxu0 0
    %1439 = vmatmul.mubr.bf16.gmra.mrb[0].mxu0 %v760
    %v1440 = vpop.f32.mrb[0].mxu0
    %v1441 = vadd.f32 %v316, %v1440
    %v1442 = vpop.f32.mrb[0].mxu0
    %v1443 = vpop.f32.mrb[0].mxu0
    %v1444 = vadd.f32 %v316, %v1443
    %v1445 = vpop.f32.mrb[0].mxu0
    %1446 = vmatprep.mubr.bf16.mxu0 0
    %1447 = vmatmul.mubr.bf16.gmra.mrb[0].mxu0 %v761
    %v1448 = vpop.f32.mrb[0].mxu0
    %v1449 = vadd.f32 %v316, %v1448
    %v1450 = vpop.f32.mrb[0].mxu0
    %v1451 = vpop.f32.mrb[0].mxu0
    %v1452 = vadd.f32 %v316, %v1451
    %v1453 = vpop.f32.mrb[0].mxu0
    %1454 = vmatprep.mubr.bf16.mxu0 0
    %1455 = vmatmul.mubr.bf16.gmra.mrb[0].mxu0 %v762
    %v1456 = vpop.f32.mrb[0].mxu0
    %v1457 = vadd.f32 %v316, %v1456
    %v1458 = vpop.f32.mrb[0].mxu0
    %v1459 = vpop.f32.mrb[0].mxu0
    %v1460 = vadd.f32 %v316, %v1459
    %v1461 = vpop.f32.mrb[0].mxu0
    %1462 = vmatprep.mubr.bf16.mxu0 0
    %1463 = vmatmul.mubr.bf16.gmra.mrb[0].mxu0 %v763
    %v1464 = vpop.f32.mrb[0].mxu0
    %v1465 = vadd.f32 %v316, %v1464
    %v1466 = vpop.f32.mrb[0].mxu0
    %v1467 = vpop.f32.mrb[0].mxu0
    %v1468 = vadd.f32 %v316, %v1467
    %v1469 = vpop.f32.mrb[0].mxu0
    %1470 = vmatprep.mubr.bf16.mxu0 0
    %1471 = vmatmul.mubr.bf16.gmra.mrb[0].mxu0 %v764
    %v1472 = vpop.f32.mrb[0].mxu0
    %v1473 = vadd.f32 %v316, %v1472
    %v1474 = vpop.f32.mrb[0].mxu0
    %v1475 = vpop.f32.mrb[0].mxu0
    %v1476 = vadd.f32 %v316, %v1475
    %v1477 = vpop.f32.mrb[0].mxu0
    %1478 = vmatprep.mubr.bf16.mxu0 0
    %1479 = vmatmul.mubr.bf16.gmra.mrb[0].mxu0 %v765
    %v1480 = vpop.f32.mrb[0].mxu0
    %v1481 = vadd.f32 %v316, %v1480
    %v1482 = vpop.f32.mrb[0].mxu0
    %v1483 = vpop.f32.mrb[0].mxu0
    %v1484 = vadd.f32 %v316, %v1483
    %v1485 = vpop.f32.mrb[0].mxu0
    %1486 = vmatprep.mubr.bf16.mxu0 0
    %1487 = vmatmul.mubr.bf16.gmra.mrb[0].mxu0 %v766
    %v1488 = vpop.f32.mrb[0].mxu0
    %v1489 = vadd.f32 %v316, %v1488
    %v1490 = vpop.f32.mrb[0].mxu0
    %v1491 = vpop.f32.mrb[0].mxu0
    %v1492 = vadd.f32 %v316, %v1491
    %v1493 = vpop.f32.mrb[0].mxu0
    %1494 = vmatprep.mubr.bf16.mxu0 0
    %1495 = vmatmul.mubr.bf16.gmra.mrb[0].mxu0 %v767
    %v1496 = vpop.f32.mrb[0].mxu0
    %v1497 = vadd.f32 %v316, %v1496
    %v1498 = vpop.f32.mrb[0].mxu0
    %v1499 = vpop.f32.mrb[0].mxu0
    %v1500 = vadd.f32 %v316, %v1499
    %v1501 = vpop.f32.mrb[0].mxu0
    %1502 = vmatprep.mubr.bf16.mxu0 0
    %1503 = vmatmul.mubr.bf16.gmra.mrb[0].mxu0 %v768
    %v1504 = vpop.f32.mrb[0].mxu0
    %v1505 = vadd.f32 %v316, %v1504
    %v1506 = vpop.f32.mrb[0].mxu0
    %v1507 = vpop.f32.mrb[0].mxu0
    %v1508 = vadd.f32 %v316, %v1507
    %v1509 = vpop.f32.mrb[0].mxu0
    %1510 = vmatprep.mubr.bf16.mxu0 0
    %1511 = vmatmul.mubr.bf16.gmra.mrb[0].mxu0 %v769
    %v1512 = vpop.f32.mrb[0].mxu0
    %v1513 = vadd.f32 %v316, %v1512
    %v1514 = vpop.f32.mrb[0].mxu0
    %v1515 = vpop.f32.mrb[0].mxu0
    %v1516 = vadd.f32 %v316, %v1515
    %v1517 = vpop.f32.mrb[0].mxu0
    %1518 = vmatprep.mubr.bf16.mxu0 0
    %1519 = vmatmul.mubr.bf16.gmra.mrb[0].mxu0 %v770
    %v1520 = vpop.f32.mrb[0].mxu0
    %v1521 = vadd.f32 %v316, %v1520
    %v1522 = vpop.f32.mrb[0].mxu0
    %v1523 = vpop.f32.mrb[0].mxu0
    %v1524 = vadd.f32 %v316, %v1523
    %v1525 = vpop.f32.mrb[0].mxu0
    %1526 = vmatprep.mubr.bf16.mxu0 0
    %1527 = vmatmul.mubr.bf16.gmra.mrb[0].mxu0 %v771
    %v1528 = vpop.f32.mrb[0].mxu0
    %v1529 = vadd.f32 %v316, %v1528
    %v1530 = vpop.f32.mrb[0].mxu0
    %v1531 = vpop.f32.mrb[0].mxu0
    %v1532 = vadd.f32 %v316, %v1531
    %v1533 = vpop.f32.mrb[0].mxu0
    %1534 = vmatprep.mubr.bf16.mxu0 0
    %1535 = vmatmul.mubr.bf16.gmra.mrb[0].mxu0 %v772
    %v1536 = vpop.f32.mrb[0].mxu0
    %v1537 = vadd.f32 %v316, %v1536
    %v1538 = vpop.f32.mrb[0].mxu0
    %v1539 = vpop.f32.mrb[0].mxu0
    %v1540 = vadd.f32 %v316, %v1539
    %v1541 = vpop.f32.mrb[0].mxu0
    %1542 = vmatprep.mubr.bf16.mxu0 0
    %1543 = vmatmul.mubr.bf16.gmra.mrb[0].mxu0 %v773
    %v1544 = vpop.f32.mrb[0].mxu0
    %v1545 = vadd.f32 %v316, %v1544
    %v1546 = vpop.f32.mrb[0].mxu0
    %v1547 = vpop.f32.mrb[0].mxu0
    %v1548 = vadd.f32 %v316, %v1547
    %v1549 = vpop.f32.mrb[0].mxu0
    %1550 = vmatprep.mubr.bf16.mxu0 0
    %1551 = vmatmul.mubr.bf16.gmra.mrb[0].mxu0 %v774
    %v1552 = vpop.f32.mrb[0].mxu0
    %v1553 = vadd.f32 %v316, %v1552
    %v1554 = vpop.f32.mrb[0].mxu0
    %v1555 = vpop.f32.mrb[0].mxu0
    %v1556 = vadd.f32 %v316, %v1555
    %v1557 = vpop.f32.mrb[0].mxu0
    %1558 = vmatprep.mubr.bf16.mxu0 0
    %1559 = vmatmul.mubr.bf16.gmra.mrb[0].mxu0 %v775
    %v1560 = vpop.f32.mrb[0].mxu0
    %v1561 = vadd.f32 %v316, %v1560
    %v1562 = vpop.f32.mrb[0].mxu0
    %v1563 = vpop.f32.mrb[0].mxu0
    %v1564 = vadd.f32 %v316, %v1563
    %v1565 = vpop.f32.mrb[0].mxu0
    %1566 = vmatprep.mubr.bf16.mxu0 0
    %1567 = vmatmul.mubr.bf16.gmra.mrb[0].mxu0 %v776
    %v1568 = vpop.f32.mrb[0].mxu0
    %v1569 = vadd.f32 %v316, %v1568
    %v1570 = vpop.f32.mrb[0].mxu0
    %v1571 = vpop.f32.mrb[0].mxu0
    %v1572 = vadd.f32 %v316, %v1571
    %v1573 = vpop.f32.mrb[0].mxu0
    %1574 = vmatprep.mubr.bf16.mxu0 0
    %1575 = vmatmul.mubr.bf16.gmra.mrb[0].mxu0 %v777
    %v1576 = vpop.f32.mrb[0].mxu0
    %v1577 = vadd.f32 %v316, %v1576
    %v1578 = vpop.f32.mrb[0].mxu0
    %v1579 = vpop.f32.mrb[0].mxu0
    %v1580 = vadd.f32 %v316, %v1579
    %v1581 = vpop.f32.mrb[0].mxu0
    %1582 = vmatprep.mubr.bf16.mxu0 0
    %1583 = vmatmul.mubr.bf16.gmra.mrb[0].mxu0 %v778
    %v1584 = vpop.f32.mrb[0].mxu0
    %v1585 = vadd.f32 %v316, %v1584
    %v1586 = vpop.f32.mrb[0].mxu0
    %v1587 = vpop.f32.mrb[0].mxu0
    %v1588 = vadd.f32 %v316, %v1587
    %v1589 = vpop.f32.mrb[0].mxu0
    %1590 = vmatprep.mubr.bf16.mxu0 0
    %1591 = vmatmul.mubr.bf16.gmra.mrb[0].mxu0 %v779
    %v1592 = vpop.f32.mrb[0].mxu0
    %v1593 = vadd.f32 %v316, %v1592
    %v1594 = vpop.f32.mrb[0].mxu0
    %v1595 = vpop.f32.mrb[0].mxu0
    %v1596 = vadd.f32 %v316, %v1595
    %v1597 = vpop.f32.mrb[0].mxu0
    %1598 = vmatprep.mubr.bf16.mxu0 0
    %1599 = vmatmul.mubr.bf16.gmra.mrb[0].mxu0 %v780
    %v1600 = vpop.f32.mrb[0].mxu0
    %v1601 = vadd.f32 %v316, %v1600
    %v1602 = vpop.f32.mrb[0].mxu0
    %v1603 = vpop.f32.mrb[0].mxu0
    %v1604 = vadd.f32 %v316, %v1603
    %v1605 = vpop.f32.mrb[0].mxu0
    %1606 = vmatprep.mubr.bf16.mxu0 0
    %1607 = vmatmul.mubr.bf16.gmra.mrb[0].mxu0 %v781
    %v1608 = vpop.f32.mrb[0].mxu0
    %v1609 = vadd.f32 %v316, %v1608
    %v1610 = vpop.f32.mrb[0].mxu0
    %v1611 = vpop.f32.mrb[0].mxu0
    %v1612 = vadd.f32 %v316, %v1611
    %v1613 = vpop.f32.mrb[0].mxu0
    %1614 = vmatprep.mubr.bf16.mxu0 0
    %1615 = vmatmul.mubr.bf16.gmra.mrb[0].mxu0 %v782
    %v1616 = vpop.f32.mrb[0].mxu0
    %v1617 = vadd.f32 %v316, %v1616
    %v1618 = vpop.f32.mrb[0].mxu0
    %v1619 = vpop.f32.mrb[0].mxu0
    %v1620 = vadd.f32 %v316, %v1619
    %v1621 = vpop.f32.mrb[0].mxu0
    %1622 = vmatprep.mubr.bf16.mxu0 0
    %1623 = vmatmul.mubr.bf16.gmra.mrb[0].mxu0 %v783
    %v1624 = vpop.f32.mrb[0].mxu0
    %v1625 = vadd.f32 %v316, %v1624
    %v1626 = vpop.f32.mrb[0].mxu0
    %v1627 = vpop.f32.mrb[0].mxu0
    %v1628 = vadd.f32 %v316, %v1627
    %v1629 = vpop.f32.mrb[0].mxu0
    %1630 = vmatprep.mubr.bf16.mxu0 0
    %1631 = vmatmul.mubr.bf16.gmra.mrb[0].mxu0 %v784
    %v1632 = vpop.f32.mrb[0].mxu0
    %v1633 = vadd.f32 %v316, %v1632
    %v1634 = vpop.f32.mrb[0].mxu0
    %v1635 = vpop.f32.mrb[0].mxu0
    %v1636 = vadd.f32 %v316, %v1635
    %v1637 = vpop.f32.mrb[0].mxu0
    %1638 = vmatprep.mubr.bf16.mxu0 0
    %1639 = vmatmul.mubr.bf16.gmra.mrb[0].mxu0 %v785
    %v1640 = vpop.f32.mrb[0].mxu0
    %v1641 = vadd.f32 %v316, %v1640
    %v1642 = vpop.f32.mrb[0].mxu0
    %v1643 = vpop.f32.mrb[0].mxu0
    %v1644 = vadd.f32 %v316, %v1643
    %v1645 = vpop.f32.mrb[0].mxu0
    %1646 = vmatprep.mubr.bf16.mxu0 0
    %1647 = vmatmul.mubr.bf16.gmra.mrb[0].mxu0 %v786
    %v1648 = vpop.f32.mrb[0].mxu0
    %v1649 = vadd.f32 %v316, %v1648
    %v1650 = vpop.f32.mrb[0].mxu0
    %v1651 = vpop.f32.mrb[0].mxu0
    %v1652 = vadd.f32 %v316, %v1651
    %v1653 = vpop.f32.mrb[0].mxu0
    %1654 = vmatprep.mubr.bf16.mxu0 0
    %1655 = vmatmul.mubr.bf16.gmra.mrb[0].mxu0 %v787
    %v1656 = vpop.f32.mrb[0].mxu0
    %v1657 = vadd.f32 %v316, %v1656
    %v1658 = vpop.f32.mrb[0].mxu0
    %v1659 = vpop.f32.mrb[0].mxu0
    %v1660 = vadd.f32 %v316, %v1659
    %v1661 = vpop.f32.mrb[0].mxu0
    %1662 = vmatprep.mubr.bf16.mxu0 0
    %1663 = vmatmul.mubr.bf16.gmra.mrb[0].mxu0 %v788
    %v1664 = vpop.f32.mrb[0].mxu0
    %v1665 = vadd.f32 %v316, %v1664
    %v1666 = vpop.f32.mrb[0].mxu0
    %v1667 = vpop.f32.mrb[0].mxu0
    %v1668 = vadd.f32 %v316, %v1667
    %v1669 = vpop.f32.mrb[0].mxu0
    %1670 = vmatprep.mubr.bf16.mxu0 0
    %1671 = vmatmul.mubr.bf16.gmra.mrb[0].mxu0 %v789
    %v1672 = vpop.f32.mrb[0].mxu0
    %v1673 = vadd.f32 %v316, %v1672
    %v1674 = vpop.f32.mrb[0].mxu0
    %v1675 = vpop.f32.mrb[0].mxu0
    %v1676 = vadd.f32 %v316, %v1675
    %v1677 = vpop.f32.mrb[0].mxu0
    %1678 = vmatprep.mubr.bf16.mxu0 0
    %1679 = vmatmul.mubr.bf16.gmra.mrb[0].mxu0 %v790
    %v1680 = vpop.f32.mrb[0].mxu0
    %v1681 = vadd.f32 %v316, %v1680
    %v1682 = vpop.f32.mrb[0].mxu0
    %v1683 = vpop.f32.mrb[0].mxu0
    %v1684 = vadd.f32 %v316, %v1683
    %v1685 = vpop.f32.mrb[0].mxu0
    %1686 = vmatprep.mubr.bf16.mxu0 0
    %1687 = vmatmul.mubr.bf16.gmra.mrb[0].mxu0 %v791
    %v1688 = vpop.f32.mrb[0].mxu0
    %v1689 = vadd.f32 %v316, %v1688
    %v1690 = vpop.f32.mrb[0].mxu0
    %v1691 = vpop.f32.mrb[0].mxu0
    %v1692 = vadd.f32 %v316, %v1691
    %v1693 = vpop.f32.mrb[0].mxu0
    %1694 = vmatprep.mubr.bf16.mxu0 0
    %1695 = vmatmul.mubr.bf16.gmra.mrb[0].mxu0 %v792
    %v1696 = vpop.f32.mrb[0].mxu0
    %v1697 = vadd.f32 %v316, %v1696
    %v1698 = vpop.f32.mrb[0].mxu0
    %v1699 = vpop.f32.mrb[0].mxu0
    %v1700 = vadd.f32 %v316, %v1699
    %v1701 = vpop.f32.mrb[0].mxu0
    %1702 = vmatprep.mubr.bf16.mxu0 0
    %1703 = vmatmul.mubr.bf16.gmra.mrb[0].mxu0 %v793
    %v1704 = vpop.f32.mrb[0].mxu0
    %v1705 = vadd.f32 %v316, %v1704
    %v1706 = vpop.f32.mrb[0].mxu0
    %v1707 = vpop.f32.mrb[0].mxu0
    %v1708 = vadd.f32 %v316, %v1707
    %v1709 = vpop.f32.mrb[0].mxu0
    %1710 = vmatprep.mubr.bf16.mxu0 0
    %1711 = vmatmul.mubr.bf16.gmra.mrb[0].mxu0 %v794
    %v1712 = vpop.f32.mrb[0].mxu0
    %v1713 = vadd.f32 %v316, %v1712
    %v1714 = vpop.f32.mrb[0].mxu0
    %v1715 = vpop.f32.mrb[0].mxu0
    %v1716 = vadd.f32 %v316, %v1715
    %v1717 = vpop.f32.mrb[0].mxu0
    %1718 = vmatprep.mubr.bf16.mxu0 0
    %1719 = vmatmul.mubr.bf16.gmra.mrb[0].mxu0 %v795
    %v1720 = vpop.f32.mrb[0].mxu0
    %v1721 = vadd.f32 %v316, %v1720
    %v1722 = vpop.f32.mrb[0].mxu0
    %v1723 = vpop.f32.mrb[0].mxu0
    %v1724 = vadd.f32 %v316, %v1723
    %v1725 = vpop.f32.mrb[0].mxu0
    %1726 = vmatprep.mubr.bf16.mxu0 0
    %1727 = vmatmul.mubr.bf16.gmra.mrb[0].mxu0 %v796
    %v1728 = vpop.f32.mrb[0].mxu0
    %v1729 = vadd.f32 %v316, %v1728
    %v1730 = vpop.f32.mrb[0].mxu0
    %v1731 = vpop.f32.mrb[0].mxu0
    %v1732 = vadd.f32 %v316, %v1731
    %v1733 = vpop.f32.mrb[0].mxu0
    %1734 = vmatprep.mubr.bf16.mxu0 0
    %1735 = vmatmul.mubr.bf16.gmra.mrb[0].mxu0 %v797
    %v1736 = vpop.f32.mrb[0].mxu0
    %v1737 = vadd.f32 %v316, %v1736
    %v1738 = vpop.f32.mrb[0].mxu0
    %v1739 = vpop.f32.mrb[0].mxu0
    %v1740 = vadd.f32 %v316, %v1739
    %v1741 = vpop.f32.mrb[0].mxu0
    %1742 = vdwg.mxu0
    %v1743 = vxor.u32 %v977, 2147483648
    %v1744 = vxor.u32 %v980, 2147483648
    %v1745 = vxor.u32 %v985, 2147483648
    %v1746 = vxor.u32 %v988, 2147483648
    %v1747 = vxor.u32 %v993, 2147483648
    %v1748 = vxor.u32 %v996, 2147483648
    %v1749 = vxor.u32 %v1001, 2147483648
    %v1750 = vxor.u32 %v1004, 2147483648
    %v1751 = vxor.u32 %v1009, 2147483648
    %v1752 = vxor.u32 %v1012, 2147483648
    %v1753 = vxor.u32 %v1017, 2147483648
    %v1754 = vxor.u32 %v1020, 2147483648
    %v1755 = vxor.u32 %v1025, 2147483648
    %v1756 = vxor.u32 %v1028, 2147483648
    %v1757 = vxor.u32 %v1033, 2147483648
    %v1758 = vxor.u32 %v1036, 2147483648
    %v1759 = vxor.u32 %v1041, 2147483648
    %v1760 = vxor.u32 %v1044, 2147483648
    %v1761 = vxor.u32 %v1049, 2147483648
    %v1762 = vxor.u32 %v1052, 2147483648
    %v1763 = vxor.u32 %v1057, 2147483648
    %v1764 = vxor.u32 %v1060, 2147483648
    %v1765 = vxor.u32 %v1065, 2147483648
    %v1766 = vxor.u32 %v1068, 2147483648
    %v1767 = vxor.u32 %v1073, 2147483648
    %v1768 = vxor.u32 %v1076, 2147483648
    %v1769 = vxor.u32 %v1081, 2147483648
    %v1770 = vxor.u32 %v1084, 2147483648
    %v1771 = vxor.u32 %v1089, 2147483648
    %v1772 = vxor.u32 %v1092, 2147483648
    %v1773 = vxor.u32 %v1097, 2147483648
    %v1774 = vxor.u32 %v1100, 2147483648
    %v1775 = vxor.u32 %v1105, 2147483648
    %v1776 = vxor.u32 %v1108, 2147483648
    %v1777 = vxor.u32 %v1113, 2147483648
    %v1778 = vxor.u32 %v1116, 2147483648
    %v1779 = vxor.u32 %v1121, 2147483648
    %v1780 = vxor.u32 %v1124, 2147483648
    %v1781 = vxor.u32 %v1129, 2147483648
    %v1782 = vxor.u32 %v1132, 2147483648
    %v1783 = vxor.u32 %v1137, 2147483648
    %v1784 = vxor.u32 %v1140, 2147483648
    %v1785 = vxor.u32 %v1145, 2147483648
    %v1786 = vxor.u32 %v1148, 2147483648
    %v1787 = vxor.u32 %v1153, 2147483648
    %v1788 = vxor.u32 %v1156, 2147483648
    %v1789 = vxor.u32 %v1161, 2147483648
    %v1790 = vxor.u32 %v1164, 2147483648
    %v1791 = vxor.u32 %v1169, 2147483648
    %v1792 = vxor.u32 %v1172, 2147483648
    %v1793 = vxor.u32 %v1177, 2147483648
    %v1794 = vxor.u32 %v1180, 2147483648
    %v1795 = vxor.u32 %v1185, 2147483648
    %v1796 = vxor.u32 %v1188, 2147483648
    %v1797 = vxor.u32 %v1193, 2147483648
    %v1798 = vxor.u32 %v1196, 2147483648
    %v1799 = vxor.u32 %v1201, 2147483648
    %v1800 = vxor.u32 %v1204, 2147483648
    %v1801 = vxor.u32 %v1209, 2147483648
    %v1802 = vxor.u32 %v1212, 2147483648
    %v1803 = vxor.u32 %v1217, 2147483648
    %v1804 = vxor.u32 %v1220, 2147483648
    %v1805 = vxor.u32 %v1225, 2147483648
    %v1806 = vxor.u32 %v1228, 2147483648
    %v1807 = vxor.u32 %v1233, 2147483648
    %v1808 = vxor.u32 %v1236, 2147483648
    %v1809 = vxor.u32 %v1241, 2147483648
    %v1810 = vxor.u32 %v1244, 2147483648
    %v1811 = vxor.u32 %v1249, 2147483648
    %v1812 = vxor.u32 %v1252, 2147483648
    %v1813 = vxor.u32 %v1257, 2147483648
    %v1814 = vxor.u32 %v1260, 2147483648
    %v1815 = vxor.u32 %v1265, 2147483648
    %v1816 = vxor.u32 %v1268, 2147483648
    %v1817 = vxor.u32 %v1273, 2147483648
    %v1818 = vxor.u32 %v1276, 2147483648
    %v1819 = vxor.u32 %v1281, 2147483648
    %v1820 = vxor.u32 %v1284, 2147483648
    %v1821 = vxor.u32 %v1289, 2147483648
    %v1822 = vxor.u32 %v1292, 2147483648
    %v1823 = vxor.u32 %v1297, 2147483648
    %v1824 = vxor.u32 %v1300, 2147483648
    %v1825 = vxor.u32 %v1305, 2147483648
    %v1826 = vxor.u32 %v1308, 2147483648
    %v1827 = vxor.u32 %v1313, 2147483648
    %v1828 = vxor.u32 %v1316, 2147483648
    %v1829 = vxor.u32 %v1321, 2147483648
    %v1830 = vxor.u32 %v1324, 2147483648
    %v1831 = vxor.u32 %v1329, 2147483648
    %v1832 = vxor.u32 %v1332, 2147483648
    %v1833 = vxor.u32 %v1337, 2147483648
    %v1834 = vxor.u32 %v1340, 2147483648
    %v1835 = vxor.u32 %v1345, 2147483648
    %v1836 = vxor.u32 %v1348, 2147483648
    %v1837 = vxor.u32 %v1353, 2147483648
    %v1838 = vxor.u32 %v1356, 2147483648
    %v1839 = vxor.u32 %v1361, 2147483648
    %v1840 = vxor.u32 %v1364, 2147483648
    %v1841 = vxor.u32 %v1369, 2147483648
    %v1842 = vxor.u32 %v1372, 2147483648
    %v1843 = vxor.u32 %v1377, 2147483648
    %v1844 = vxor.u32 %v1380, 2147483648
    %v1845 = vxor.u32 %v1385, 2147483648
    %v1846 = vxor.u32 %v1388, 2147483648
    %v1847 = vxor.u32 %v1393, 2147483648
    %v1848 = vxor.u32 %v1396, 2147483648
    %v1849 = vxor.u32 %v1401, 2147483648
    %v1850 = vxor.u32 %v1404, 2147483648
    %v1851 = vxor.u32 %v1409, 2147483648
    %v1852 = vxor.u32 %v1412, 2147483648
    %v1853 = vxor.u32 %v1417, 2147483648
    %v1854 = vxor.u32 %v1420, 2147483648
    %v1855 = vxor.u32 %v1425, 2147483648
    %v1856 = vxor.u32 %v1428, 2147483648
    %v1857 = vxor.u32 %v1433, 2147483648
    %v1858 = vxor.u32 %v1436, 2147483648
    %v1859 = vxor.u32 %v1441, 2147483648
    %v1860 = vxor.u32 %v1444, 2147483648
    %v1861 = vxor.u32 %v1449, 2147483648
    %v1862 = vxor.u32 %v1452, 2147483648
    %v1863 = vxor.u32 %v1457, 2147483648
    %v1864 = vxor.u32 %v1460, 2147483648
    %v1865 = vxor.u32 %v1465, 2147483648
    %v1866 = vxor.u32 %v1468, 2147483648
    %v1867 = vxor.u32 %v1473, 2147483648
    %v1868 = vxor.u32 %v1476, 2147483648
    %v1869 = vxor.u32 %v1481, 2147483648
    %v1870 = vxor.u32 %v1484, 2147483648
    %v1871 = vxor.u32 %v1489, 2147483648
    %v1872 = vxor.u32 %v1492, 2147483648
    %v1873 = vxor.u32 %v1497, 2147483648
    %v1874 = vxor.u32 %v1500, 2147483648
    %v1875 = vxor.u32 %v1505, 2147483648
    %v1876 = vxor.u32 %v1508, 2147483648
    %v1877 = vxor.u32 %v1513, 2147483648
    %v1878 = vxor.u32 %v1516, 2147483648
    %v1879 = vxor.u32 %v1521, 2147483648
    %v1880 = vxor.u32 %v1524, 2147483648
    %v1881 = vxor.u32 %v1529, 2147483648
    %v1882 = vxor.u32 %v1532, 2147483648
    %v1883 = vxor.u32 %v1537, 2147483648
    %v1884 = vxor.u32 %v1540, 2147483648
    %v1885 = vxor.u32 %v1545, 2147483648
    %v1886 = vxor.u32 %v1548, 2147483648
    %v1887 = vxor.u32 %v1553, 2147483648
    %v1888 = vxor.u32 %v1556, 2147483648
    %v1889 = vxor.u32 %v1561, 2147483648
    %v1890 = vxor.u32 %v1564, 2147483648
    %v1891 = vxor.u32 %v1569, 2147483648
    %v1892 = vxor.u32 %v1572, 2147483648
    %v1893 = vxor.u32 %v1577, 2147483648
    %v1894 = vxor.u32 %v1580, 2147483648
    %v1895 = vxor.u32 %v1585, 2147483648
    %v1896 = vxor.u32 %v1588, 2147483648
    %v1897 = vxor.u32 %v1593, 2147483648
    %v1898 = vxor.u32 %v1596, 2147483648
    %v1899 = vxor.u32 %v1601, 2147483648
    %v1900 = vxor.u32 %v1604, 2147483648
    %v1901 = vxor.u32 %v1609, 2147483648
    %v1902 = vxor.u32 %v1612, 2147483648
    %v1903 = vxor.u32 %v1617, 2147483648
    %v1904 = vxor.u32 %v1620, 2147483648
    %v1905 = vxor.u32 %v1625, 2147483648
    %v1906 = vxor.u32 %v1628, 2147483648
    %v1907 = vxor.u32 %v1633, 2147483648
    %v1908 = vxor.u32 %v1636, 2147483648
    %v1909 = vxor.u32 %v1641, 2147483648
    %v1910 = vxor.u32 %v1644, 2147483648
    %v1911 = vxor.u32 %v1649, 2147483648
    %v1912 = vxor.u32 %v1652, 2147483648
    %v1913 = vxor.u32 %v1657, 2147483648
    %v1914 = vxor.u32 %v1660, 2147483648
    %v1915 = vxor.u32 %v1665, 2147483648
    %v1916 = vxor.u32 %v1668, 2147483648
    %v1917 = vxor.u32 %v1673, 2147483648
    %v1918 = vxor.u32 %v1676, 2147483648
    %v1919 = vxor.u32 %v1681, 2147483648
    %v1920 = vxor.u32 %v1684, 2147483648
    %v1921 = vxor.u32 %v1689, 2147483648
    %v1922 = vxor.u32 %v1692, 2147483648
    %v1923 = vxor.u32 %v1697, 2147483648
    %v1924 = vxor.u32 %v1700, 2147483648
    %v1925 = vxor.u32 %v1705, 2147483648
    %v1926 = vxor.u32 %v1708, 2147483648
    %v1927 = vxor.u32 %v1713, 2147483648
    %v1928 = vxor.u32 %v1716, 2147483648
    %v1929 = vxor.u32 %v1721, 2147483648
    %v1930 = vxor.u32 %v1724, 2147483648
    %v1931 = vxor.u32 %v1729, 2147483648
    %v1932 = vxor.u32 %v1732, 2147483648
    %v1933 = vxor.u32 %v1737, 2147483648
    %v1934 = vxor.u32 %v1740, 2147483648
    %v1935 = vmul.f32 %v1743, 1.442695
    %v1936 = vpow.pop %v1935
    %v1937 = vmul.f32 %v1744, 1.442695
    %v1938 = vpow.pop %v1937
    %v1939 = vmul.f32 %v1745, 1.442695
    %v1940 = vpow.pop %v1939
    %v1941 = vmul.f32 %v1746, 1.442695
    %v1942 = vpow.pop %v1941
    %v1943 = vmul.f32 %v1747, 1.442695
    %v1944 = vpow.pop %v1943
    %v1945 = vmul.f32 %v1748, 1.442695
    %v1946 = vpow.pop %v1945
    %v1947 = vmul.f32 %v1749, 1.442695
    %v1948 = vpow.pop %v1947
    %v1949 = vmul.f32 %v1750, 1.442695
    %v1950 = vpow.pop %v1949
    %v1951 = vmul.f32 %v1751, 1.442695
    %v1952 = vpow.pop %v1951
    %v1953 = vmul.f32 %v1752, 1.442695
    %v1954 = vpow.pop %v1953
    %v1955 = vmul.f32 %v1753, 1.442695
    %v1956 = vpow.pop %v1955
    %v1957 = vmul.f32 %v1754, 1.442695
    %v1958 = vpow.pop %v1957
    %v1959 = vmul.f32 %v1755, 1.442695
    %v1960 = vpow.pop %v1959
    %v1961 = vmul.f32 %v1756, 1.442695
    %v1962 = vpow.pop %v1961
    %v1963 = vmul.f32 %v1757, 1.442695
    %v1964 = vpow.pop %v1963
    %v1965 = vmul.f32 %v1758, 1.442695
    %v1966 = vpow.pop %v1965
    %v1967 = vmul.f32 %v1759, 1.442695
    %v1968 = vpow.pop %v1967
    %v1969 = vmul.f32 %v1760, 1.442695
    %v1970 = vpow.pop %v1969
    %v1971 = vmul.f32 %v1761, 1.442695
    %v1972 = vpow.pop %v1971
    %v1973 = vmul.f32 %v1762, 1.442695
    %v1974 = vpow.pop %v1973
    %v1975 = vmul.f32 %v1763, 1.442695
    %v1976 = vpow.pop %v1975
    %v1977 = vmul.f32 %v1764, 1.442695
    %v1978 = vpow.pop %v1977
    %v1979 = vmul.f32 %v1765, 1.442695
    %v1980 = vpow.pop %v1979
    %v1981 = vmul.f32 %v1766, 1.442695
    %v1982 = vpow.pop %v1981
    %v1983 = vmul.f32 %v1767, 1.442695
    %v1984 = vpow.pop %v1983
    %v1985 = vmul.f32 %v1768, 1.442695
    %v1986 = vpow.pop %v1985
    %v1987 = vmul.f32 %v1769, 1.442695
    %v1988 = vpow.pop %v1987
    %v1989 = vmul.f32 %v1770, 1.442695
    %v1990 = vpow.pop %v1989
    %v1991 = vmul.f32 %v1771, 1.442695
    %v1992 = vpow.pop %v1991
    %v1993 = vmul.f32 %v1772, 1.442695
    %v1994 = vpow.pop %v1993
    %v1995 = vmul.f32 %v1773, 1.442695
    %v1996 = vpow.pop %v1995
    %v1997 = vmul.f32 %v1774, 1.442695
    %v1998 = vpow.pop %v1997
    %v1999 = vmul.f32 %v1775, 1.442695
    %v2000 = vpow.pop %v1999
    %v2001 = vmul.f32 %v1776, 1.442695
    %v2002 = vpow.pop %v2001
    %v2003 = vmul.f32 %v1777, 1.442695
    %v2004 = vpow.pop %v2003
    %v2005 = vmul.f32 %v1778, 1.442695
    %v2006 = vpow.pop %v2005
    %v2007 = vmul.f32 %v1779, 1.442695
    %v2008 = vpow.pop %v2007
    %v2009 = vmul.f32 %v1780, 1.442695
    %v2010 = vpow.pop %v2009
    %v2011 = vmul.f32 %v1781, 1.442695
    %v2012 = vpow.pop %v2011
    %v2013 = vmul.f32 %v1782, 1.442695
    %v2014 = vpow.pop %v2013
    %v2015 = vmul.f32 %v1783, 1.442695
    %v2016 = vpow.pop %v2015
    %v2017 = vmul.f32 %v1784, 1.442695
    %v2018 = vpow.pop %v2017
    %v2019 = vmul.f32 %v1785, 1.442695
    %v2020 = vpow.pop %v2019
    %v2021 = vmul.f32 %v1786, 1.442695
    %v2022 = vpow.pop %v2021
    %v2023 = vmul.f32 %v1787, 1.442695
    %v2024 = vpow.pop %v2023
    %v2025 = vmul.f32 %v1788, 1.442695
    %v2026 = vpow.pop %v2025
    %v2027 = vmul.f32 %v1789, 1.442695
    %v2028 = vpow.pop %v2027
    %v2029 = vmul.f32 %v1790, 1.442695
    %v2030 = vpow.pop %v2029
    %v2031 = vmul.f32 %v1791, 1.442695
    %v2032 = vpow.pop %v2031
    %v2033 = vmul.f32 %v1792, 1.442695
    %v2034 = vpow.pop %v2033
    %v2035 = vmul.f32 %v1793, 1.442695
    %v2036 = vpow.pop %v2035
    %v2037 = vmul.f32 %v1794, 1.442695
    %v2038 = vpow.pop %v2037
    %v2039 = vmul.f32 %v1795, 1.442695
    %v2040 = vpow.pop %v2039
    %v2041 = vmul.f32 %v1796, 1.442695
    %v2042 = vpow.pop %v2041
    %v2043 = vmul.f32 %v1797, 1.442695
    %v2044 = vpow.pop %v2043
    %v2045 = vmul.f32 %v1798, 1.442695
    %v2046 = vpow.pop %v2045
    %v2047 = vmul.f32 %v1799, 1.442695
    %v2048 = vpow.pop %v2047
    %v2049 = vmul.f32 %v1800, 1.442695
    %v2050 = vpow.pop %v2049
    %v2051 = vmul.f32 %v1801, 1.442695
    %v2052 = vpow.pop %v2051
    %v2053 = vmul.f32 %v1802, 1.442695
    %v2054 = vpow.pop %v2053
    %v2055 = vmul.f32 %v1803, 1.442695
    %v2056 = vpow.pop %v2055
    %v2057 = vmul.f32 %v1804, 1.442695
    %v2058 = vpow.pop %v2057
    %v2059 = vmul.f32 %v1805, 1.442695
    %v2060 = vpow.pop %v2059
    %v2061 = vmul.f32 %v1806, 1.442695
    %v2062 = vpow.pop %v2061
    %v2063 = vmul.f32 %v1807, 1.442695
    %v2064 = vpow.pop %v2063
    %v2065 = vmul.f32 %v1808, 1.442695
    %v2066 = vpow.pop %v2065
    %v2067 = vmul.f32 %v1809, 1.442695
    %v2068 = vpow.pop %v2067
    %v2069 = vmul.f32 %v1810, 1.442695
    %v2070 = vpow.pop %v2069
    %v2071 = vmul.f32 %v1811, 1.442695
    %v2072 = vpow.pop %v2071
    %v2073 = vmul.f32 %v1812, 1.442695
    %v2074 = vpow.pop %v2073
    %v2075 = vmul.f32 %v1813, 1.442695
    %v2076 = vpow.pop %v2075
    %v2077 = vmul.f32 %v1814, 1.442695
    %v2078 = vpow.pop %v2077
    %v2079 = vmul.f32 %v1815, 1.442695
    %v2080 = vpow.pop %v2079
    %v2081 = vmul.f32 %v1816, 1.442695
    %v2082 = vpow.pop %v2081
    %v2083 = vmul.f32 %v1817, 1.442695
    %v2084 = vpow.pop %v2083
    %v2085 = vmul.f32 %v1818, 1.442695
    %v2086 = vpow.pop %v2085
    %v2087 = vmul.f32 %v1819, 1.442695
    %v2088 = vpow.pop %v2087
    %v2089 = vmul.f32 %v1820, 1.442695
    %v2090 = vpow.pop %v2089
    %v2091 = vmul.f32 %v1821, 1.442695
    %v2092 = vpow.pop %v2091
    %v2093 = vmul.f32 %v1822, 1.442695
    %v2094 = vpow.pop %v2093
    %v2095 = vmul.f32 %v1823, 1.442695
    %v2096 = vpow.pop %v2095
    %v2097 = vmul.f32 %v1824, 1.442695
    %v2098 = vpow.pop %v2097
    %v2099 = vmul.f32 %v1825, 1.442695
    %v2100 = vpow.pop %v2099
    %v2101 = vmul.f32 %v1826, 1.442695
    %v2102 = vpow.pop %v2101
    %v2103 = vmul.f32 %v1827, 1.442695
    %v2104 = vpow.pop %v2103
    %v2105 = vmul.f32 %v1828, 1.442695
    %v2106 = vpow.pop %v2105
    %v2107 = vmul.f32 %v1829, 1.442695
    %v2108 = vpow.pop %v2107
    %v2109 = vmul.f32 %v1830, 1.442695
    %v2110 = vpow.pop %v2109
    %v2111 = vmul.f32 %v1831, 1.442695
    %v2112 = vpow.pop %v2111
    %v2113 = vmul.f32 %v1832, 1.442695
    %v2114 = vpow.pop %v2113
    %v2115 = vmul.f32 %v1833, 1.442695
    %v2116 = vpow.pop %v2115
    %v2117 = vmul.f32 %v1834, 1.442695
    %v2118 = vpow.pop %v2117
    %v2119 = vmul.f32 %v1835, 1.442695
    %v2120 = vpow.pop %v2119
    %v2121 = vmul.f32 %v1836, 1.442695
    %v2122 = vpow.pop %v2121
    %v2123 = vmul.f32 %v1837, 1.442695
    %v2124 = vpow.pop %v2123
    %v2125 = vmul.f32 %v1838, 1.442695
    %v2126 = vpow.pop %v2125
    %v2127 = vmul.f32 %v1839, 1.442695
    %v2128 = vpow.pop %v2127
    %v2129 = vmul.f32 %v1840, 1.442695
    %v2130 = vpow.pop %v2129
    %v2131 = vmul.f32 %v1841, 1.442695
    %v2132 = vpow.pop %v2131
    %v2133 = vmul.f32 %v1842, 1.442695
    %v2134 = vpow.pop %v2133
    %v2135 = vmul.f32 %v1843, 1.442695
    %v2136 = vpow.pop %v2135
    %v2137 = vmul.f32 %v1844, 1.442695
    %v2138 = vpow.pop %v2137
    %v2139 = vmul.f32 %v1845, 1.442695
    %v2140 = vpow.pop %v2139
    %v2141 = vmul.f32 %v1846, 1.442695
    %v2142 = vpow.pop %v2141
    %v2143 = vmul.f32 %v1847, 1.442695
    %v2144 = vpow.pop %v2143
    %v2145 = vmul.f32 %v1848, 1.442695
    %v2146 = vpow.pop %v2145
    %v2147 = vmul.f32 %v1849, 1.442695
    %v2148 = vpow.pop %v2147
    %v2149 = vmul.f32 %v1850, 1.442695
    %v2150 = vpow.pop %v2149
    %v2151 = vmul.f32 %v1851, 1.442695
    %v2152 = vpow.pop %v2151
    %v2153 = vmul.f32 %v1852, 1.442695
    %v2154 = vpow.pop %v2153
    %v2155 = vmul.f32 %v1853, 1.442695
    %v2156 = vpow.pop %v2155
    %v2157 = vmul.f32 %v1854, 1.442695
    %v2158 = vpow.pop %v2157
    %v2159 = vmul.f32 %v1855, 1.442695
    %v2160 = vpow.pop %v2159
    %v2161 = vmul.f32 %v1856, 1.442695
    %v2162 = vpow.pop %v2161
    %v2163 = vmul.f32 %v1857, 1.442695
    %v2164 = vpow.pop %v2163
    %v2165 = vmul.f32 %v1858, 1.442695
    %v2166 = vpow.pop %v2165
    %v2167 = vmul.f32 %v1859, 1.442695
    %v2168 = vpow.pop %v2167
    %v2169 = vmul.f32 %v1860, 1.442695
    %v2170 = vpow.pop %v2169
    %v2171 = vmul.f32 %v1861, 1.442695
    %v2172 = vpow.pop %v2171
    %v2173 = vmul.f32 %v1862, 1.442695
    %v2174 = vpow.pop %v2173
    %v2175 = vmul.f32 %v1863, 1.442695
    %v2176 = vpow.pop %v2175
    %v2177 = vmul.f32 %v1864, 1.442695
    %v2178 = vpow.pop %v2177
    %v2179 = vmul.f32 %v1865, 1.442695
    %v2180 = vpow.pop %v2179
    %v2181 = vmul.f32 %v1866, 1.442695
    %v2182 = vpow.pop %v2181
    %v2183 = vmul.f32 %v1867, 1.442695
    %v2184 = vpow.pop %v2183
    %v2185 = vmul.f32 %v1868, 1.442695
    %v2186 = vpow.pop %v2185
    %v2187 = vmul.f32 %v1869, 1.442695
    %v2188 = vpow.pop %v2187
    %v2189 = vmul.f32 %v1870, 1.442695
    %v2190 = vpow.pop %v2189
    %v2191 = vmul.f32 %v1871, 1.442695
    %v2192 = vpow.pop %v2191
    %v2193 = vmul.f32 %v1872, 1.442695
    %v2194 = vpow.pop %v2193
    %v2195 = vmul.f32 %v1873, 1.442695
    %v2196 = vpow.pop %v2195
    %v2197 = vmul.f32 %v1874, 1.442695
    %v2198 = vpow.pop %v2197
    %v2199 = vmul.f32 %v1875, 1.442695
    %v2200 = vpow.pop %v2199
    %v2201 = vmul.f32 %v1876, 1.442695
    %v2202 = vpow.pop %v2201
    %v2203 = vmul.f32 %v1877, 1.442695
    %v2204 = vpow.pop %v2203
    %v2205 = vmul.f32 %v1878, 1.442695
    %v2206 = vpow.pop %v2205
    %v2207 = vmul.f32 %v1879, 1.442695
    %v2208 = vpow.pop %v2207
    %v2209 = vmul.f32 %v1880, 1.442695
    %v2210 = vpow.pop %v2209
    %v2211 = vmul.f32 %v1881, 1.442695
    %v2212 = vpow.pop %v2211
    %v2213 = vmul.f32 %v1882, 1.442695
    %v2214 = vpow.pop %v2213
    %v2215 = vmul.f32 %v1883, 1.442695
    %v2216 = vpow.pop %v2215
    %v2217 = vmul.f32 %v1884, 1.442695
    %v2218 = vpow.pop %v2217
    %v2219 = vmul.f32 %v1885, 1.442695
    %v2220 = vpow.pop %v2219
    %v2221 = vmul.f32 %v1886, 1.442695
    %v2222 = vpow.pop %v2221
    %v2223 = vmul.f32 %v1887, 1.442695
    %v2224 = vpow.pop %v2223
    %v2225 = vmul.f32 %v1888, 1.442695
    %v2226 = vpow.pop %v2225
    %v2227 = vmul.f32 %v1889, 1.442695
    %v2228 = vpow.pop %v2227
    %v2229 = vmul.f32 %v1890, 1.442695
    %v2230 = vpow.pop %v2229
    %v2231 = vmul.f32 %v1891, 1.442695
    %v2232 = vpow.pop %v2231
    %v2233 = vmul.f32 %v1892, 1.442695
    %v2234 = vpow.pop %v2233
    %v2235 = vmul.f32 %v1893, 1.442695
    %v2236 = vpow.pop %v2235
    %v2237 = vmul.f32 %v1894, 1.442695
    %v2238 = vpow.pop %v2237
    %v2239 = vmul.f32 %v1895, 1.442695
    %v2240 = vpow.pop %v2239
    %v2241 = vmul.f32 %v1896, 1.442695
    %v2242 = vpow.pop %v2241
    %v2243 = vmul.f32 %v1897, 1.442695
    %v2244 = vpow.pop %v2243
    %v2245 = vmul.f32 %v1898, 1.442695
    %v2246 = vpow.pop %v2245
    %v2247 = vmul.f32 %v1899, 1.442695
    %v2248 = vpow.pop %v2247
    %v2249 = vmul.f32 %v1900, 1.442695
    %v2250 = vpow.pop %v2249
    %v2251 = vmul.f32 %v1901, 1.442695
    %v2252 = vpow.pop %v2251
    %v2253 = vmul.f32 %v1902, 1.442695
    %v2254 = vpow.pop %v2253
    %v2255 = vmul.f32 %v1903, 1.442695
    %v2256 = vpow.pop %v2255
    %v2257 = vmul.f32 %v1904, 1.442695
    %v2258 = vpow.pop %v2257
    %v2259 = vmul.f32 %v1905, 1.442695
    %v2260 = vpow.pop %v2259
    %v2261 = vmul.f32 %v1906, 1.442695
    %v2262 = vpow.pop %v2261
    %v2263 = vmul.f32 %v1907, 1.442695
    %v2264 = vpow.pop %v2263
    %v2265 = vmul.f32 %v1908, 1.442695
    %v2266 = vpow.pop %v2265
    %v2267 = vmul.f32 %v1909, 1.442695
    %v2268 = vpow.pop %v2267
    %v2269 = vmul.f32 %v1910, 1.442695
    %v2270 = vpow.pop %v2269
    %v2271 = vmul.f32 %v1911, 1.442695
    %v2272 = vpow.pop %v2271
    %v2273 = vmul.f32 %v1912, 1.442695
    %v2274 = vpow.pop %v2273
    %v2275 = vmul.f32 %v1913, 1.442695
    %v2276 = vpow.pop %v2275
    %v2277 = vmul.f32 %v1914, 1.442695
    %v2278 = vpow.pop %v2277
    %v2279 = vmul.f32 %v1915, 1.442695
    %v2280 = vpow.pop %v2279
    %v2281 = vmul.f32 %v1916, 1.442695
    %v2282 = vpow.pop %v2281
    %v2283 = vmul.f32 %v1917, 1.442695
    %v2284 = vpow.pop %v2283
    %v2285 = vmul.f32 %v1918, 1.442695
    %v2286 = vpow.pop %v2285
    %v2287 = vmul.f32 %v1919, 1.442695
    %v2288 = vpow.pop %v2287
    %v2289 = vmul.f32 %v1920, 1.442695
    %v2290 = vpow.pop %v2289
    %v2291 = vmul.f32 %v1921, 1.442695
    %v2292 = vpow.pop %v2291
    %v2293 = vmul.f32 %v1922, 1.442695
    %v2294 = vpow.pop %v2293
    %v2295 = vmul.f32 %v1923, 1.442695
    %v2296 = vpow.pop %v2295
    %v2297 = vmul.f32 %v1924, 1.442695
    %v2298 = vpow.pop %v2297
    %v2299 = vmul.f32 %v1925, 1.442695
    %v2300 = vpow.pop %v2299
    %v2301 = vmul.f32 %v1926, 1.442695
    %v2302 = vpow.pop %v2301
    %v2303 = vmul.f32 %v1927, 1.442695
    %v2304 = vpow.pop %v2303
    %v2305 = vmul.f32 %v1928, 1.442695
    %v2306 = vpow.pop %v2305
    %v2307 = vmul.f32 %v1929, 1.442695
    %v2308 = vpow.pop %v2307
    %v2309 = vmul.f32 %v1930, 1.442695
    %v2310 = vpow.pop %v2309
    %v2311 = vmul.f32 %v1931, 1.442695
    %v2312 = vpow.pop %v2311
    %v2313 = vmul.f32 %v1932, 1.442695
    %v2314 = vpow.pop %v2313
    %v2315 = vmul.f32 %v1933, 1.442695
    %v2316 = vpow.pop %v2315
    %v2317 = vmul.f32 %v1934, 1.442695
    %v2318 = vpow.pop %v2317
    %v2319 = vadd.f32 %v1936, 1.0
    %v2320 = vadd.f32 %v1938, 1.0
    %v2321 = vadd.f32 %v1940, 1.0
    %v2322 = vadd.f32 %v1942, 1.0
    %v2323 = vadd.f32 %v1944, 1.0
    %v2324 = vadd.f32 %v1946, 1.0
    %v2325 = vadd.f32 %v1948, 1.0
    %v2326 = vadd.f32 %v1950, 1.0
    %v2327 = vadd.f32 %v1952, 1.0
    %v2328 = vadd.f32 %v1954, 1.0
    %v2329 = vadd.f32 %v1956, 1.0
    %v2330 = vadd.f32 %v1958, 1.0
    %v2331 = vadd.f32 %v1960, 1.0
    %v2332 = vadd.f32 %v1962, 1.0
    %v2333 = vadd.f32 %v1964, 1.0
    %v2334 = vadd.f32 %v1966, 1.0
    %v2335 = vadd.f32 %v1968, 1.0
    %v2336 = vadd.f32 %v1970, 1.0
    %v2337 = vadd.f32 %v1972, 1.0
    %v2338 = vadd.f32 %v1974, 1.0
    %v2339 = vadd.f32 %v1976, 1.0
    %v2340 = vadd.f32 %v1978, 1.0
    %v2341 = vadd.f32 %v1980, 1.0
    %v2342 = vadd.f32 %v1982, 1.0
    %v2343 = vadd.f32 %v1984, 1.0
    %v2344 = vadd.f32 %v1986, 1.0
    %v2345 = vadd.f32 %v1988, 1.0
    %v2346 = vadd.f32 %v1990, 1.0
    %v2347 = vadd.f32 %v1992, 1.0
    %v2348 = vadd.f32 %v1994, 1.0
    %v2349 = vadd.f32 %v1996, 1.0
    %v2350 = vadd.f32 %v1998, 1.0
    %v2351 = vadd.f32 %v2000, 1.0
    %v2352 = vadd.f32 %v2002, 1.0
    %v2353 = vadd.f32 %v2004, 1.0
    %v2354 = vadd.f32 %v2006, 1.0
    %v2355 = vadd.f32 %v2008, 1.0
    %v2356 = vadd.f32 %v2010, 1.0
    %v2357 = vadd.f32 %v2012, 1.0
    %v2358 = vadd.f32 %v2014, 1.0
    %v2359 = vadd.f32 %v2016, 1.0
    %v2360 = vadd.f32 %v2018, 1.0
    %v2361 = vadd.f32 %v2020, 1.0
    %v2362 = vadd.f32 %v2022, 1.0
    %v2363 = vadd.f32 %v2024, 1.0
    %v2364 = vadd.f32 %v2026, 1.0
    %v2365 = vadd.f32 %v2028, 1.0
    %v2366 = vadd.f32 %v2030, 1.0
    %v2367 = vadd.f32 %v2032, 1.0
    %v2368 = vadd.f32 %v2034, 1.0
    %v2369 = vadd.f32 %v2036, 1.0
    %v2370 = vadd.f32 %v2038, 1.0
    %v2371 = vadd.f32 %v2040, 1.0
    %v2372 = vadd.f32 %v2042, 1.0
    %v2373 = vadd.f32 %v2044, 1.0
    %v2374 = vadd.f32 %v2046, 1.0
    %v2375 = vadd.f32 %v2048, 1.0
    %v2376 = vadd.f32 %v2050, 1.0
    %v2377 = vadd.f32 %v2052, 1.0
    %v2378 = vadd.f32 %v2054, 1.0
    %v2379 = vadd.f32 %v2056, 1.0
    %v2380 = vadd.f32 %v2058, 1.0
    %v2381 = vadd.f32 %v2060, 1.0
    %v2382 = vadd.f32 %v2062, 1.0
    %v2383 = vadd.f32 %v2064, 1.0
    %v2384 = vadd.f32 %v2066, 1.0
    %v2385 = vadd.f32 %v2068, 1.0
    %v2386 = vadd.f32 %v2070, 1.0
    %v2387 = vadd.f32 %v2072, 1.0
    %v2388 = vadd.f32 %v2074, 1.0
    %v2389 = vadd.f32 %v2076, 1.0
    %v2390 = vadd.f32 %v2078, 1.0
    %v2391 = vadd.f32 %v2080, 1.0
    %v2392 = vadd.f32 %v2082, 1.0
    %v2393 = vadd.f32 %v2084, 1.0
    %v2394 = vadd.f32 %v2086, 1.0
    %v2395 = vadd.f32 %v2088, 1.0
    %v2396 = vadd.f32 %v2090, 1.0
    %v2397 = vadd.f32 %v2092, 1.0
    %v2398 = vadd.f32 %v2094, 1.0
    %v2399 = vadd.f32 %v2096, 1.0
    %v2400 = vadd.f32 %v2098, 1.0
    %v2401 = vadd.f32 %v2100, 1.0
    %v2402 = vadd.f32 %v2102, 1.0
    %v2403 = vadd.f32 %v2104, 1.0
    %v2404 = vadd.f32 %v2106, 1.0
    %v2405 = vadd.f32 %v2108, 1.0
    %v2406 = vadd.f32 %v2110, 1.0
    %v2407 = vadd.f32 %v2112, 1.0
    %v2408 = vadd.f32 %v2114, 1.0
    %v2409 = vadd.f32 %v2116, 1.0
    %v2410 = vadd.f32 %v2118, 1.0
    %v2411 = vadd.f32 %v2120, 1.0
    %v2412 = vadd.f32 %v2122, 1.0
    %v2413 = vadd.f32 %v2124, 1.0
    %v2414 = vadd.f32 %v2126, 1.0
    %v2415 = vadd.f32 %v2128, 1.0
    %v2416 = vadd.f32 %v2130, 1.0
    %v2417 = vadd.f32 %v2132, 1.0
    %v2418 = vadd.f32 %v2134, 1.0
    %v2419 = vadd.f32 %v2136, 1.0
    %v2420 = vadd.f32 %v2138, 1.0
    %v2421 = vadd.f32 %v2140, 1.0
    %v2422 = vadd.f32 %v2142, 1.0
    %v2423 = vadd.f32 %v2144, 1.0
    %v2424 = vadd.f32 %v2146, 1.0
    %v2425 = vadd.f32 %v2148, 1.0
    %v2426 = vadd.f32 %v2150, 1.0
    %v2427 = vadd.f32 %v2152, 1.0
    %v2428 = vadd.f32 %v2154, 1.0
    %v2429 = vadd.f32 %v2156, 1.0
    %v2430 = vadd.f32 %v2158, 1.0
    %v2431 = vadd.f32 %v2160, 1.0
    %v2432 = vadd.f32 %v2162, 1.0
    %v2433 = vadd.f32 %v2164, 1.0
    %v2434 = vadd.f32 %v2166, 1.0
    %v2435 = vadd.f32 %v2168, 1.0
    %v2436 = vadd.f32 %v2170, 1.0
    %v2437 = vadd.f32 %v2172, 1.0
    %v2438 = vadd.f32 %v2174, 1.0
    %v2439 = vadd.f32 %v2176, 1.0
    %v2440 = vadd.f32 %v2178, 1.0
    %v2441 = vadd.f32 %v2180, 1.0
    %v2442 = vadd.f32 %v2182, 1.0
    %v2443 = vadd.f32 %v2184, 1.0
    %v2444 = vadd.f32 %v2186, 1.0
    %v2445 = vadd.f32 %v2188, 1.0
    %v2446 = vadd.f32 %v2190, 1.0
    %v2447 = vadd.f32 %v2192, 1.0
    %v2448 = vadd.f32 %v2194, 1.0
    %v2449 = vadd.f32 %v2196, 1.0
    %v2450 = vadd.f32 %v2198, 1.0
    %v2451 = vadd.f32 %v2200, 1.0
    %v2452 = vadd.f32 %v2202, 1.0
    %v2453 = vadd.f32 %v2204, 1.0
    %v2454 = vadd.f32 %v2206, 1.0
    %v2455 = vadd.f32 %v2208, 1.0
    %v2456 = vadd.f32 %v2210, 1.0
    %v2457 = vadd.f32 %v2212, 1.0
    %v2458 = vadd.f32 %v2214, 1.0
    %v2459 = vadd.f32 %v2216, 1.0
    %v2460 = vadd.f32 %v2218, 1.0
    %v2461 = vadd.f32 %v2220, 1.0
    %v2462 = vadd.f32 %v2222, 1.0
    %v2463 = vadd.f32 %v2224, 1.0
    %v2464 = vadd.f32 %v2226, 1.0
    %v2465 = vadd.f32 %v2228, 1.0
    %v2466 = vadd.f32 %v2230, 1.0
    %v2467 = vadd.f32 %v2232, 1.0
    %v2468 = vadd.f32 %v2234, 1.0
    %v2469 = vadd.f32 %v2236, 1.0
    %v2470 = vadd.f32 %v2238, 1.0
    %v2471 = vadd.f32 %v2240, 1.0
    %v2472 = vadd.f32 %v2242, 1.0
    %v2473 = vadd.f32 %v2244, 1.0
    %v2474 = vadd.f32 %v2246, 1.0
    %v2475 = vadd.f32 %v2248, 1.0
    %v2476 = vadd.f32 %v2250, 1.0
    %v2477 = vadd.f32 %v2252, 1.0
    %v2478 = vadd.f32 %v2254, 1.0
    %v2479 = vadd.f32 %v2256, 1.0
    %v2480 = vadd.f32 %v2258, 1.0
    %v2481 = vadd.f32 %v2260, 1.0
    %v2482 = vadd.f32 %v2262, 1.0
    %v2483 = vadd.f32 %v2264, 1.0
    %v2484 = vadd.f32 %v2266, 1.0
    %v2485 = vadd.f32 %v2268, 1.0
    %v2486 = vadd.f32 %v2270, 1.0
    %v2487 = vadd.f32 %v2272, 1.0
    %v2488 = vadd.f32 %v2274, 1.0
    %v2489 = vadd.f32 %v2276, 1.0
    %v2490 = vadd.f32 %v2278, 1.0
    %v2491 = vadd.f32 %v2280, 1.0
    %v2492 = vadd.f32 %v2282, 1.0
    %v2493 = vadd.f32 %v2284, 1.0
    %v2494 = vadd.f32 %v2286, 1.0
    %v2495 = vadd.f32 %v2288, 1.0
    %v2496 = vadd.f32 %v2290, 1.0
    %v2497 = vadd.f32 %v2292, 1.0
    %v2498 = vadd.f32 %v2294, 1.0
    %v2499 = vadd.f32 %v2296, 1.0
    %v2500 = vadd.f32 %v2298, 1.0
    %v2501 = vadd.f32 %v2300, 1.0
    %v2502 = vadd.f32 %v2302, 1.0
    %v2503 = vadd.f32 %v2304, 1.0
    %v2504 = vadd.f32 %v2306, 1.0
    %v2505 = vadd.f32 %v2308, 1.0
    %v2506 = vadd.f32 %v2310, 1.0
    %v2507 = vadd.f32 %v2312, 1.0
    %v2508 = vadd.f32 %v2314, 1.0
    %v2509 = vadd.f32 %v2316, 1.0
    %v2510 = vadd.f32 %v2318, 1.0
    %v2511 = vrcp.pop %v2319
    %v2512 = vmul.f32 1.0, %v2511
    %v2513 = vrcp.pop %v2320
    %v2514 = vmul.f32 1.0, %v2513
    %v2515 = vrcp.pop %v2321
    %v2516 = vmul.f32 1.0, %v2515
    %v2517 = vrcp.pop %v2322
    %v2518 = vmul.f32 1.0, %v2517
    %v2519 = vrcp.pop %v2323
    %v2520 = vmul.f32 1.0, %v2519
    %v2521 = vrcp.pop %v2324
    %v2522 = vmul.f32 1.0, %v2521
    %v2523 = vrcp.pop %v2325
    %v2524 = vmul.f32 1.0, %v2523
    %v2525 = vrcp.pop %v2326
    %v2526 = vmul.f32 1.0, %v2525
    %v2527 = vrcp.pop %v2327
    %v2528 = vmul.f32 1.0, %v2527
    %v2529 = vrcp.pop %v2328
    %v2530 = vmul.f32 1.0, %v2529
    %v2531 = vrcp.pop %v2329
    %v2532 = vmul.f32 1.0, %v2531
    %v2533 = vrcp.pop %v2330
    %v2534 = vmul.f32 1.0, %v2533
    %v2535 = vrcp.pop %v2331
    %v2536 = vmul.f32 1.0, %v2535
    %v2537 = vrcp.pop %v2332
    %v2538 = vmul.f32 1.0, %v2537
    %v2539 = vrcp.pop %v2333
    %v2540 = vmul.f32 1.0, %v2539
    %v2541 = vrcp.pop %v2334
    %v2542 = vmul.f32 1.0, %v2541
    %v2543 = vrcp.pop %v2335
    %v2544 = vmul.f32 1.0, %v2543
    %v2545 = vrcp.pop %v2336
    %v2546 = vmul.f32 1.0, %v2545
    %v2547 = vrcp.pop %v2337
    %v2548 = vmul.f32 1.0, %v2547
    %v2549 = vrcp.pop %v2338
    %v2550 = vmul.f32 1.0, %v2549
    %v2551 = vrcp.pop %v2339
    %v2552 = vmul.f32 1.0, %v2551
    %v2553 = vrcp.pop %v2340
    %v2554 = vmul.f32 1.0, %v2553
    %v2555 = vrcp.pop %v2341
    %v2556 = vmul.f32 1.0, %v2555
    %v2557 = vrcp.pop %v2342
    %v2558 = vmul.f32 1.0, %v2557
    %v2559 = vrcp.pop %v2343
    %v2560 = vmul.f32 1.0, %v2559
    %v2561 = vrcp.pop %v2344
    %v2562 = vmul.f32 1.0, %v2561
    %v2563 = vrcp.pop %v2345
    %v2564 = vmul.f32 1.0, %v2563
    %v2565 = vrcp.pop %v2346
    %v2566 = vmul.f32 1.0, %v2565
    %v2567 = vrcp.pop %v2347
    %v2568 = vmul.f32 1.0, %v2567
    %v2569 = vrcp.pop %v2348
    %v2570 = vmul.f32 1.0, %v2569
    %v2571 = vrcp.pop %v2349
    %v2572 = vmul.f32 1.0, %v2571
    %v2573 = vrcp.pop %v2350
    %v2574 = vmul.f32 1.0, %v2573
    %v2575 = vrcp.pop %v2351
    %v2576 = vmul.f32 1.0, %v2575
    %v2577 = vrcp.pop %v2352
    %v2578 = vmul.f32 1.0, %v2577
    %v2579 = vrcp.pop %v2353
    %v2580 = vmul.f32 1.0, %v2579
    %v2581 = vrcp.pop %v2354
    %v2582 = vmul.f32 1.0, %v2581
    %v2583 = vrcp.pop %v2355
    %v2584 = vmul.f32 1.0, %v2583
    %v2585 = vrcp.pop %v2356
    %v2586 = vmul.f32 1.0, %v2585
    %v2587 = vrcp.pop %v2357
    %v2588 = vmul.f32 1.0, %v2587
    %v2589 = vrcp.pop %v2358
    %v2590 = vmul.f32 1.0, %v2589
    %v2591 = vrcp.pop %v2359
    %v2592 = vmul.f32 1.0, %v2591
    %v2593 = vrcp.pop %v2360
    %v2594 = vmul.f32 1.0, %v2593
    %v2595 = vrcp.pop %v2361
    %v2596 = vmul.f32 1.0, %v2595
    %v2597 = vrcp.pop %v2362
    %v2598 = vmul.f32 1.0, %v2597
    %v2599 = vrcp.pop %v2363
    %v2600 = vmul.f32 1.0, %v2599
    %v2601 = vrcp.pop %v2364
    %v2602 = vmul.f32 1.0, %v2601
    %v2603 = vrcp.pop %v2365
    %v2604 = vmul.f32 1.0, %v2603
    %v2605 = vrcp.pop %v2366
    %v2606 = vmul.f32 1.0, %v2605
    %v2607 = vrcp.pop %v2367
    %v2608 = vmul.f32 1.0, %v2607
    %v2609 = vrcp.pop %v2368
    %v2610 = vmul.f32 1.0, %v2609
    %v2611 = vrcp.pop %v2369
    %v2612 = vmul.f32 1.0, %v2611
    %v2613 = vrcp.pop %v2370
    %v2614 = vmul.f32 1.0, %v2613
    %v2615 = vrcp.pop %v2371
    %v2616 = vmul.f32 1.0, %v2615
    %v2617 = vrcp.pop %v2372
    %v2618 = vmul.f32 1.0, %v2617
    %v2619 = vrcp.pop %v2373
    %v2620 = vmul.f32 1.0, %v2619
    %v2621 = vrcp.pop %v2374
    %v2622 = vmul.f32 1.0, %v2621
    %v2623 = vrcp.pop %v2375
    %v2624 = vmul.f32 1.0, %v2623
    %v2625 = vrcp.pop %v2376
    %v2626 = vmul.f32 1.0, %v2625
    %v2627 = vrcp.pop %v2377
    %v2628 = vmul.f32 1.0, %v2627
    %v2629 = vrcp.pop %v2378
    %v2630 = vmul.f32 1.0, %v2629
    %v2631 = vrcp.pop %v2379
    %v2632 = vmul.f32 1.0, %v2631
    %v2633 = vrcp.pop %v2380
    %v2634 = vmul.f32 1.0, %v2633
    %v2635 = vrcp.pop %v2381
    %v2636 = vmul.f32 1.0, %v2635
    %v2637 = vrcp.pop %v2382
    %v2638 = vmul.f32 1.0, %v2637
    %v2639 = vrcp.pop %v2383
    %v2640 = vmul.f32 1.0, %v2639
    %v2641 = vrcp.pop %v2384
    %v2642 = vmul.f32 1.0, %v2641
    %v2643 = vrcp.pop %v2385
    %v2644 = vmul.f32 1.0, %v2643
    %v2645 = vrcp.pop %v2386
    %v2646 = vmul.f32 1.0, %v2645
    %v2647 = vrcp.pop %v2387
    %v2648 = vmul.f32 1.0, %v2647
    %v2649 = vrcp.pop %v2388
    %v2650 = vmul.f32 1.0, %v2649
    %v2651 = vrcp.pop %v2389
    %v2652 = vmul.f32 1.0, %v2651
    %v2653 = vrcp.pop %v2390
    %v2654 = vmul.f32 1.0, %v2653
    %v2655 = vrcp.pop %v2391
    %v2656 = vmul.f32 1.0, %v2655
    %v2657 = vrcp.pop %v2392
    %v2658 = vmul.f32 1.0, %v2657
    %v2659 = vrcp.pop %v2393
    %v2660 = vmul.f32 1.0, %v2659
    %v2661 = vrcp.pop %v2394
    %v2662 = vmul.f32 1.0, %v2661
    %v2663 = vrcp.pop %v2395
    %v2664 = vmul.f32 1.0, %v2663
    %v2665 = vrcp.pop %v2396
    %v2666 = vmul.f32 1.0, %v2665
    %v2667 = vrcp.pop %v2397
    %v2668 = vmul.f32 1.0, %v2667
    %v2669 = vrcp.pop %v2398
    %v2670 = vmul.f32 1.0, %v2669
    %v2671 = vrcp.pop %v2399
    %v2672 = vmul.f32 1.0, %v2671
    %v2673 = vrcp.pop %v2400
    %v2674 = vmul.f32 1.0, %v2673
    %v2675 = vrcp.pop %v2401
    %v2676 = vmul.f32 1.0, %v2675
    %v2677 = vrcp.pop %v2402
    %v2678 = vmul.f32 1.0, %v2677
    %v2679 = vrcp.pop %v2403
    %v2680 = vmul.f32 1.0, %v2679
    %v2681 = vrcp.pop %v2404
    %v2682 = vmul.f32 1.0, %v2681
    %v2683 = vrcp.pop %v2405
    %v2684 = vmul.f32 1.0, %v2683
    %v2685 = vrcp.pop %v2406
    %v2686 = vmul.f32 1.0, %v2685
    %v2687 = vrcp.pop %v2407
    %v2688 = vmul.f32 1.0, %v2687
    %v2689 = vrcp.pop %v2408
    %v2690 = vmul.f32 1.0, %v2689
    %v2691 = vrcp.pop %v2409
    %v2692 = vmul.f32 1.0, %v2691
    %v2693 = vrcp.pop %v2410
    %v2694 = vmul.f32 1.0, %v2693
    %v2695 = vrcp.pop %v2411
    %v2696 = vmul.f32 1.0, %v2695
    %v2697 = vrcp.pop %v2412
    %v2698 = vmul.f32 1.0, %v2697
    %v2699 = vrcp.pop %v2413
    %v2700 = vmul.f32 1.0, %v2699
    %v2701 = vrcp.pop %v2414
    %v2702 = vmul.f32 1.0, %v2701
    %v2703 = vrcp.pop %v2415
    %v2704 = vmul.f32 1.0, %v2703
    %v2705 = vrcp.pop %v2416
    %v2706 = vmul.f32 1.0, %v2705
    %v2707 = vrcp.pop %v2417
    %v2708 = vmul.f32 1.0, %v2707
    %v2709 = vrcp.pop %v2418
    %v2710 = vmul.f32 1.0, %v2709
    %v2711 = vrcp.pop %v2419
    %v2712 = vmul.f32 1.0, %v2711
    %v2713 = vrcp.pop %v2420
    %v2714 = vmul.f32 1.0, %v2713
    %v2715 = vrcp.pop %v2421
    %v2716 = vmul.f32 1.0, %v2715
    %v2717 = vrcp.pop %v2422
    %v2718 = vmul.f32 1.0, %v2717
    %v2719 = vrcp.pop %v2423
    %v2720 = vmul.f32 1.0, %v2719
    %v2721 = vrcp.pop %v2424
    %v2722 = vmul.f32 1.0, %v2721
    %v2723 = vrcp.pop %v2425
    %v2724 = vmul.f32 1.0, %v2723
    %v2725 = vrcp.pop %v2426
    %v2726 = vmul.f32 1.0, %v2725
    %v2727 = vrcp.pop %v2427
    %v2728 = vmul.f32 1.0, %v2727
    %v2729 = vrcp.pop %v2428
    %v2730 = vmul.f32 1.0, %v2729
    %v2731 = vrcp.pop %v2429
    %v2732 = vmul.f32 1.0, %v2731
    %v2733 = vrcp.pop %v2430
    %v2734 = vmul.f32 1.0, %v2733
    %v2735 = vrcp.pop %v2431
    %v2736 = vmul.f32 1.0, %v2735
    %v2737 = vrcp.pop %v2432
    %v2738 = vmul.f32 1.0, %v2737
    %v2739 = vrcp.pop %v2433
    %v2740 = vmul.f32 1.0, %v2739
    %v2741 = vrcp.pop %v2434
    %v2742 = vmul.f32 1.0, %v2741
    %v2743 = vrcp.pop %v2435
    %v2744 = vmul.f32 1.0, %v2743
    %v2745 = vrcp.pop %v2436
    %v2746 = vmul.f32 1.0, %v2745
    %v2747 = vrcp.pop %v2437
    %v2748 = vmul.f32 1.0, %v2747
    %v2749 = vrcp.pop %v2438
    %v2750 = vmul.f32 1.0, %v2749
    %v2751 = vrcp.pop %v2439
    %v2752 = vmul.f32 1.0, %v2751
    %v2753 = vrcp.pop %v2440
    %v2754 = vmul.f32 1.0, %v2753
    %v2755 = vrcp.pop %v2441
    %v2756 = vmul.f32 1.0, %v2755
    %v2757 = vrcp.pop %v2442
    %v2758 = vmul.f32 1.0, %v2757
    %v2759 = vrcp.pop %v2443
    %v2760 = vmul.f32 1.0, %v2759
    %v2761 = vrcp.pop %v2444
    %v2762 = vmul.f32 1.0, %v2761
    %v2763 = vrcp.pop %v2445
    %v2764 = vmul.f32 1.0, %v2763
    %v2765 = vrcp.pop %v2446
    %v2766 = vmul.f32 1.0, %v2765
    %v2767 = vrcp.pop %v2447
    %v2768 = vmul.f32 1.0, %v2767
    %v2769 = vrcp.pop %v2448
    %v2770 = vmul.f32 1.0, %v2769
    %v2771 = vrcp.pop %v2449
    %v2772 = vmul.f32 1.0, %v2771
    %v2773 = vrcp.pop %v2450
    %v2774 = vmul.f32 1.0, %v2773
    %v2775 = vrcp.pop %v2451
    %v2776 = vmul.f32 1.0, %v2775
    %v2777 = vrcp.pop %v2452
    %v2778 = vmul.f32 1.0, %v2777
    %v2779 = vrcp.pop %v2453
    %v2780 = vmul.f32 1.0, %v2779
    %v2781 = vrcp.pop %v2454
    %v2782 = vmul.f32 1.0, %v2781
    %v2783 = vrcp.pop %v2455
    %v2784 = vmul.f32 1.0, %v2783
    %v2785 = vrcp.pop %v2456
    %v2786 = vmul.f32 1.0, %v2785
    %v2787 = vrcp.pop %v2457
    %v2788 = vmul.f32 1.0, %v2787
    %v2789 = vrcp.pop %v2458
    %v2790 = vmul.f32 1.0, %v2789
    %v2791 = vrcp.pop %v2459
    %v2792 = vmul.f32 1.0, %v2791
    %v2793 = vrcp.pop %v2460
    %v2794 = vmul.f32 1.0, %v2793
    %v2795 = vrcp.pop %v2461
    %v2796 = vmul.f32 1.0, %v2795
    %v2797 = vrcp.pop %v2462
    %v2798 = vmul.f32 1.0, %v2797
    %v2799 = vrcp.pop %v2463
    %v2800 = vmul.f32 1.0, %v2799
    %v2801 = vrcp.pop %v2464
    %v2802 = vmul.f32 1.0, %v2801
    %v2803 = vrcp.pop %v2465
    %v2804 = vmul.f32 1.0, %v2803
    %v2805 = vrcp.pop %v2466
    %v2806 = vmul.f32 1.0, %v2805
    %v2807 = vrcp.pop %v2467
    %v2808 = vmul.f32 1.0, %v2807
    %v2809 = vrcp.pop %v2468
    %v2810 = vmul.f32 1.0, %v2809
    %v2811 = vrcp.pop %v2469
    %v2812 = vmul.f32 1.0, %v2811
    %v2813 = vrcp.pop %v2470
    %v2814 = vmul.f32 1.0, %v2813
    %v2815 = vrcp.pop %v2471
    %v2816 = vmul.f32 1.0, %v2815
    %v2817 = vrcp.pop %v2472
    %v2818 = vmul.f32 1.0, %v2817
    %v2819 = vrcp.pop %v2473
    %v2820 = vmul.f32 1.0, %v2819
    %v2821 = vrcp.pop %v2474
    %v2822 = vmul.f32 1.0, %v2821
    %v2823 = vrcp.pop %v2475
    %v2824 = vmul.f32 1.0, %v2823
    %v2825 = vrcp.pop %v2476
    %v2826 = vmul.f32 1.0, %v2825
    %v2827 = vrcp.pop %v2477
    %v2828 = vmul.f32 1.0, %v2827
    %v2829 = vrcp.pop %v2478
    %v2830 = vmul.f32 1.0, %v2829
    %v2831 = vrcp.pop %v2479
    %v2832 = vmul.f32 1.0, %v2831
    %v2833 = vrcp.pop %v2480
    %v2834 = vmul.f32 1.0, %v2833
    %v2835 = vrcp.pop %v2481
    %v2836 = vmul.f32 1.0, %v2835
    %v2837 = vrcp.pop %v2482
    %v2838 = vmul.f32 1.0, %v2837
    %v2839 = vrcp.pop %v2483
    %v2840 = vmul.f32 1.0, %v2839
    %v2841 = vrcp.pop %v2484
    %v2842 = vmul.f32 1.0, %v2841
    %v2843 = vrcp.pop %v2485
    %v2844 = vmul.f32 1.0, %v2843
    %v2845 = vrcp.pop %v2486
    %v2846 = vmul.f32 1.0, %v2845
    %v2847 = vrcp.pop %v2487
    %v2848 = vmul.f32 1.0, %v2847
    %v2849 = vrcp.pop %v2488
    %v2850 = vmul.f32 1.0, %v2849
    %v2851 = vrcp.pop %v2489
    %v2852 = vmul.f32 1.0, %v2851
    %v2853 = vrcp.pop %v2490
    %v2854 = vmul.f32 1.0, %v2853
    %v2855 = vrcp.pop %v2491
    %v2856 = vmul.f32 1.0, %v2855
    %v2857 = vrcp.pop %v2492
    %v2858 = vmul.f32 1.0, %v2857
    %v2859 = vrcp.pop %v2493
    %v2860 = vmul.f32 1.0, %v2859
    %v2861 = vrcp.pop %v2494
    %v2862 = vmul.f32 1.0, %v2861
    %v2863 = vrcp.pop %v2495
    %v2864 = vmul.f32 1.0, %v2863
    %v2865 = vrcp.pop %v2496
    %v2866 = vmul.f32 1.0, %v2865
    %v2867 = vrcp.pop %v2497
    %v2868 = vmul.f32 1.0, %v2867
    %v2869 = vrcp.pop %v2498
    %v2870 = vmul.f32 1.0, %v2869
    %v2871 = vrcp.pop %v2499
    %v2872 = vmul.f32 1.0, %v2871
    %v2873 = vrcp.pop %v2500
    %v2874 = vmul.f32 1.0, %v2873
    %v2875 = vrcp.pop %v2501
    %v2876 = vmul.f32 1.0, %v2875
    %v2877 = vrcp.pop %v2502
    %v2878 = vmul.f32 1.0, %v2877
    %v2879 = vrcp.pop %v2503
    %v2880 = vmul.f32 1.0, %v2879
    %v2881 = vrcp.pop %v2504
    %v2882 = vmul.f32 1.0, %v2881
    %v2883 = vrcp.pop %v2505
    %v2884 = vmul.f32 1.0, %v2883
    %v2885 = vrcp.pop %v2506
    %v2886 = vmul.f32 1.0, %v2885
    %v2887 = vrcp.pop %v2507
    %v2888 = vmul.f32 1.0, %v2887
    %v2889 = vrcp.pop %v2508
    %v2890 = vmul.f32 1.0, %v2889
    %v2891 = vrcp.pop %v2509
    %v2892 = vmul.f32 1.0, %v2891
    %v2893 = vrcp.pop %v2510
    %v2894 = vmul.f32 1.0, %v2893
    %v2895 = vmul.f32 %v977, %v2512
    %v2896 = vmul.f32 %v980, %v2514
    %v2897 = vmul.f32 %v985, %v2516
    %v2898 = vmul.f32 %v988, %v2518
    %v2899 = vmul.f32 %v993, %v2520
    %v2900 = vmul.f32 %v996, %v2522
    %v2901 = vmul.f32 %v1001, %v2524
    %v2902 = vmul.f32 %v1004, %v2526
    %v2903 = vmul.f32 %v1009, %v2528
    %v2904 = vmul.f32 %v1012, %v2530
    %v2905 = vmul.f32 %v1017, %v2532
    %v2906 = vmul.f32 %v1020, %v2534
    %v2907 = vmul.f32 %v1025, %v2536
    %v2908 = vmul.f32 %v1028, %v2538
    %v2909 = vmul.f32 %v1033, %v2540
    %v2910 = vmul.f32 %v1036, %v2542
    %v2911 = vmul.f32 %v1041, %v2544
    %v2912 = vmul.f32 %v1044, %v2546
    %v2913 = vmul.f32 %v1049, %v2548
    %v2914 = vmul.f32 %v1052, %v2550
    %v2915 = vmul.f32 %v1057, %v2552
    %v2916 = vmul.f32 %v1060, %v2554
    %v2917 = vmul.f32 %v1065, %v2556
    %v2918 = vmul.f32 %v1068, %v2558
    %v2919 = vmul.f32 %v1073, %v2560
    %v2920 = vmul.f32 %v1076, %v2562
    %v2921 = vmul.f32 %v1081, %v2564
    %v2922 = vmul.f32 %v1084, %v2566
    %v2923 = vmul.f32 %v1089, %v2568
    %v2924 = vmul.f32 %v1092, %v2570
    %v2925 = vmul.f32 %v1097, %v2572
    %v2926 = vmul.f32 %v1100, %v2574
    %v2927 = vmul.f32 %v1105, %v2576
    %v2928 = vmul.f32 %v1108, %v2578
    %v2929 = vmul.f32 %v1113, %v2580
    %v2930 = vmul.f32 %v1116, %v2582
    %v2931 = vmul.f32 %v1121, %v2584
    %v2932 = vmul.f32 %v1124, %v2586
    %v2933 = vmul.f32 %v1129, %v2588
    %v2934 = vmul.f32 %v1132, %v2590
    %v2935 = vmul.f32 %v1137, %v2592
    %v2936 = vmul.f32 %v1140, %v2594
    %v2937 = vmul.f32 %v1145, %v2596
    %v2938 = vmul.f32 %v1148, %v2598
    %v2939 = vmul.f32 %v1153, %v2600
    %v2940 = vmul.f32 %v1156, %v2602
    %v2941 = vmul.f32 %v1161, %v2604
    %v2942 = vmul.f32 %v1164, %v2606
    %v2943 = vmul.f32 %v1169, %v2608
    %v2944 = vmul.f32 %v1172, %v2610
    %v2945 = vmul.f32 %v1177, %v2612
    %v2946 = vmul.f32 %v1180, %v2614
    %v2947 = vmul.f32 %v1185, %v2616
    %v2948 = vmul.f32 %v1188, %v2618
    %v2949 = vmul.f32 %v1193, %v2620
    %v2950 = vmul.f32 %v1196, %v2622
    %v2951 = vmul.f32 %v1201, %v2624
    %v2952 = vmul.f32 %v1204, %v2626
    %v2953 = vmul.f32 %v1209, %v2628
    %v2954 = vmul.f32 %v1212, %v2630
    %v2955 = vmul.f32 %v1217, %v2632
    %v2956 = vmul.f32 %v1220, %v2634
    %v2957 = vmul.f32 %v1225, %v2636
    %v2958 = vmul.f32 %v1228, %v2638
    %v2959 = vmul.f32 %v1233, %v2640
    %v2960 = vmul.f32 %v1236, %v2642
    %v2961 = vmul.f32 %v1241, %v2644
    %v2962 = vmul.f32 %v1244, %v2646
    %v2963 = vmul.f32 %v1249, %v2648
    %v2964 = vmul.f32 %v1252, %v2650
    %v2965 = vmul.f32 %v1257, %v2652
    %v2966 = vmul.f32 %v1260, %v2654
    %v2967 = vmul.f32 %v1265, %v2656
    %v2968 = vmul.f32 %v1268, %v2658
    %v2969 = vmul.f32 %v1273, %v2660
    %v2970 = vmul.f32 %v1276, %v2662
    %v2971 = vmul.f32 %v1281, %v2664
    %v2972 = vmul.f32 %v1284, %v2666
    %v2973 = vmul.f32 %v1289, %v2668
    %v2974 = vmul.f32 %v1292, %v2670
    %v2975 = vmul.f32 %v1297, %v2672
    %v2976 = vmul.f32 %v1300, %v2674
    %v2977 = vmul.f32 %v1305, %v2676
    %v2978 = vmul.f32 %v1308, %v2678
    %v2979 = vmul.f32 %v1313, %v2680
    %v2980 = vmul.f32 %v1316, %v2682
    %v2981 = vmul.f32 %v1321, %v2684
    %v2982 = vmul.f32 %v1324, %v2686
    %v2983 = vmul.f32 %v1329, %v2688
    %v2984 = vmul.f32 %v1332, %v2690
    %v2985 = vmul.f32 %v1337, %v2692
    %v2986 = vmul.f32 %v1340, %v2694
    %v2987 = vmul.f32 %v1345, %v2696
    %v2988 = vmul.f32 %v1348, %v2698
    %v2989 = vmul.f32 %v1353, %v2700
    %v2990 = vmul.f32 %v1356, %v2702
    %v2991 = vmul.f32 %v1361, %v2704
    %v2992 = vmul.f32 %v1364, %v2706
    %v2993 = vmul.f32 %v1369, %v2708
    %v2994 = vmul.f32 %v1372, %v2710
    %v2995 = vmul.f32 %v1377, %v2712
    %v2996 = vmul.f32 %v1380, %v2714
    %v2997 = vmul.f32 %v1385, %v2716
    %v2998 = vmul.f32 %v1388, %v2718
    %v2999 = vmul.f32 %v1393, %v2720
    %v3000 = vmul.f32 %v1396, %v2722
    %v3001 = vmul.f32 %v1401, %v2724
    %v3002 = vmul.f32 %v1404, %v2726
    %v3003 = vmul.f32 %v1409, %v2728
    %v3004 = vmul.f32 %v1412, %v2730
    %v3005 = vmul.f32 %v1417, %v2732
    %v3006 = vmul.f32 %v1420, %v2734
    %v3007 = vmul.f32 %v1425, %v2736
    %v3008 = vmul.f32 %v1428, %v2738
    %v3009 = vmul.f32 %v1433, %v2740
    %v3010 = vmul.f32 %v1436, %v2742
    %v3011 = vmul.f32 %v1441, %v2744
    %v3012 = vmul.f32 %v1444, %v2746
    %v3013 = vmul.f32 %v1449, %v2748
    %v3014 = vmul.f32 %v1452, %v2750
    %v3015 = vmul.f32 %v1457, %v2752
    %v3016 = vmul.f32 %v1460, %v2754
    %v3017 = vmul.f32 %v1465, %v2756
    %v3018 = vmul.f32 %v1468, %v2758
    %v3019 = vmul.f32 %v1473, %v2760
    %v3020 = vmul.f32 %v1476, %v2762
    %v3021 = vmul.f32 %v1481, %v2764
    %v3022 = vmul.f32 %v1484, %v2766
    %v3023 = vmul.f32 %v1489, %v2768
    %v3024 = vmul.f32 %v1492, %v2770
    %v3025 = vmul.f32 %v1497, %v2772
    %v3026 = vmul.f32 %v1500, %v2774
    %v3027 = vmul.f32 %v1505, %v2776
    %v3028 = vmul.f32 %v1508, %v2778
    %v3029 = vmul.f32 %v1513, %v2780
    %v3030 = vmul.f32 %v1516, %v2782
    %v3031 = vmul.f32 %v1521, %v2784
    %v3032 = vmul.f32 %v1524, %v2786
    %v3033 = vmul.f32 %v1529, %v2788
    %v3034 = vmul.f32 %v1532, %v2790
    %v3035 = vmul.f32 %v1537, %v2792
    %v3036 = vmul.f32 %v1540, %v2794
    %v3037 = vmul.f32 %v1545, %v2796
    %v3038 = vmul.f32 %v1548, %v2798
    %v3039 = vmul.f32 %v1553, %v2800
    %v3040 = vmul.f32 %v1556, %v2802
    %v3041 = vmul.f32 %v1561, %v2804
    %v3042 = vmul.f32 %v1564, %v2806
    %v3043 = vmul.f32 %v1569, %v2808
    %v3044 = vmul.f32 %v1572, %v2810
    %v3045 = vmul.f32 %v1577, %v2812
    %v3046 = vmul.f32 %v1580, %v2814
    %v3047 = vmul.f32 %v1585, %v2816
    %v3048 = vmul.f32 %v1588, %v2818
    %v3049 = vmul.f32 %v1593, %v2820
    %v3050 = vmul.f32 %v1596, %v2822
    %v3051 = vmul.f32 %v1601, %v2824
    %v3052 = vmul.f32 %v1604, %v2826
    %v3053 = vmul.f32 %v1609, %v2828
    %v3054 = vmul.f32 %v1612, %v2830
    %v3055 = vmul.f32 %v1617, %v2832
    %v3056 = vmul.f32 %v1620, %v2834
    %v3057 = vmul.f32 %v1625, %v2836
    %v3058 = vmul.f32 %v1628, %v2838
    %v3059 = vmul.f32 %v1633, %v2840
    %v3060 = vmul.f32 %v1636, %v2842
    %v3061 = vmul.f32 %v1641, %v2844
    %v3062 = vmul.f32 %v1644, %v2846
    %v3063 = vmul.f32 %v1649, %v2848
    %v3064 = vmul.f32 %v1652, %v2850
    %v3065 = vmul.f32 %v1657, %v2852
    %v3066 = vmul.f32 %v1660, %v2854
    %v3067 = vmul.f32 %v1665, %v2856
    %v3068 = vmul.f32 %v1668, %v2858
    %v3069 = vmul.f32 %v1673, %v2860
    %v3070 = vmul.f32 %v1676, %v2862
    %v3071 = vmul.f32 %v1681, %v2864
    %v3072 = vmul.f32 %v1684, %v2866
    %v3073 = vmul.f32 %v1689, %v2868
    %v3074 = vmul.f32 %v1692, %v2870
    %v3075 = vmul.f32 %v1697, %v2872
    %v3076 = vmul.f32 %v1700, %v2874
    %v3077 = vmul.f32 %v1705, %v2876
    %v3078 = vmul.f32 %v1708, %v2878
    %v3079 = vmul.f32 %v1713, %v2880
    %v3080 = vmul.f32 %v1716, %v2882
    %v3081 = vmul.f32 %v1721, %v2884
    %v3082 = vmul.f32 %v1724, %v2886
    %v3083 = vmul.f32 %v1729, %v2888
    %v3084 = vmul.f32 %v1732, %v2890
    %v3085 = vmul.f32 %v1737, %v2892
    %v3086 = vmul.f32 %v1740, %v2894
    %v3087 = vld [vmem:[#allocation8] sm:$0xff]
    %v3088 = vld [vmem:[#allocation8 + $0x8] sm:$0xff]
    %v3089 = vld [vmem:[#allocation8 + $0x10] sm:$0xff]
    %v3093 = vcombine.high %v3087, %v3087
    %v3095 = vunpack.c.l.s4 1983009808
    %v3096 = vunpack.c.0.s8 %v3095
    %v3097 = vlaneseq
    %v3098 = vshrl.u32 %v3097, 7
    %v3099 = vsub.s32 %v3096, %v3098
    %v3100 = vrot.slane %v3087, %v3099
    %v3102 = vunpack.c.l.s4 1983009808
    %v3103 = vunpack.c.0.s8 %v3102
    %v3104 = vlaneseq
    %v3105 = vshrl.u32 %v3104, 7
    %v3106 = vsub.s32 %v3103, %v3105
    %v3107 = vrot.slane %v3093, %v3106
    %v3108 = vcombine.high %v3100, %v3100
    %v3109 = vcombine.high %v3107, %v3107
    %v3110 = vcombine.high %v3088, %v3088
    %v3112 = vunpack.c.l.s4 1983009808
    %v3113 = vunpack.c.0.s8 %v3112
    %v3114 = vlaneseq
    %v3115 = vshrl.u32 %v3114, 7
    %v3116 = vsub.s32 %v3113, %v3115
    %v3117 = vrot.slane %v3088, %v3116
    %v3119 = vunpack.c.l.s4 1983009808
    %v3120 = vunpack.c.0.s8 %v3119
    %v3121 = vlaneseq
    %v3122 = vshrl.u32 %v3121, 7
    %v3123 = vsub.s32 %v3120, %v3122
    %v3124 = vrot.slane %v3110, %v3123
    %v3125 = vcombine.high %v3117, %v3117
    %v3126 = vcombine.high %v3124, %v3124
    %v3127 = vcombine.high %v3089, %v3089
    %v3129 = vunpack.c.l.s4 1983009808
    %v3130 = vunpack.c.0.s8 %v3129
    %v3131 = vlaneseq
    %v3132 = vshrl.u32 %v3131, 7
    %v3133 = vsub.s32 %v3130, %v3132
    %v3134 = vrot.slane %v3089, %v3133
    %v3136 = vunpack.c.l.s4 1983009808
    %v3137 = vunpack.c.0.s8 %v3136
    %v3138 = vlaneseq
    %v3139 = vshrl.u32 %v3138, 7
    %v3140 = vsub.s32 %v3137, %v3139
    %v3141 = vrot.slane %v3127, %v3140
    %v3142 = vcombine.high %v3134, %v3134
    %v3143 = vcombine.high %v3141, %v3141
    %3156 = vmatprep.subr.mxu0 0.0
    %3157 = vmatpush1.msra.mxu0 %v2895
    %3158 = vmatprep.subr.mxu0 0.0
    %3159 = vmatpush1.msra.mxu0 %v2896
    %3160 = vmatprep.subr.mxu0 0.0
    %3161 = vmatpush1.msra.mxu0 %v2897
    %3162 = vmatprep.subr.mxu0 0.0
    %3163 = vmatpush1.msra.mxu0 %v2898
    %3164 = vmatprep.subr.mxu0 0.0
    %3165 = vmatpush1.msra.mxu0 %v2899
    %3166 = vmatprep.subr.mxu0 0.0
    %3167 = vmatpush1.msra.mxu0 %v2900
    %3168 = vmatprep.subr.mxu0 0.0
    %3169 = vmatpush1.msra.mxu0 %v2901
    %3170 = vmatprep.subr.mxu0 0.0
    %3171 = vmatpush1.msra.mxu0 %v2902
    %3172 = vmatprep.subr.mxu0 0.0
    %3173 = vmatpush1.msra.mxu0 %v2903
    %3174 = vmatprep.subr.mxu0 0.0
    %3175 = vmatpush1.msra.mxu0 %v2904
    %3176 = vmatprep.subr.mxu0 0.0
    %3177 = vmatpush1.msra.mxu0 %v2905
    %3178 = vmatprep.subr.mxu0 0.0
    %3179 = vmatpush1.msra.mxu0 %v2906
    %3180 = vmatprep.subr.mxu0 0.0
    %3181 = vmatpush1.msra.mxu0 %v2907
    %3182 = vmatprep.subr.mxu0 0.0
    %3183 = vmatpush1.msra.mxu0 %v2908
    %3184 = vmatprep.subr.mxu0 0.0
    %3185 = vmatpush1.msra.mxu0 %v2909
    %3186 = vmatprep.subr.mxu0 0.0
    %3187 = vmatpush1.msra.mxu0 %v2910
    %3188 = vmatprep.subr.mxu0 0.0
    %3189 = vmatpush1.msra.mxu0 %v2911
    %3190 = vmatprep.subr.mxu0 0.0
    %3191 = vmatpush1.msra.mxu0 %v2912
    %3192 = vmatprep.subr.mxu0 0.0
    %3193 = vmatpush1.msra.mxu0 %v2913
    %3194 = vmatprep.subr.mxu0 0.0
    %3195 = vmatpush1.msra.mxu0 %v2914
    %3196 = vmatprep.subr.mxu0 0.0
    %3197 = vmatpush1.msra.mxu0 %v2915
    %3198 = vmatprep.subr.mxu0 0.0
    %3199 = vmatpush1.msra.mxu0 %v2916
    %3200 = vmatprep.subr.mxu0 0.0
    %3201 = vmatpush1.msra.mxu0 %v2917
    %3202 = vmatprep.subr.mxu0 0.0
    %3203 = vmatpush1.msra.mxu0 %v2918
    %3204 = vmatprep.subr.mxu0 0.0
    %3205 = vmatpush1.msra.mxu0 %v2919
    %3206 = vmatprep.subr.mxu0 0.0
    %3207 = vmatpush1.msra.mxu0 %v2920
    %3208 = vmatprep.subr.mxu0 0.0
    %3209 = vmatpush1.msra.mxu0 %v2921
    %3210 = vmatprep.subr.mxu0 0.0
    %3211 = vmatpush1.msra.mxu0 %v2922
    %3212 = vmatprep.subr.mxu0 0.0
    %3213 = vmatpush1.msra.mxu0 %v2923
    %3214 = vmatprep.subr.mxu0 0.0
    %3215 = vmatpush1.msra.mxu0 %v2924
    %3216 = vmatprep.subr.mxu0 0.0
    %3217 = vmatpush1.msra.mxu0 %v2925
    %3218 = vmatprep.subr.mxu0 0.0
    %3219 = vmatpush1.msra.mxu0 %v2926
    %3220 = vmatprep.mubr.f32.mxu0 %v3108
    %3221 = vmatmul.mubr.f32.gmra.mrb[0].mxu0 %v3100
    %v3222 = vpop.f32.mrb[0].mxu0
    %v3223 = vadd.f32 0.0, %v3222
    %v3224 = vpop.f32.mrb[0].mxu0
    %3225 = vdwg.mxu0
    %3226 = vmatprep.subr.mxu0 0.0
    %3227 = vmatpush1.msra.mxu0 %v2927
    %3228 = vmatprep.subr.mxu0 0.0
    %3229 = vmatpush1.msra.mxu0 %v2928
    %3230 = vmatprep.subr.mxu0 0.0
    %3231 = vmatpush1.msra.mxu0 %v2929
    %3232 = vmatprep.subr.mxu0 0.0
    %3233 = vmatpush1.msra.mxu0 %v2930
    %3234 = vmatprep.subr.mxu0 0.0
    %3235 = vmatpush1.msra.mxu0 %v2931
    %3236 = vmatprep.subr.mxu0 0.0
    %3237 = vmatpush1.msra.mxu0 %v2932
    %3238 = vmatprep.subr.mxu0 0.0
    %3239 = vmatpush1.msra.mxu0 %v2933
    %3240 = vmatprep.subr.mxu0 0.0
    %3241 = vmatpush1.msra.mxu0 %v2934
    %3242 = vmatprep.subr.mxu0 0.0
    %3243 = vmatpush1.msra.mxu0 %v2935
    %3244 = vmatprep.subr.mxu0 0.0
    %3245 = vmatpush1.msra.mxu0 %v2936
    %3246 = vmatprep.subr.mxu0 0.0
    %3247 = vmatpush1.msra.mxu0 %v2937
    %3248 = vmatprep.subr.mxu0 0.0
    %3249 = vmatpush1.msra.mxu0 %v2938
    %3250 = vmatprep.subr.mxu0 0.0
    %3251 = vmatpush1.msra.mxu0 %v2939
    %3252 = vmatprep.subr.mxu0 0.0
    %3253 = vmatpush1.msra.mxu0 %v2940
    %3254 = vmatprep.subr.mxu0 0.0
    %3255 = vmatpush1.msra.mxu0 %v2941
    %3256 = vmatprep.subr.mxu0 0.0
    %3257 = vmatpush1.msra.mxu0 %v2942
    %3258 = vmatprep.subr.mxu0 0.0
    %3259 = vmatpush1.msra.mxu0 %v2943
    %3260 = vmatprep.subr.mxu0 0.0
    %3261 = vmatpush1.msra.mxu0 %v2944
    %3262 = vmatprep.subr.mxu0 0.0
    %3263 = vmatpush1.msra.mxu0 %v2945
    %3264 = vmatprep.subr.mxu0 0.0
    %3265 = vmatpush1.msra.mxu0 %v2946
    %3266 = vmatprep.subr.mxu0 0.0
    %3267 = vmatpush1.msra.mxu0 %v2947
    %3268 = vmatprep.subr.mxu0 0.0
    %3269 = vmatpush1.msra.mxu0 %v2948
    %3270 = vmatprep.subr.mxu0 0.0
    %3271 = vmatpush1.msra.mxu0 %v2949
    %3272 = vmatprep.subr.mxu0 0.0
    %3273 = vmatpush1.msra.mxu0 %v2950
    %3274 = vmatprep.subr.mxu0 0.0
    %3275 = vmatpush1.msra.mxu0 %v2951
    %3276 = vmatprep.subr.mxu0 0.0
    %3277 = vmatpush1.msra.mxu0 %v2952
    %3278 = vmatprep.subr.mxu0 0.0
    %3279 = vmatpush1.msra.mxu0 %v2953
    %3280 = vmatprep.subr.mxu0 0.0
    %3281 = vmatpush1.msra.mxu0 %v2954
    %3282 = vmatprep.subr.mxu0 0.0
    %3283 = vmatpush1.msra.mxu0 %v2955
    %3284 = vmatprep.subr.mxu0 0.0
    %3285 = vmatpush1.msra.mxu0 %v2956
    %3286 = vmatprep.subr.mxu0 0.0
    %3287 = vmatpush1.msra.mxu0 %v2957
    %3288 = vmatprep.subr.mxu0 0.0
    %3289 = vmatpush1.msra.mxu0 %v2958
    %3290 = vmatprep.mubr.f32.mxu0 %v3109
    %3291 = vmatmul.mubr.f32.gmra.mrb[0].mxu0 %v3107
    %v3292 = vpop.f32.mrb[0].mxu0
    %v3293 = vadd.f32 %v3223, %v3292
    %v3294 = vpop.f32.mrb[0].mxu0
    %3295 = vdwg.mxu0
    %3296 = vmatprep.subr.mxu0 0.0
    %3297 = vmatpush1.msra.mxu0 %v2959
    %3298 = vmatprep.subr.mxu0 0.0
    %3299 = vmatpush1.msra.mxu0 %v2960
    %3300 = vmatprep.subr.mxu0 0.0
    %3301 = vmatpush1.msra.mxu0 %v2961
    %3302 = vmatprep.subr.mxu0 0.0
    %3303 = vmatpush1.msra.mxu0 %v2962
    %3304 = vmatprep.subr.mxu0 0.0
    %3305 = vmatpush1.msra.mxu0 %v2963
    %3306 = vmatprep.subr.mxu0 0.0
    %3307 = vmatpush1.msra.mxu0 %v2964
    %3308 = vmatprep.subr.mxu0 0.0
    %3309 = vmatpush1.msra.mxu0 %v2965
    %3310 = vmatprep.subr.mxu0 0.0
    %3311 = vmatpush1.msra.mxu0 %v2966
    %3312 = vmatprep.subr.mxu0 0.0
    %3313 = vmatpush1.msra.mxu0 %v2967
    %3314 = vmatprep.subr.mxu0 0.0
    %3315 = vmatpush1.msra.mxu0 %v2968
    %3316 = vmatprep.subr.mxu0 0.0
    %3317 = vmatpush1.msra.mxu0 %v2969
    %3318 = vmatprep.subr.mxu0 0.0
    %3319 = vmatpush1.msra.mxu0 %v2970
    %3320 = vmatprep.subr.mxu0 0.0
    %3321 = vmatpush1.msra.mxu0 %v2971
    %3322 = vmatprep.subr.mxu0 0.0
    %3323 = vmatpush1.msra.mxu0 %v2972
    %3324 = vmatprep.subr.mxu0 0.0
    %3325 = vmatpush1.msra.mxu0 %v2973
    %3326 = vmatprep.subr.mxu0 0.0
    %3327 = vmatpush1.msra.mxu0 %v2974
    %3328 = vmatprep.subr.mxu0 0.0
    %3329 = vmatpush1.msra.mxu0 %v2975
    %3330 = vmatprep.subr.mxu0 0.0
    %3331 = vmatpush1.msra.mxu0 %v2976
    %3332 = vmatprep.subr.mxu0 0.0
    %3333 = vmatpush1.msra.mxu0 %v2977
    %3334 = vmatprep.subr.mxu0 0.0
    %3335 = vmatpush1.msra.mxu0 %v2978
    %3336 = vmatprep.subr.mxu0 0.0
    %3337 = vmatpush1.msra.mxu0 %v2979
    %3338 = vmatprep.subr.mxu0 0.0
    %3339 = vmatpush1.msra.mxu0 %v2980
    %3340 = vmatprep.subr.mxu0 0.0
    %3341 = vmatpush1.msra.mxu0 %v2981
    %3342 = vmatprep.subr.mxu0 0.0
    %3343 = vmatpush1.msra.mxu0 %v2982
    %3344 = vmatprep.subr.mxu0 0.0
    %3345 = vmatpush1.msra.mxu0 %v2983
    %3346 = vmatprep.subr.mxu0 0.0
    %3347 = vmatpush1.msra.mxu0 %v2984
    %3348 = vmatprep.subr.mxu0 0.0
    %3349 = vmatpush1.msra.mxu0 %v2985
    %3350 = vmatprep.subr.mxu0 0.0
    %3351 = vmatpush1.msra.mxu0 %v2986
    %3352 = vmatprep.subr.mxu0 0.0
    %3353 = vmatpush1.msra.mxu0 %v2987
    %3354 = vmatprep.subr.mxu0 0.0
    %3355 = vmatpush1.msra.mxu0 %v2988
    %3356 = vmatprep.subr.mxu0 0.0
    %3357 = vmatpush1.msra.mxu0 %v2989
    %3358 = vmatprep.subr.mxu0 0.0
    %3359 = vmatpush1.msra.mxu0 %v2990
    %3360 = vmatprep.mubr.f32.mxu0 %v3125
    %3361 = vmatmul.mubr.f32.gmra.mrb[0].mxu0 %v3117
    %v3362 = vpop.f32.mrb[0].mxu0
    %v3363 = vadd.f32 %v3293, %v3362
    %v3364 = vpop.f32.mrb[0].mxu0
    %3365 = vdwg.mxu0
    %3366 = vmatprep.subr.mxu0 0.0
    %3367 = vmatpush1.msra.mxu0 %v2991
    %3368 = vmatprep.subr.mxu0 0.0
    %3369 = vmatpush1.msra.mxu0 %v2992
    %3370 = vmatprep.subr.mxu0 0.0
    %3371 = vmatpush1.msra.mxu0 %v2993
    %3372 = vmatprep.subr.mxu0 0.0
    %3373 = vmatpush1.msra.mxu0 %v2994
    %3374 = vmatprep.subr.mxu0 0.0
    %3375 = vmatpush1.msra.mxu0 %v2995
    %3376 = vmatprep.subr.mxu0 0.0
    %3377 = vmatpush1.msra.mxu0 %v2996
    %3378 = vmatprep.subr.mxu0 0.0
    %3379 = vmatpush1.msra.mxu0 %v2997
    %3380 = vmatprep.subr.mxu0 0.0
    %3381 = vmatpush1.msra.mxu0 %v2998
    %3382 = vmatprep.subr.mxu0 0.0
    %3383 = vmatpush1.msra.mxu0 %v2999
    %3384 = vmatprep.subr.mxu0 0.0
    %3385 = vmatpush1.msra.mxu0 %v3000
    %3386 = vmatprep.subr.mxu0 0.0
    %3387 = vmatpush1.msra.mxu0 %v3001
    %3388 = vmatprep.subr.mxu0 0.0
    %3389 = vmatpush1.msra.mxu0 %v3002
    %3390 = vmatprep.subr.mxu0 0.0
    %3391 = vmatpush1.msra.mxu0 %v3003
    %3392 = vmatprep.subr.mxu0 0.0
    %3393 = vmatpush1.msra.mxu0 %v3004
    %3394 = vmatprep.subr.mxu0 0.0
    %3395 = vmatpush1.msra.mxu0 %v3005
    %3396 = vmatprep.subr.mxu0 0.0
    %3397 = vmatpush1.msra.mxu0 %v3006
    %3398 = vmatprep.subr.mxu0 0.0
    %3399 = vmatpush1.msra.mxu0 %v3007
    %3400 = vmatprep.subr.mxu0 0.0
    %3401 = vmatpush1.msra.mxu0 %v3008
    %3402 = vmatprep.subr.mxu0 0.0
    %3403 = vmatpush1.msra.mxu0 %v3009
    %3404 = vmatprep.subr.mxu0 0.0
    %3405 = vmatpush1.msra.mxu0 %v3010
    %3406 = vmatprep.subr.mxu0 0.0
    %3407 = vmatpush1.msra.mxu0 %v3011
    %3408 = vmatprep.subr.mxu0 0.0
    %3409 = vmatpush1.msra.mxu0 %v3012
    %3410 = vmatprep.subr.mxu0 0.0
    %3411 = vmatpush1.msra.mxu0 %v3013
    %3412 = vmatprep.subr.mxu0 0.0
    %3413 = vmatpush1.msra.mxu0 %v3014
    %3414 = vmatprep.subr.mxu0 0.0
    %3415 = vmatpush1.msra.mxu0 %v3015
    %3416 = vmatprep.subr.mxu0 0.0
    %3417 = vmatpush1.msra.mxu0 %v3016
    %3418 = vmatprep.subr.mxu0 0.0
    %3419 = vmatpush1.msra.mxu0 %v3017
    %3420 = vmatprep.subr.mxu0 0.0
    %3421 = vmatpush1.msra.mxu0 %v3018
    %3422 = vmatprep.subr.mxu0 0.0
    %3423 = vmatpush1.msra.mxu0 %v3019
    %3424 = vmatprep.subr.mxu0 0.0
    %3425 = vmatpush1.msra.mxu0 %v3020
    %3426 = vmatprep.subr.mxu0 0.0
    %3427 = vmatpush1.msra.mxu0 %v3021
    %3428 = vmatprep.subr.mxu0 0.0
    %3429 = vmatpush1.msra.mxu0 %v3022
    %3430 = vmatprep.mubr.f32.mxu0 %v3126
    %3431 = vmatmul.mubr.f32.gmra.mrb[0].mxu0 %v3124
    %v3432 = vpop.f32.mrb[0].mxu0
    %v3433 = vadd.f32 %v3363, %v3432
    %v3434 = vpop.f32.mrb[0].mxu0
    %3435 = vdwg.mxu0
    %3436 = vmatprep.subr.mxu0 0.0
    %3437 = vmatpush1.msra.mxu0 %v3023
    %3438 = vmatprep.subr.mxu0 0.0
    %3439 = vmatpush1.msra.mxu0 %v3024
    %3440 = vmatprep.subr.mxu0 0.0
    %3441 = vmatpush1.msra.mxu0 %v3025
    %3442 = vmatprep.subr.mxu0 0.0
    %3443 = vmatpush1.msra.mxu0 %v3026
    %3444 = vmatprep.subr.mxu0 0.0
    %3445 = vmatpush1.msra.mxu0 %v3027
    %3446 = vmatprep.subr.mxu0 0.0
    %3447 = vmatpush1.msra.mxu0 %v3028
    %3448 = vmatprep.subr.mxu0 0.0
    %3449 = vmatpush1.msra.mxu0 %v3029
    %3450 = vmatprep.subr.mxu0 0.0
    %3451 = vmatpush1.msra.mxu0 %v3030
    %3452 = vmatprep.subr.mxu0 0.0
    %3453 = vmatpush1.msra.mxu0 %v3031
    %3454 = vmatprep.subr.mxu0 0.0
    %3455 = vmatpush1.msra.mxu0 %v3032
    %3456 = vmatprep.subr.mxu0 0.0
    %3457 = vmatpush1.msra.mxu0 %v3033
    %3458 = vmatprep.subr.mxu0 0.0
    %3459 = vmatpush1.msra.mxu0 %v3034
    %3460 = vmatprep.subr.mxu0 0.0
    %3461 = vmatpush1.msra.mxu0 %v3035
    %3462 = vmatprep.subr.mxu0 0.0
    %3463 = vmatpush1.msra.mxu0 %v3036
    %3464 = vmatprep.subr.mxu0 0.0
    %3465 = vmatpush1.msra.mxu0 %v3037
    %3466 = vmatprep.subr.mxu0 0.0
    %3467 = vmatpush1.msra.mxu0 %v3038
    %3468 = vmatprep.subr.mxu0 0.0
    %3469 = vmatpush1.msra.mxu0 %v3039
    %3470 = vmatprep.subr.mxu0 0.0
    %3471 = vmatpush1.msra.mxu0 %v3040
    %3472 = vmatprep.subr.mxu0 0.0
    %3473 = vmatpush1.msra.mxu0 %v3041
    %3474 = vmatprep.subr.mxu0 0.0
    %3475 = vmatpush1.msra.mxu0 %v3042
    %3476 = vmatprep.subr.mxu0 0.0
    %3477 = vmatpush1.msra.mxu0 %v3043
    %3478 = vmatprep.subr.mxu0 0.0
    %3479 = vmatpush1.msra.mxu0 %v3044
    %3480 = vmatprep.subr.mxu0 0.0
    %3481 = vmatpush1.msra.mxu0 %v3045
    %3482 = vmatprep.subr.mxu0 0.0
    %3483 = vmatpush1.msra.mxu0 %v3046
    %3484 = vmatprep.subr.mxu0 0.0
    %3485 = vmatpush1.msra.mxu0 %v3047
    %3486 = vmatprep.subr.mxu0 0.0
    %3487 = vmatpush1.msra.mxu0 %v3048
    %3488 = vmatprep.subr.mxu0 0.0
    %3489 = vmatpush1.msra.mxu0 %v3049
    %3490 = vmatprep.subr.mxu0 0.0
    %3491 = vmatpush1.msra.mxu0 %v3050
    %3492 = vmatprep.subr.mxu0 0.0
    %3493 = vmatpush1.msra.mxu0 %v3051
    %3494 = vmatprep.subr.mxu0 0.0
    %3495 = vmatpush1.msra.mxu0 %v3052
    %3496 = vmatprep.subr.mxu0 0.0
    %3497 = vmatpush1.msra.mxu0 %v3053
    %3498 = vmatprep.subr.mxu0 0.0
    %3499 = vmatpush1.msra.mxu0 %v3054
    %3500 = vmatprep.mubr.f32.mxu0 %v3142
    %3501 = vmatmul.mubr.f32.gmra.mrb[0].mxu0 %v3134
    %v3502 = vpop.f32.mrb[0].mxu0
    %v3503 = vadd.f32 %v3433, %v3502
    %v3504 = vpop.f32.mrb[0].mxu0
    %3505 = vdwg.mxu0
    %3506 = vmatprep.subr.mxu0 0.0
    %3507 = vmatpush1.msra.mxu0 %v3055
    %3508 = vmatprep.subr.mxu0 0.0
    %3509 = vmatpush1.msra.mxu0 %v3056
    %3510 = vmatprep.subr.mxu0 0.0
    %3511 = vmatpush1.msra.mxu0 %v3057
    %3512 = vmatprep.subr.mxu0 0.0
    %3513 = vmatpush1.msra.mxu0 %v3058
    %3514 = vmatprep.subr.mxu0 0.0
    %3515 = vmatpush1.msra.mxu0 %v3059
    %3516 = vmatprep.subr.mxu0 0.0
    %3517 = vmatpush1.msra.mxu0 %v3060
    %3518 = vmatprep.subr.mxu0 0.0
    %3519 = vmatpush1.msra.mxu0 %v3061
    %3520 = vmatprep.subr.mxu0 0.0
    %3521 = vmatpush1.msra.mxu0 %v3062
    %3522 = vmatprep.subr.mxu0 0.0
    %3523 = vmatpush1.msra.mxu0 %v3063
    %3524 = vmatprep.subr.mxu0 0.0
    %3525 = vmatpush1.msra.mxu0 %v3064
    %3526 = vmatprep.subr.mxu0 0.0
    %3527 = vmatpush1.msra.mxu0 %v3065
    %3528 = vmatprep.subr.mxu0 0.0
    %3529 = vmatpush1.msra.mxu0 %v3066
    %3530 = vmatprep.subr.mxu0 0.0
    %3531 = vmatpush1.msra.mxu0 %v3067
    %3532 = vmatprep.subr.mxu0 0.0
    %3533 = vmatpush1.msra.mxu0 %v3068
    %3534 = vmatprep.subr.mxu0 0.0
    %3535 = vmatpush1.msra.mxu0 %v3069
    %3536 = vmatprep.subr.mxu0 0.0
    %3537 = vmatpush1.msra.mxu0 %v3070
    %3538 = vmatprep.subr.mxu0 0.0
    %3539 = vmatpush1.msra.mxu0 %v3071
    %3540 = vmatprep.subr.mxu0 0.0
    %3541 = vmatpush1.msra.mxu0 %v3072
    %3542 = vmatprep.subr.mxu0 0.0
    %3543 = vmatpush1.msra.mxu0 %v3073
    %3544 = vmatprep.subr.mxu0 0.0
    %3545 = vmatpush1.msra.mxu0 %v3074
    %3546 = vmatprep.subr.mxu0 0.0
    %3547 = vmatpush1.msra.mxu0 %v3075
    %3548 = vmatprep.subr.mxu0 0.0
    %3549 = vmatpush1.msra.mxu0 %v3076
    %3550 = vmatprep.subr.mxu0 0.0
    %3551 = vmatpush1.msra.mxu0 %v3077
    %3552 = vmatprep.subr.mxu0 0.0
    %3553 = vmatpush1.msra.mxu0 %v3078
    %3554 = vmatprep.subr.mxu0 0.0
    %3555 = vmatpush1.msra.mxu0 %v3079
    %3556 = vmatprep.subr.mxu0 0.0
    %3557 = vmatpush1.msra.mxu0 %v3080
    %3558 = vmatprep.subr.mxu0 0.0
    %3559 = vmatpush1.msra.mxu0 %v3081
    %3560 = vmatprep.subr.mxu0 0.0
    %3561 = vmatpush1.msra.mxu0 %v3082
    %3562 = vmatprep.subr.mxu0 0.0
    %3563 = vmatpush1.msra.mxu0 %v3083
    %3564 = vmatprep.subr.mxu0 0.0
    %3565 = vmatpush1.msra.mxu0 %v3084
    %3566 = vmatprep.subr.mxu0 0.0
    %3567 = vmatpush1.msra.mxu0 %v3085
    %3568 = vmatprep.subr.mxu0 0.0
    %3569 = vmatpush1.msra.mxu0 %v3086
    %3570 = vmatprep.mubr.f32.mxu0 %v3143
    %3571 = vmatmul.mubr.f32.gmra.mrb[0].mxu0 %v3141
    %v3572 = vpop.f32.mrb[0].mxu0
    %v3573 = vadd.f32 %v3503, %v3572
    %v3574 = vpop.f32.mrb[0].mxu0
    %3575 = vdwg.mxu0
    %v3576 = vld [vmem:[#allocation10] sm:$0xff]
    %v3577 = vld [vmem:[#allocation10 + $0x8] sm:$0xff]
    %v3578 = vld [vmem:[#allocation10 + $0x10] sm:$0xff]
    %v3579 = vld [vmem:[#allocation10 + $0x18] sm:$0xff]
    %v3580 = vld [vmem:[#allocation10 + $0x20] sm:$0xff]
    %v3581 = vld [vmem:[#allocation10 + $0x28] sm:$0xff]
    %v3582 = vld [vmem:[#allocation10 + $0x30] sm:$0xff]
    %v3583 = vld [vmem:[#allocation10 + $0x38] sm:$0xff]
    %v3584 = vld [vmem:[#allocation10 + $0x40] sm:$0xff]
    %v3585 = vld [vmem:[#allocation10 + $0x48] sm:$0xff]
    %v3586 = vld [vmem:[#allocation10 + $0x50] sm:$0xff]
    %v3587 = vld [vmem:[#allocation10 + $0x58] sm:$0xff]
    %v3588 = vld [vmem:[#allocation10 + $0x60] sm:$0xff]
    %v3589 = vld [vmem:[#allocation10 + $0x68] sm:$0xff]
    %v3590 = vld [vmem:[#allocation10 + $0x70] sm:$0xff]
    %v3591 = vld [vmem:[#allocation10 + $0x78] sm:$0xff]
    %s3592 = scalar_lea.vmem [#allocation8], 24
    %v3593 = vld [vmem:[%s3592] sm:$0xff]
    %v3594 = vld [vmem:[%s3592 + $0x8] sm:$0xff]
    %v3595 = vld [vmem:[%s3592 + $0x10] sm:$0xff]
    %v3599 = vcombine.high %v3593, %v3593
    %v3601 = vunpack.c.l.s4 1983009808
    %v3602 = vunpack.c.0.s8 %v3601
    %v3603 = vlaneseq
    %v3604 = vshrl.u32 %v3603, 7
    %v3605 = vsub.s32 %v3602, %v3604
    %v3606 = vrot.slane %v3593, %v3605
    %v3608 = vunpack.c.l.s4 1983009808
    %v3609 = vunpack.c.0.s8 %v3608
    %v3610 = vlaneseq
    %v3611 = vshrl.u32 %v3610, 7
    %v3612 = vsub.s32 %v3609, %v3611
    %v3613 = vrot.slane %v3599, %v3612
    %v3614 = vcombine.high %v3606, %v3606
    %v3615 = vcombine.high %v3613, %v3613
    %v3616 = vcombine.high %v3594, %v3594
    %v3618 = vunpack.c.l.s4 1983009808
    %v3619 = vunpack.c.0.s8 %v3618
    %v3620 = vlaneseq
    %v3621 = vshrl.u32 %v3620, 7
    %v3622 = vsub.s32 %v3619, %v3621
    %v3623 = vrot.slane %v3594, %v3622
    %v3625 = vunpack.c.l.s4 1983009808
    %v3626 = vunpack.c.0.s8 %v3625
    %v3627 = vlaneseq
    %v3628 = vshrl.u32 %v3627, 7
    %v3629 = vsub.s32 %v3626, %v3628
    %v3630 = vrot.slane %v3616, %v3629
    %v3631 = vcombine.high %v3623, %v3623
    %v3632 = vcombine.high %v3630, %v3630
    %v3633 = vcombine.high %v3595, %v3595
    %v3635 = vunpack.c.l.s4 1983009808
    %v3636 = vunpack.c.0.s8 %v3635
    %v3637 = vlaneseq
    %v3638 = vshrl.u32 %v3637, 7
    %v3639 = vsub.s32 %v3636, %v3638
    %v3640 = vrot.slane %v3595, %v3639
    %v3642 = vunpack.c.l.s4 1983009808
    %v3643 = vunpack.c.0.s8 %v3642
    %v3644 = vlaneseq
    %v3645 = vshrl.u32 %v3644, 7
    %v3646 = vsub.s32 %v3643, %v3645
    %v3647 = vrot.slane %v3633, %v3646
    %v3648 = vcombine.high %v3640, %v3640
    %v3649 = vcombine.high %v3647, %v3647
    %3662 = vmatprep.subr.mxu0 0.0
    %3663 = vmatpush1.msra.mxu0 %v2895
    %3664 = vmatprep.subr.mxu0 0.0
    %3665 = vmatpush1.msra.mxu0 %v2896
    %3666 = vmatprep.subr.mxu0 0.0
    %3667 = vmatpush1.msra.mxu0 %v2897
    %3668 = vmatprep.subr.mxu0 0.0
    %3669 = vmatpush1.msra.mxu0 %v2898
    %3670 = vmatprep.subr.mxu0 0.0
    %3671 = vmatpush1.msra.mxu0 %v2899
    %3672 = vmatprep.subr.mxu0 0.0
    %3673 = vmatpush1.msra.mxu0 %v2900
    %3674 = vmatprep.subr.mxu0 0.0
    %3675 = vmatpush1.msra.mxu0 %v2901
    %3676 = vmatprep.subr.mxu0 0.0
    %3677 = vmatpush1.msra.mxu0 %v2902
    %3678 = vmatprep.subr.mxu0 0.0
    %3679 = vmatpush1.msra.mxu0 %v2903
    %3680 = vmatprep.subr.mxu0 0.0
    %3681 = vmatpush1.msra.mxu0 %v2904
    %3682 = vmatprep.subr.mxu0 0.0
    %3683 = vmatpush1.msra.mxu0 %v2905
    %3684 = vmatprep.subr.mxu0 0.0
    %3685 = vmatpush1.msra.mxu0 %v2906
    %3686 = vmatprep.subr.mxu0 0.0
    %3687 = vmatpush1.msra.mxu0 %v2907
    %3688 = vmatprep.subr.mxu0 0.0
    %3689 = vmatpush1.msra.mxu0 %v2908
    %3690 = vmatprep.subr.mxu0 0.0
    %3691 = vmatpush1.msra.mxu0 %v2909
    %3692 = vmatprep.subr.mxu0 0.0
    %3693 = vmatpush1.msra.mxu0 %v2910
    %3694 = vmatprep.subr.mxu0 0.0
    %3695 = vmatpush1.msra.mxu0 %v2911
    %3696 = vmatprep.subr.mxu0 0.0
    %3697 = vmatpush1.msra.mxu0 %v2912
    %3698 = vmatprep.subr.mxu0 0.0
    %3699 = vmatpush1.msra.mxu0 %v2913
    %3700 = vmatprep.subr.mxu0 0.0
    %3701 = vmatpush1.msra.mxu0 %v2914
    %3702 = vmatprep.subr.mxu0 0.0
    %3703 = vmatpush1.msra.mxu0 %v2915
    %3704 = vmatprep.subr.mxu0 0.0
    %3705 = vmatpush1.msra.mxu0 %v2916
    %3706 = vmatprep.subr.mxu0 0.0
    %3707 = vmatpush1.msra.mxu0 %v2917
    %3708 = vmatprep.subr.mxu0 0.0
    %3709 = vmatpush1.msra.mxu0 %v2918
    %3710 = vmatprep.subr.mxu0 0.0
    %3711 = vmatpush1.msra.mxu0 %v2919
    %3712 = vmatprep.subr.mxu0 0.0
    %3713 = vmatpush1.msra.mxu0 %v2920
    %3714 = vmatprep.subr.mxu0 0.0
    %3715 = vmatpush1.msra.mxu0 %v2921
    %3716 = vmatprep.subr.mxu0 0.0
    %3717 = vmatpush1.msra.mxu0 %v2922
    %3718 = vmatprep.subr.mxu0 0.0
    %3719 = vmatpush1.msra.mxu0 %v2923
    %3720 = vmatprep.subr.mxu0 0.0
    %3721 = vmatpush1.msra.mxu0 %v2924
    %3722 = vmatprep.subr.mxu0 0.0
    %3723 = vmatpush1.msra.mxu0 %v2925
    %3724 = vmatprep.subr.mxu0 0.0
    %3725 = vmatpush1.msra.mxu0 %v2926
    %3726 = vmatprep.mubr.f32.mxu0 %v3614
    %3727 = vmatmul.mubr.f32.gmra.mrb[0].mxu0 %v3606
    %v3728 = vpop.f32.mrb[0].mxu0
    %v3729 = vadd.f32 0.0, %v3728
    %v3730 = vpop.f32.mrb[0].mxu0
    %3731 = vdwg.mxu0
    %3732 = vmatprep.subr.mxu0 0.0
    %3733 = vmatpush1.msra.mxu0 %v2927
    %3734 = vmatprep.subr.mxu0 0.0
    %3735 = vmatpush1.msra.mxu0 %v2928
    %3736 = vmatprep.subr.mxu0 0.0
    %3737 = vmatpush1.msra.mxu0 %v2929
    %3738 = vmatprep.subr.mxu0 0.0
    %3739 = vmatpush1.msra.mxu0 %v2930
    %3740 = vmatprep.subr.mxu0 0.0
    %3741 = vmatpush1.msra.mxu0 %v2931
    %3742 = vmatprep.subr.mxu0 0.0
    %3743 = vmatpush1.msra.mxu0 %v2932
    %3744 = vmatprep.subr.mxu0 0.0
    %3745 = vmatpush1.msra.mxu0 %v2933
    %3746 = vmatprep.subr.mxu0 0.0
    %3747 = vmatpush1.msra.mxu0 %v2934
    %3748 = vmatprep.subr.mxu0 0.0
    %3749 = vmatpush1.msra.mxu0 %v2935
    %3750 = vmatprep.subr.mxu0 0.0
    %3751 = vmatpush1.msra.mxu0 %v2936
    %3752 = vmatprep.subr.mxu0 0.0
    %3753 = vmatpush1.msra.mxu0 %v2937
    %3754 = vmatprep.subr.mxu0 0.0
    %3755 = vmatpush1.msra.mxu0 %v2938
    %3756 = vmatprep.subr.mxu0 0.0
    %3757 = vmatpush1.msra.mxu0 %v2939
    %3758 = vmatprep.subr.mxu0 0.0
    %3759 = vmatpush1.msra.mxu0 %v2940
    %3760 = vmatprep.subr.mxu0 0.0
    %3761 = vmatpush1.msra.mxu0 %v2941
    %3762 = vmatprep.subr.mxu0 0.0
    %3763 = vmatpush1.msra.mxu0 %v2942
    %3764 = vmatprep.subr.mxu0 0.0
    %3765 = vmatpush1.msra.mxu0 %v2943
    %3766 = vmatprep.subr.mxu0 0.0
    %3767 = vmatpush1.msra.mxu0 %v2944
    %3768 = vmatprep.subr.mxu0 0.0
    %3769 = vmatpush1.msra.mxu0 %v2945
    %3770 = vmatprep.subr.mxu0 0.0
    %3771 = vmatpush1.msra.mxu0 %v2946
    %3772 = vmatprep.subr.mxu0 0.0
    %3773 = vmatpush1.msra.mxu0 %v2947
    %3774 = vmatprep.subr.mxu0 0.0
    %3775 = vmatpush1.msra.mxu0 %v2948
    %3776 = vmatprep.subr.mxu0 0.0
    %3777 = vmatpush1.msra.mxu0 %v2949
    %3778 = vmatprep.subr.mxu0 0.0
    %3779 = vmatpush1.msra.mxu0 %v2950
    %3780 = vmatprep.subr.mxu0 0.0
    %3781 = vmatpush1.msra.mxu0 %v2951
    %3782 = vmatprep.subr.mxu0 0.0
    %3783 = vmatpush1.msra.mxu0 %v2952
    %3784 = vmatprep.subr.mxu0 0.0
    %3785 = vmatpush1.msra.mxu0 %v2953
    %3786 = vmatprep.subr.mxu0 0.0
    %3787 = vmatpush1.msra.mxu0 %v2954
    %3788 = vmatprep.subr.mxu0 0.0
    %3789 = vmatpush1.msra.mxu0 %v2955
    %3790 = vmatprep.subr.mxu0 0.0
    %3791 = vmatpush1.msra.mxu0 %v2956
    %3792 = vmatprep.subr.mxu0 0.0
    %3793 = vmatpush1.msra.mxu0 %v2957
    %3794 = vmatprep.subr.mxu0 0.0
    %3795 = vmatpush1.msra.mxu0 %v2958
    %3796 = vmatprep.mubr.f32.mxu0 %v3615
    %3797 = vmatmul.mubr.f32.gmra.mrb[0].mxu0 %v3613
    %v3798 = vpop.f32.mrb[0].mxu0
    %v3799 = vadd.f32 %v3729, %v3798
    %v3800 = vpop.f32.mrb[0].mxu0
    %3801 = vdwg.mxu0
    %3802 = vmatprep.subr.mxu0 0.0
    %3803 = vmatpush1.msra.mxu0 %v2959
    %3804 = vmatprep.subr.mxu0 0.0
    %3805 = vmatpush1.msra.mxu0 %v2960
    %3806 = vmatprep.subr.mxu0 0.0
    %3807 = vmatpush1.msra.mxu0 %v2961
    %3808 = vmatprep.subr.mxu0 0.0
    %3809 = vmatpush1.msra.mxu0 %v2962
    %3810 = vmatprep.subr.mxu0 0.0
    %3811 = vmatpush1.msra.mxu0 %v2963
    %3812 = vmatprep.subr.mxu0 0.0
    %3813 = vmatpush1.msra.mxu0 %v2964
    %3814 = vmatprep.subr.mxu0 0.0
    %3815 = vmatpush1.msra.mxu0 %v2965
    %3816 = vmatprep.subr.mxu0 0.0
    %3817 = vmatpush1.msra.mxu0 %v2966
    %3818 = vmatprep.subr.mxu0 0.0
    %3819 = vmatpush1.msra.mxu0 %v2967
    %3820 = vmatprep.subr.mxu0 0.0
    %3821 = vmatpush1.msra.mxu0 %v2968
    %3822 = vmatprep.subr.mxu0 0.0
    %3823 = vmatpush1.msra.mxu0 %v2969
    %3824 = vmatprep.subr.mxu0 0.0
    %3825 = vmatpush1.msra.mxu0 %v2970
    %3826 = vmatprep.subr.mxu0 0.0
    %3827 = vmatpush1.msra.mxu0 %v2971
    %3828 = vmatprep.subr.mxu0 0.0
    %3829 = vmatpush1.msra.mxu0 %v2972
    %3830 = vmatprep.subr.mxu0 0.0
    %3831 = vmatpush1.msra.mxu0 %v2973
    %3832 = vmatprep.subr.mxu0 0.0
    %3833 = vmatpush1.msra.mxu0 %v2974
    %3834 = vmatprep.subr.mxu0 0.0
    %3835 = vmatpush1.msra.mxu0 %v2975
    %3836 = vmatprep.subr.mxu0 0.0
    %3837 = vmatpush1.msra.mxu0 %v2976
    %3838 = vmatprep.subr.mxu0 0.0
    %3839 = vmatpush1.msra.mxu0 %v2977
    %3840 = vmatprep.subr.mxu0 0.0
    %3841 = vmatpush1.msra.mxu0 %v2978
    %3842 = vmatprep.subr.mxu0 0.0
    %3843 = vmatpush1.msra.mxu0 %v2979
    %3844 = vmatprep.subr.mxu0 0.0
    %3845 = vmatpush1.msra.mxu0 %v2980
    %3846 = vmatprep.subr.mxu0 0.0
    %3847 = vmatpush1.msra.mxu0 %v2981
    %3848 = vmatprep.subr.mxu0 0.0
    %3849 = vmatpush1.msra.mxu0 %v2982
    %3850 = vmatprep.subr.mxu0 0.0
    %3851 = vmatpush1.msra.mxu0 %v2983
    %3852 = vmatprep.subr.mxu0 0.0
    %3853 = vmatpush1.msra.mxu0 %v2984
    %3854 = vmatprep.subr.mxu0 0.0
    %3855 = vmatpush1.msra.mxu0 %v2985
    %3856 = vmatprep.subr.mxu0 0.0
    %3857 = vmatpush1.msra.mxu0 %v2986
    %3858 = vmatprep.subr.mxu0 0.0
    %3859 = vmatpush1.msra.mxu0 %v2987
    %3860 = vmatprep.subr.mxu0 0.0
    %3861 = vmatpush1.msra.mxu0 %v2988
    %3862 = vmatprep.subr.mxu0 0.0
    %3863 = vmatpush1.msra.mxu0 %v2989
    %3864 = vmatprep.subr.mxu0 0.0
    %3865 = vmatpush1.msra.mxu0 %v2990
    %3866 = vmatprep.mubr.f32.mxu0 %v3631
    %3867 = vmatmul.mubr.f32.gmra.mrb[0].mxu0 %v3623
    %v3868 = vpop.f32.mrb[0].mxu0
    %v3869 = vadd.f32 %v3799, %v3868
    %v3870 = vpop.f32.mrb[0].mxu0
    %3871 = vdwg.mxu0
    %3872 = vmatprep.subr.mxu0 0.0
    %3873 = vmatpush1.msra.mxu0 %v2991
    %3874 = vmatprep.subr.mxu0 0.0
    %3875 = vmatpush1.msra.mxu0 %v2992
    %3876 = vmatprep.subr.mxu0 0.0
    %3877 = vmatpush1.msra.mxu0 %v2993
    %3878 = vmatprep.subr.mxu0 0.0
    %3879 = vmatpush1.msra.mxu0 %v2994
    %3880 = vmatprep.subr.mxu0 0.0
    %3881 = vmatpush1.msra.mxu0 %v2995
    %3882 = vmatprep.subr.mxu0 0.0
    %3883 = vmatpush1.msra.mxu0 %v2996
    %3884 = vmatprep.subr.mxu0 0.0
    %3885 = vmatpush1.msra.mxu0 %v2997
    %3886 = vmatprep.subr.mxu0 0.0
    %3887 = vmatpush1.msra.mxu0 %v2998
    %3888 = vmatprep.subr.mxu0 0.0
    %3889 = vmatpush1.msra.mxu0 %v2999
    %3890 = vmatprep.subr.mxu0 0.0
    %3891 = vmatpush1.msra.mxu0 %v3000
    %3892 = vmatprep.subr.mxu0 0.0
    %3893 = vmatpush1.msra.mxu0 %v3001
    %3894 = vmatprep.subr.mxu0 0.0
    %3895 = vmatpush1.msra.mxu0 %v3002
    %3896 = vmatprep.subr.mxu0 0.0
    %3897 = vmatpush1.msra.mxu0 %v3003
    %3898 = vmatprep.subr.mxu0 0.0
    %3899 = vmatpush1.msra.mxu0 %v3004
    %3900 = vmatprep.subr.mxu0 0.0
    %3901 = vmatpush1.msra.mxu0 %v3005
    %3902 = vmatprep.subr.mxu0 0.0
    %3903 = vmatpush1.msra.mxu0 %v3006
    %3904 = vmatprep.subr.mxu0 0.0
    %3905 = vmatpush1.msra.mxu0 %v3007
    %3906 = vmatprep.subr.mxu0 0.0
    %3907 = vmatpush1.msra.mxu0 %v3008
    %3908 = vmatprep.subr.mxu0 0.0
    %3909 = vmatpush1.msra.mxu0 %v3009
    %3910 = vmatprep.subr.mxu0 0.0
    %3911 = vmatpush1.msra.mxu0 %v3010
    %3912 = vmatprep.subr.mxu0 0.0
    %3913 = vmatpush1.msra.mxu0 %v3011
    %3914 = vmatprep.subr.mxu0 0.0
    %3915 = vmatpush1.msra.mxu0 %v3012
    %3916 = vmatprep.subr.mxu0 0.0
    %3917 = vmatpush1.msra.mxu0 %v3013
    %3918 = vmatprep.subr.mxu0 0.0
    %3919 = vmatpush1.msra.mxu0 %v3014
    %3920 = vmatprep.subr.mxu0 0.0
    %3921 = vmatpush1.msra.mxu0 %v3015
    %3922 = vmatprep.subr.mxu0 0.0
    %3923 = vmatpush1.msra.mxu0 %v3016
    %3924 = vmatprep.subr.mxu0 0.0
    %3925 = vmatpush1.msra.mxu0 %v3017
    %3926 = vmatprep.subr.mxu0 0.0
    %3927 = vmatpush1.msra.mxu0 %v3018
    %3928 = vmatprep.subr.mxu0 0.0
    %3929 = vmatpush1.msra.mxu0 %v3019
    %3930 = vmatprep.subr.mxu0 0.0
    %3931 = vmatpush1.msra.mxu0 %v3020
    %3932 = vmatprep.subr.mxu0 0.0
    %3933 = vmatpush1.msra.mxu0 %v3021
    %3934 = vmatprep.subr.mxu0 0.0
    %3935 = vmatpush1.msra.mxu0 %v3022
    %3936 = vmatprep.mubr.f32.mxu0 %v3632
    %3937 = vmatmul.mubr.f32.gmra.mrb[0].mxu0 %v3630
    %v3938 = vpop.f32.mrb[0].mxu0
    %v3939 = vadd.f32 %v3869, %v3938
    %v3940 = vpop.f32.mrb[0].mxu0
    %3941 = vdwg.mxu0
    %3942 = vmatprep.subr.mxu0 0.0
    %3943 = vmatpush1.msra.mxu0 %v3023
    %3944 = vmatprep.subr.mxu0 0.0
    %3945 = vmatpush1.msra.mxu0 %v3024
    %3946 = vmatprep.subr.mxu0 0.0
    %3947 = vmatpush1.msra.mxu0 %v3025
    %3948 = vmatprep.subr.mxu0 0.0
    %3949 = vmatpush1.msra.mxu0 %v3026
    %3950 = vmatprep.subr.mxu0 0.0
    %3951 = vmatpush1.msra.mxu0 %v3027
    %3952 = vmatprep.subr.mxu0 0.0
    %3953 = vmatpush1.msra.mxu0 %v3028
    %3954 = vmatprep.subr.mxu0 0.0
    %3955 = vmatpush1.msra.mxu0 %v3029
    %3956 = vmatprep.subr.mxu0 0.0
    %3957 = vmatpush1.msra.mxu0 %v3030
    %3958 = vmatprep.subr.mxu0 0.0
    %3959 = vmatpush1.msra.mxu0 %v3031
    %3960 = vmatprep.subr.mxu0 0.0
    %3961 = vmatpush1.msra.mxu0 %v3032
    %3962 = vmatprep.subr.mxu0 0.0
    %3963 = vmatpush1.msra.mxu0 %v3033
    %3964 = vmatprep.subr.mxu0 0.0
    %3965 = vmatpush1.msra.mxu0 %v3034
    %3966 = vmatprep.subr.mxu0 0.0
    %3967 = vmatpush1.msra.mxu0 %v3035
    %3968 = vmatprep.subr.mxu0 0.0
    %3969 = vmatpush1.msra.mxu0 %v3036
    %3970 = vmatprep.subr.mxu0 0.0
    %3971 = vmatpush1.msra.mxu0 %v3037
    %3972 = vmatprep.subr.mxu0 0.0
    %3973 = vmatpush1.msra.mxu0 %v3038
    %3974 = vmatprep.subr.mxu0 0.0
    %3975 = vmatpush1.msra.mxu0 %v3039
    %3976 = vmatprep.subr.mxu0 0.0
    %3977 = vmatpush1.msra.mxu0 %v3040
    %3978 = vmatprep.subr.mxu0 0.0
    %3979 = vmatpush1.msra.mxu0 %v3041
    %3980 = vmatprep.subr.mxu0 0.0
    %3981 = vmatpush1.msra.mxu0 %v3042
    %3982 = vmatprep.subr.mxu0 0.0
    %3983 = vmatpush1.msra.mxu0 %v3043
    %3984 = vmatprep.subr.mxu0 0.0
    %3985 = vmatpush1.msra.mxu0 %v3044
    %3986 = vmatprep.subr.mxu0 0.0
    %3987 = vmatpush1.msra.mxu0 %v3045
    %3988 = vmatprep.subr.mxu0 0.0
    %3989 = vmatpush1.msra.mxu0 %v3046
    %3990 = vmatprep.subr.mxu0 0.0
    %3991 = vmatpush1.msra.mxu0 %v3047
    %3992 = vmatprep.subr.mxu0 0.0
    %3993 = vmatpush1.msra.mxu0 %v3048
    %3994 = vmatprep.subr.mxu0 0.0
    %3995 = vmatpush1.msra.mxu0 %v3049
    %3996 = vmatprep.subr.mxu0 0.0
    %3997 = vmatpush1.msra.mxu0 %v3050
    %3998 = vmatprep.subr.mxu0 0.0
    %3999 = vmatpush1.msra.mxu0 %v3051
    %4000 = vmatprep.subr.mxu0 0.0
    %4001 = vmatpush1.msra.mxu0 %v3052
    %4002 = vmatprep.subr.mxu0 0.0
    %4003 = vmatpush1.msra.mxu0 %v3053
    %4004 = vmatprep.subr.mxu0 0.0
    %4005 = vmatpush1.msra.mxu0 %v3054
    %4006 = vmatprep.mubr.f32.mxu0 %v3648
    %4007 = vmatmul.mubr.f32.gmra.mrb[0].mxu0 %v3640
    %v4008 = vpop.f32.mrb[0].mxu0
    %v4009 = vadd.f32 %v3939, %v4008
    %v4010 = vpop.f32.mrb[0].mxu0
    %4011 = vdwg.mxu0
    %4012 = vmatprep.subr.mxu0 0.0
    %4013 = vmatpush1.msra.mxu0 %v3055
    %4014 = vmatprep.subr.mxu0 0.0
    %4015 = vmatpush1.msra.mxu0 %v3056
    %4016 = vmatprep.subr.mxu0 0.0
    %4017 = vmatpush1.msra.mxu0 %v3057
    %4018 = vmatprep.subr.mxu0 0.0
    %4019 = vmatpush1.msra.mxu0 %v3058
    %4020 = vmatprep.subr.mxu0 0.0
    %4021 = vmatpush1.msra.mxu0 %v3059
    %4022 = vmatprep.subr.mxu0 0.0
    %4023 = vmatpush1.msra.mxu0 %v3060
    %4024 = vmatprep.subr.mxu0 0.0
    %4025 = vmatpush1.msra.mxu0 %v3061
    %4026 = vmatprep.subr.mxu0 0.0
    %4027 = vmatpush1.msra.mxu0 %v3062
    %4028 = vmatprep.subr.mxu0 0.0
    %4029 = vmatpush1.msra.mxu0 %v3063
    %4030 = vmatprep.subr.mxu0 0.0
    %4031 = vmatpush1.msra.mxu0 %v3064
    %4032 = vmatprep.subr.mxu0 0.0
    %4033 = vmatpush1.msra.mxu0 %v3065
    %4034 = vmatprep.subr.mxu0 0.0
    %4035 = vmatpush1.msra.mxu0 %v3066
    %4036 = vmatprep.subr.mxu0 0.0
    %4037 = vmatpush1.msra.mxu0 %v3067
    %4038 = vmatprep.subr.mxu0 0.0
    %4039 = vmatpush1.msra.mxu0 %v3068
    %4040 = vmatprep.subr.mxu0 0.0
    %4041 = vmatpush1.msra.mxu0 %v3069
    %4042 = vmatprep.subr.mxu0 0.0
    %4043 = vmatpush1.msra.mxu0 %v3070
    %4044 = vmatprep.subr.mxu0 0.0
    %4045 = vmatpush1.msra.mxu0 %v3071
    %4046 = vmatprep.subr.mxu0 0.0
    %4047 = vmatpush1.msra.mxu0 %v3072
    %4048 = vmatprep.subr.mxu0 0.0
    %4049 = vmatpush1.msra.mxu0 %v3073
    %4050 = vmatprep.subr.mxu0 0.0
    %4051 = vmatpush1.msra.mxu0 %v3074
    %4052 = vmatprep.subr.mxu0 0.0
    %4053 = vmatpush1.msra.mxu0 %v3075
    %4054 = vmatprep.subr.mxu0 0.0
    %4055 = vmatpush1.msra.mxu0 %v3076
    %4056 = vmatprep.subr.mxu0 0.0
    %4057 = vmatpush1.msra.mxu0 %v3077
    %4058 = vmatprep.subr.mxu0 0.0
    %4059 = vmatpush1.msra.mxu0 %v3078
    %4060 = vmatprep.subr.mxu0 0.0
    %4061 = vmatpush1.msra.mxu0 %v3079
    %4062 = vmatprep.subr.mxu0 0.0
    %4063 = vmatpush1.msra.mxu0 %v3080
    %4064 = vmatprep.subr.mxu0 0.0
    %4065 = vmatpush1.msra.mxu0 %v3081
    %4066 = vmatprep.subr.mxu0 0.0
    %4067 = vmatpush1.msra.mxu0 %v3082
    %4068 = vmatprep.subr.mxu0 0.0
    %4069 = vmatpush1.msra.mxu0 %v3083
    %4070 = vmatprep.subr.mxu0 0.0
    %4071 = vmatpush1.msra.mxu0 %v3084
    %4072 = vmatprep.subr.mxu0 0.0
    %4073 = vmatpush1.msra.mxu0 %v3085
    %4074 = vmatprep.subr.mxu0 0.0
    %4075 = vmatpush1.msra.mxu0 %v3086
    %4076 = vmatprep.mubr.f32.mxu0 %v3649
    %4077 = vmatmul.mubr.f32.gmra.mrb[0].mxu0 %v3647
    %v4078 = vpop.f32.mrb[0].mxu0
    %v4079 = vadd.f32 %v4009, %v4078
    %v4080 = vpop.f32.mrb[0].mxu0
    %4081 = vdwg.mxu0
    %s4082 = scalar_lea.vmem [#allocation10], 128
    %v4083 = vld [vmem:[%s4082] sm:$0xff]
    %v4084 = vld [vmem:[%s4082 + $0x8] sm:$0xff]
    %v4085 = vld [vmem:[%s4082 + $0x10] sm:$0xff]
    %v4086 = vld [vmem:[%s4082 + $0x18] sm:$0xff]
    %v4087 = vld [vmem:[%s4082 + $0x20] sm:$0xff]
    %v4088 = vld [vmem:[%s4082 + $0x28] sm:$0xff]
    %v4089 = vld [vmem:[%s4082 + $0x30] sm:$0xff]
    %v4090 = vld [vmem:[%s4082 + $0x38] sm:$0xff]
    %v4091 = vld [vmem:[%s4082 + $0x40] sm:$0xff]
    %v4092 = vld [vmem:[%s4082 + $0x48] sm:$0xff]
    %v4093 = vld [vmem:[%s4082 + $0x50] sm:$0xff]
    %v4094 = vld [vmem:[%s4082 + $0x58] sm:$0xff]
    %v4095 = vld [vmem:[%s4082 + $0x60] sm:$0xff]
    %v4096 = vld [vmem:[%s4082 + $0x68] sm:$0xff]
    %v4097 = vld [vmem:[%s4082 + $0x70] sm:$0xff]
    %v4098 = vld [vmem:[%s4082 + $0x78] sm:$0xff]
    %4099 = vmatprep.subr.mxu0 0.0
    %4100 = vmatpush1.msra.mxu0 %v4083
    %4101 = vmatprep.subr.mxu0 0.0
    %4102 = vmatpush1.msra.mxu0 %v4084
    %4103 = vmatprep.subr.mxu0 0.0
    %4104 = vmatpush1.msra.mxu0 %v4085
    %4105 = vmatprep.subr.mxu0 0.0
    %4106 = vmatpush1.msra.mxu0 %v4086
    %4107 = vmatprep.subr.mxu0 0.0
    %4108 = vmatpush1.msra.mxu0 %v4087
    %4109 = vmatprep.subr.mxu0 0.0
    %4110 = vmatpush1.msra.mxu0 %v4088
    %4111 = vmatprep.subr.mxu0 0.0
    %4112 = vmatpush1.msra.mxu0 %v4089
    %4113 = vmatprep.subr.mxu0 0.0
    %4114 = vmatpush1.msra.mxu0 %v4090
    %4115 = vmatprep.subr.mxu0 0.0
    %4116 = vmatpush1.msra.mxu0 %v4091
    %4117 = vmatprep.subr.mxu0 0.0
    %4118 = vmatpush1.msra.mxu0 %v4092
    %4119 = vmatprep.subr.mxu0 0.0
    %4120 = vmatpush1.msra.mxu0 %v4093
    %4121 = vmatprep.subr.mxu0 0.0
    %4122 = vmatpush1.msra.mxu0 %v4094
    %4123 = vmatprep.subr.mxu0 0.0
    %4124 = vmatpush1.msra.mxu0 %v4095
    %4125 = vmatprep.subr.mxu0 0.0
    %4126 = vmatpush1.msra.mxu0 %v4096
    %4127 = vmatprep.subr.mxu0 0.0
    %4128 = vmatpush1.msra.mxu0 %v4097
    %4129 = vmatprep.subr.mxu0 0.0
    %4130 = vmatpush1.msra.mxu0 %v4098
    %4131 = vmatprep.subr.mxu0 0.0
    %4132 = vmatpush1.msra.mxu0 0.0
    %4133 = vmatprep.subr.mxu0 0.0
    %4134 = vmatpush1.msra.mxu0 0.0
    %4135 = vmatprep.subr.mxu0 0.0
    %4136 = vmatpush1.msra.mxu0 0.0
    %4137 = vmatprep.subr.mxu0 0.0
    %4138 = vmatpush1.msra.mxu0 0.0
    %4139 = vmatprep.subr.mxu0 0.0
    %4140 = vmatpush1.msra.mxu0 0.0
    %4141 = vmatprep.subr.mxu0 0.0
    %4142 = vmatpush1.msra.mxu0 0.0
    %4143 = vmatprep.subr.mxu0 0.0
    %4144 = vmatpush1.msra.mxu0 0.0
    %4145 = vmatprep.subr.mxu0 0.0
    %4146 = vmatpush1.msra.mxu0 0.0
    %4147 = vmatprep.subr.mxu0 0.0
    %4148 = vmatpush1.msra.mxu0 0.0
    %4149 = vmatprep.subr.mxu0 0.0
    %4150 = vmatpush1.msra.mxu0 0.0
    %4151 = vmatprep.subr.mxu0 0.0
    %4152 = vmatpush1.msra.mxu0 0.0
    %4153 = vmatprep.subr.mxu0 0.0
    %4154 = vmatpush1.msra.mxu0 0.0
    %4155 = vmatprep.subr.mxu0 0.0
    %4156 = vmatpush1.msra.mxu0 0.0
    %4157 = vmatprep.subr.mxu0 0.0
    %4158 = vmatpush1.msra.mxu0 0.0
    %4159 = vmatprep.subr.mxu0 0.0
    %4160 = vmatpush1.msra.mxu0 0.0
    %4161 = vmatprep.subr.mxu0 0.0
    %4162 = vmatpush1.msra.mxu0 0.0
    %4163 = vmatprep.mubr.f32.mxu0 0.0
    %4164 = vmatmul.mubr.f32.gmra.mrb[0].mxu0 %v4079
    %v4165 = vpop.f32.mrb[0].mxu0
    %v4166 = vadd.f32 0.0, %v4165
    %v4167 = vpop.f32.mrb[0].mxu0
    %4168 = vdwg.mxu0
    %4169 = vmatprep.subr.mxu0 0.0
    %4170 = vmatpush1.msra.mxu0 %v3576
    %4171 = vmatprep.subr.mxu0 0.0
    %4172 = vmatpush1.msra.mxu0 %v3577
    %4173 = vmatprep.subr.mxu0 0.0
    %4174 = vmatpush1.msra.mxu0 %v3578
    %4175 = vmatprep.subr.mxu0 0.0
    %4176 = vmatpush1.msra.mxu0 %v3579
    %4177 = vmatprep.subr.mxu0 0.0
    %4178 = vmatpush1.msra.mxu0 %v3580
    %4179 = vmatprep.subr.mxu0 0.0
    %4180 = vmatpush1.msra.mxu0 %v3581
    %4181 = vmatprep.subr.mxu0 0.0
    %4182 = vmatpush1.msra.mxu0 %v3582
    %4183 = vmatprep.subr.mxu0 0.0
    %4184 = vmatpush1.msra.mxu0 %v3583
    %4185 = vmatprep.subr.mxu0 0.0
    %4186 = vmatpush1.msra.mxu0 %v3584
    %4187 = vmatprep.subr.mxu0 0.0
    %4188 = vmatpush1.msra.mxu0 %v3585
    %4189 = vmatprep.subr.mxu0 0.0
    %4190 = vmatpush1.msra.mxu0 %v3586
    %4191 = vmatprep.subr.mxu0 0.0
    %4192 = vmatpush1.msra.mxu0 %v3587
    %4193 = vmatprep.subr.mxu0 0.0
    %4194 = vmatpush1.msra.mxu0 %v3588
    %4195 = vmatprep.subr.mxu0 0.0
    %4196 = vmatpush1.msra.mxu0 %v3589
    %4197 = vmatprep.subr.mxu0 0.0
    %4198 = vmatpush1.msra.mxu0 %v3590
    %4199 = vmatprep.subr.mxu0 0.0
    %4200 = vmatpush1.msra.mxu0 %v3591
    %4201 = vmatprep.subr.mxu0 0.0
    %4202 = vmatpush1.msra.mxu0 0.0
    %4203 = vmatprep.subr.mxu0 0.0
    %4204 = vmatpush1.msra.mxu0 0.0
    %4205 = vmatprep.subr.mxu0 0.0
    %4206 = vmatpush1.msra.mxu0 0.0
    %4207 = vmatprep.subr.mxu0 0.0
    %4208 = vmatpush1.msra.mxu0 0.0
    %4209 = vmatprep.subr.mxu0 0.0
    %4210 = vmatpush1.msra.mxu0 0.0
    %4211 = vmatprep.subr.mxu0 0.0
    %4212 = vmatpush1.msra.mxu0 0.0
    %4213 = vmatprep.subr.mxu0 0.0
    %4214 = vmatpush1.msra.mxu0 0.0
    %4215 = vmatprep.subr.mxu0 0.0
    %4216 = vmatpush1.msra.mxu0 0.0
    %4217 = vmatprep.subr.mxu0 0.0
    %4218 = vmatpush1.msra.mxu0 0.0
    %4219 = vmatprep.subr.mxu0 0.0
    %4220 = vmatpush1.msra.mxu0 0.0
    %4221 = vmatprep.subr.mxu0 0.0
    %4222 = vmatpush1.msra.mxu0 0.0
    %4223 = vmatprep.subr.mxu0 0.0
    %4224 = vmatpush1.msra.mxu0 0.0
    %4225 = vmatprep.subr.mxu0 0.0
    %4226 = vmatpush1.msra.mxu0 0.0
    %4227 = vmatprep.subr.mxu0 0.0
    %4228 = vmatpush1.msra.mxu0 0.0
    %4229 = vmatprep.subr.mxu0 0.0
    %4230 = vmatpush1.msra.mxu0 0.0
    %4231 = vmatprep.subr.mxu0 0.0
    %4232 = vmatpush1.msra.mxu0 0.0
    %4233 = vmatprep.mubr.f32.mxu0 0.0
    %4234 = vmatmul.mubr.f32.gmra.mrb[0].mxu0 %v3573
    %v4235 = vpop.f32.mrb[0].mxu0
    %v4236 = vadd.f32 %v4166, %v4235
    %v4237 = vpop.f32.mrb[0].mxu0
    %4238 = vdwg.mxu0
    %s4239 = scalar_lea.vmem [#allocation8], 48
    %v4240 = vld [vmem:[%s4239] sm:$0xff]
    %v4241 = vld [vmem:[%s4239 + $0x8] sm:$0xff]
    %v4242 = vld [vmem:[%s4239 + $0x10] sm:$0xff]
    %v4246 = vcombine.high %v4240, %v4240
    %v4248 = vunpack.c.l.s4 1983009808
    %v4249 = vunpack.c.0.s8 %v4248
    %v4250 = vlaneseq
    %v4251 = vshrl.u32 %v4250, 7
    %v4252 = vsub.s32 %v4249, %v4251
    %v4253 = vrot.slane %v4240, %v4252
    %v4255 = vunpack.c.l.s4 1983009808
    %v4256 = vunpack.c.0.s8 %v4255
    %v4257 = vlaneseq
    %v4258 = vshrl.u32 %v4257, 7
    %v4259 = vsub.s32 %v4256, %v4258
    %v4260 = vrot.slane %v4246, %v4259
    %v4261 = vcombine.high %v4253, %v4253
    %v4262 = vcombine.high %v4260, %v4260
    %v4263 = vcombine.high %v4241, %v4241
    %v4265 = vunpack.c.l.s4 1983009808
    %v4266 = vunpack.c.0.s8 %v4265
    %v4267 = vlaneseq
    %v4268 = vshrl.u32 %v4267, 7
    %v4269 = vsub.s32 %v4266, %v4268
    %v4270 = vrot.slane %v4241, %v4269
    %v4272 = vunpack.c.l.s4 1983009808
    %v4273 = vunpack.c.0.s8 %v4272
    %v4274 = vlaneseq
    %v4275 = vshrl.u32 %v4274, 7
    %v4276 = vsub.s32 %v4273, %v4275
    %v4277 = vrot.slane %v4263, %v4276
    %v4278 = vcombine.high %v4270, %v4270
    %v4279 = vcombine.high %v4277, %v4277
    %v4280 = vcombine.high %v4242, %v4242
    %v4282 = vunpack.c.l.s4 1983009808
    %v4283 = vunpack.c.0.s8 %v4282
    %v4284 = vlaneseq
    %v4285 = vshrl.u32 %v4284, 7
    %v4286 = vsub.s32 %v4283, %v4285
    %v4287 = vrot.slane %v4242, %v4286
    %v4289 = vunpack.c.l.s4 1983009808
    %v4290 = vunpack.c.0.s8 %v4289
    %v4291 = vlaneseq
    %v4292 = vshrl.u32 %v4291, 7
    %v4293 = vsub.s32 %v4290, %v4292
    %v4294 = vrot.slane %v4280, %v4293
    %v4295 = vcombine.high %v4287, %v4287
    %v4296 = vcombine.high %v4294, %v4294
    %4309 = vmatprep.subr.mxu0 0.0
    %4310 = vmatpush1.msra.mxu0 %v2895
    %4311 = vmatprep.subr.mxu0 0.0
    %4312 = vmatpush1.msra.mxu0 %v2896
    %4313 = vmatprep.subr.mxu0 0.0
    %4314 = vmatpush1.msra.mxu0 %v2897
    %4315 = vmatprep.subr.mxu0 0.0
    %4316 = vmatpush1.msra.mxu0 %v2898
    %4317 = vmatprep.subr.mxu0 0.0
    %4318 = vmatpush1.msra.mxu0 %v2899
    %4319 = vmatprep.subr.mxu0 0.0
    %4320 = vmatpush1.msra.mxu0 %v2900
    %4321 = vmatprep.subr.mxu0 0.0
    %4322 = vmatpush1.msra.mxu0 %v2901
    %4323 = vmatprep.subr.mxu0 0.0
    %4324 = vmatpush1.msra.mxu0 %v2902
    %4325 = vmatprep.subr.mxu0 0.0
    %4326 = vmatpush1.msra.mxu0 %v2903
    %4327 = vmatprep.subr.mxu0 0.0
    %4328 = vmatpush1.msra.mxu0 %v2904
    %4329 = vmatprep.subr.mxu0 0.0
    %4330 = vmatpush1.msra.mxu0 %v2905
    %4331 = vmatprep.subr.mxu0 0.0
    %4332 = vmatpush1.msra.mxu0 %v2906
    %4333 = vmatprep.subr.mxu0 0.0
    %4334 = vmatpush1.msra.mxu0 %v2907
    %4335 = vmatprep.subr.mxu0 0.0
    %4336 = vmatpush1.msra.mxu0 %v2908
    %4337 = vmatprep.subr.mxu0 0.0
    %4338 = vmatpush1.msra.mxu0 %v2909
    %4339 = vmatprep.subr.mxu0 0.0
    %4340 = vmatpush1.msra.mxu0 %v2910
    %4341 = vmatprep.subr.mxu0 0.0
    %4342 = vmatpush1.msra.mxu0 %v2911
    %4343 = vmatprep.subr.mxu0 0.0
    %4344 = vmatpush1.msra.mxu0 %v2912
    %4345 = vmatprep.subr.mxu0 0.0
    %4346 = vmatpush1.msra.mxu0 %v2913
    %4347 = vmatprep.subr.mxu0 0.0
    %4348 = vmatpush1.msra.mxu0 %v2914
    %4349 = vmatprep.subr.mxu0 0.0
    %4350 = vmatpush1.msra.mxu0 %v2915
    %4351 = vmatprep.subr.mxu0 0.0
    %4352 = vmatpush1.msra.mxu0 %v2916
    %4353 = vmatprep.subr.mxu0 0.0
    %4354 = vmatpush1.msra.mxu0 %v2917
    %4355 = vmatprep.subr.mxu0 0.0
    %4356 = vmatpush1.msra.mxu0 %v2918
    %4357 = vmatprep.subr.mxu0 0.0
    %4358 = vmatpush1.msra.mxu0 %v2919
    %4359 = vmatprep.subr.mxu0 0.0
    %4360 = vmatpush1.msra.mxu0 %v2920
    %4361 = vmatprep.subr.mxu0 0.0
    %4362 = vmatpush1.msra.mxu0 %v2921
    %4363 = vmatprep.subr.mxu0 0.0
    %4364 = vmatpush1.msra.mxu0 %v2922
    %4365 = vmatprep.subr.mxu0 0.0
    %4366 = vmatpush1.msra.mxu0 %v2923
    %4367 = vmatprep.subr.mxu0 0.0
    %4368 = vmatpush1.msra.mxu0 %v2924
    %4369 = vmatprep.subr.mxu0 0.0
    %4370 = vmatpush1.msra.mxu0 %v2925
    %4371 = vmatprep.subr.mxu0 0.0
    %4372 = vmatpush1.msra.mxu0 %v2926
    %4373 = vmatprep.mubr.f32.mxu0 %v4261
    %4374 = vmatmul.mubr.f32.gmra.mrb[0].mxu0 %v4253
    %v4375 = vpop.f32.mrb[0].mxu0
    %v4376 = vadd.f32 0.0, %v4375
    %v4377 = vpop.f32.mrb[0].mxu0
    %4378 = vdwg.mxu0
    %4379 = vmatprep.subr.mxu0 0.0
    %4380 = vmatpush1.msra.mxu0 %v2927
    %4381 = vmatprep.subr.mxu0 0.0
    %4382 = vmatpush1.msra.mxu0 %v2928
    %4383 = vmatprep.subr.mxu0 0.0
    %4384 = vmatpush1.msra.mxu0 %v2929
    %4385 = vmatprep.subr.mxu0 0.0
    %4386 = vmatpush1.msra.mxu0 %v2930
    %4387 = vmatprep.subr.mxu0 0.0
    %4388 = vmatpush1.msra.mxu0 %v2931
    %4389 = vmatprep.subr.mxu0 0.0
    %4390 = vmatpush1.msra.mxu0 %v2932
    %4391 = vmatprep.subr.mxu0 0.0
    %4392 = vmatpush1.msra.mxu0 %v2933
    %4393 = vmatprep.subr.mxu0 0.0
    %4394 = vmatpush1.msra.mxu0 %v2934
    %4395 = vmatprep.subr.mxu0 0.0
    %4396 = vmatpush1.msra.mxu0 %v2935
    %4397 = vmatprep.subr.mxu0 0.0
    %4398 = vmatpush1.msra.mxu0 %v2936
    %4399 = vmatprep.subr.mxu0 0.0
    %4400 = vmatpush1.msra.mxu0 %v2937
    %4401 = vmatprep.subr.mxu0 0.0
    %4402 = vmatpush1.msra.mxu0 %v2938
    %4403 = vmatprep.subr.mxu0 0.0
    %4404 = vmatpush1.msra.mxu0 %v2939
    %4405 = vmatprep.subr.mxu0 0.0
    %4406 = vmatpush1.msra.mxu0 %v2940
    %4407 = vmatprep.subr.mxu0 0.0
    %4408 = vmatpush1.msra.mxu0 %v2941
    %4409 = vmatprep.subr.mxu0 0.0
    %4410 = vmatpush1.msra.mxu0 %v2942
    %4411 = vmatprep.subr.mxu0 0.0
    %4412 = vmatpush1.msra.mxu0 %v2943
    %4413 = vmatprep.subr.mxu0 0.0
    %4414 = vmatpush1.msra.mxu0 %v2944
    %4415 = vmatprep.subr.mxu0 0.0
    %4416 = vmatpush1.msra.mxu0 %v2945
    %4417 = vmatprep.subr.mxu0 0.0
    %4418 = vmatpush1.msra.mxu0 %v2946
    %4419 = vmatprep.subr.mxu0 0.0
    %4420 = vmatpush1.msra.mxu0 %v2947
    %4421 = vmatprep.subr.mxu0 0.0
    %4422 = vmatpush1.msra.mxu0 %v2948
    %4423 = vmatprep.subr.mxu0 0.0
    %4424 = vmatpush1.msra.mxu0 %v2949
    %4425 = vmatprep.subr.mxu0 0.0
    %4426 = vmatpush1.msra.mxu0 %v2950
    %4427 = vmatprep.subr.mxu0 0.0
    %4428 = vmatpush1.msra.mxu0 %v2951
    %4429 = vmatprep.subr.mxu0 0.0
    %4430 = vmatpush1.msra.mxu0 %v2952
    %4431 = vmatprep.subr.mxu0 0.0
    %4432 = vmatpush1.msra.mxu0 %v2953
    %4433 = vmatprep.subr.mxu0 0.0
    %4434 = vmatpush1.msra.mxu0 %v2954
    %4435 = vmatprep.subr.mxu0 0.0
    %4436 = vmatpush1.msra.mxu0 %v2955
    %4437 = vmatprep.subr.mxu0 0.0
    %4438 = vmatpush1.msra.mxu0 %v2956
    %4439 = vmatprep.subr.mxu0 0.0
    %4440 = vmatpush1.msra.mxu0 %v2957
    %4441 = vmatprep.subr.mxu0 0.0
    %4442 = vmatpush1.msra.mxu0 %v2958
    %4443 = vmatprep.mubr.f32.mxu0 %v4262
    %4444 = vmatmul.mubr.f32.gmra.mrb[0].mxu0 %v4260
    %v4445 = vpop.f32.mrb[0].mxu0
    %v4446 = vadd.f32 %v4376, %v4445
    %v4447 = vpop.f32.mrb[0].mxu0
    %4448 = vdwg.mxu0
    %4449 = vmatprep.subr.mxu0 0.0
    %4450 = vmatpush1.msra.mxu0 %v2959
    %4451 = vmatprep.subr.mxu0 0.0
    %4452 = vmatpush1.msra.mxu0 %v2960
    %4453 = vmatprep.subr.mxu0 0.0
    %4454 = vmatpush1.msra.mxu0 %v2961
    %4455 = vmatprep.subr.mxu0 0.0
    %4456 = vmatpush1.msra.mxu0 %v2962
    %4457 = vmatprep.subr.mxu0 0.0
    %4458 = vmatpush1.msra.mxu0 %v2963
    %4459 = vmatprep.subr.mxu0 0.0
    %4460 = vmatpush1.msra.mxu0 %v2964
    %4461 = vmatprep.subr.mxu0 0.0
    %4462 = vmatpush1.msra.mxu0 %v2965
    %4463 = vmatprep.subr.mxu0 0.0
    %4464 = vmatpush1.msra.mxu0 %v2966
    %4465 = vmatprep.subr.mxu0 0.0
    %4466 = vmatpush1.msra.mxu0 %v2967
    %4467 = vmatprep.subr.mxu0 0.0
    %4468 = vmatpush1.msra.mxu0 %v2968
    %4469 = vmatprep.subr.mxu0 0.0
    %4470 = vmatpush1.msra.mxu0 %v2969
    %4471 = vmatprep.subr.mxu0 0.0
    %4472 = vmatpush1.msra.mxu0 %v2970
    %4473 = vmatprep.subr.mxu0 0.0
    %4474 = vmatpush1.msra.mxu0 %v2971
    %4475 = vmatprep.subr.mxu0 0.0
    %4476 = vmatpush1.msra.mxu0 %v2972
    %4477 = vmatprep.subr.mxu0 0.0
    %4478 = vmatpush1.msra.mxu0 %v2973
    %4479 = vmatprep.subr.mxu0 0.0
    %4480 = vmatpush1.msra.mxu0 %v2974
    %4481 = vmatprep.subr.mxu0 0.0
    %4482 = vmatpush1.msra.mxu0 %v2975
    %4483 = vmatprep.subr.mxu0 0.0
    %4484 = vmatpush1.msra.mxu0 %v2976
    %4485 = vmatprep.subr.mxu0 0.0
    %4486 = vmatpush1.msra.mxu0 %v2977
    %4487 = vmatprep.subr.mxu0 0.0
    %4488 = vmatpush1.msra.mxu0 %v2978
    %4489 = vmatprep.subr.mxu0 0.0
    %4490 = vmatpush1.msra.mxu0 %v2979
    %4491 = vmatprep.subr.mxu0 0.0
    %4492 = vmatpush1.msra.mxu0 %v2980
    %4493 = vmatprep.subr.mxu0 0.0
    %4494 = vmatpush1.msra.mxu0 %v2981
    %4495 = vmatprep.subr.mxu0 0.0
    %4496 = vmatpush1.msra.mxu0 %v2982
    %4497 = vmatprep.subr.mxu0 0.0
    %4498 = vmatpush1.msra.mxu0 %v2983
    %4499 = vmatprep.subr.mxu0 0.0
    %4500 = vmatpush1.msra.mxu0 %v2984
    %4501 = vmatprep.subr.mxu0 0.0
    %4502 = vmatpush1.msra.mxu0 %v2985
    %4503 = vmatprep.subr.mxu0 0.0
    %4504 = vmatpush1.msra.mxu0 %v2986
    %4505 = vmatprep.subr.mxu0 0.0
    %4506 = vmatpush1.msra.mxu0 %v2987
    %4507 = vmatprep.subr.mxu0 0.0
    %4508 = vmatpush1.msra.mxu0 %v2988
    %4509 = vmatprep.subr.mxu0 0.0
    %4510 = vmatpush1.msra.mxu0 %v2989
    %4511 = vmatprep.subr.mxu0 0.0
    %4512 = vmatpush1.msra.mxu0 %v2990
    %4513 = vmatprep.mubr.f32.mxu0 %v4278
    %4514 = vmatmul.mubr.f32.gmra.mrb[0].mxu0 %v4270
    %v4515 = vpop.f32.mrb[0].mxu0
    %v4516 = vadd.f32 %v4446, %v4515
    %v4517 = vpop.f32.mrb[0].mxu0
    %4518 = vdwg.mxu0
    %4519 = vmatprep.subr.mxu0 0.0
    %4520 = vmatpush1.msra.mxu0 %v2991
    %4521 = vmatprep.subr.mxu0 0.0
    %4522 = vmatpush1.msra.mxu0 %v2992
    %4523 = vmatprep.subr.mxu0 0.0
    %4524 = vmatpush1.msra.mxu0 %v2993
    %4525 = vmatprep.subr.mxu0 0.0
    %4526 = vmatpush1.msra.mxu0 %v2994
    %4527 = vmatprep.subr.mxu0 0.0
    %4528 = vmatpush1.msra.mxu0 %v2995
    %4529 = vmatprep.subr.mxu0 0.0
    %4530 = vmatpush1.msra.mxu0 %v2996
    %4531 = vmatprep.subr.mxu0 0.0
    %4532 = vmatpush1.msra.mxu0 %v2997
    %4533 = vmatprep.subr.mxu0 0.0
    %4534 = vmatpush1.msra.mxu0 %v2998
    %4535 = vmatprep.subr.mxu0 0.0
    %4536 = vmatpush1.msra.mxu0 %v2999
    %4537 = vmatprep.subr.mxu0 0.0
    %4538 = vmatpush1.msra.mxu0 %v3000
    %4539 = vmatprep.subr.mxu0 0.0
    %4540 = vmatpush1.msra.mxu0 %v3001
    %4541 = vmatprep.subr.mxu0 0.0
    %4542 = vmatpush1.msra.mxu0 %v3002
    %4543 = vmatprep.subr.mxu0 0.0
    %4544 = vmatpush1.msra.mxu0 %v3003
    %4545 = vmatprep.subr.mxu0 0.0
    %4546 = vmatpush1.msra.mxu0 %v3004
    %4547 = vmatprep.subr.mxu0 0.0
    %4548 = vmatpush1.msra.mxu0 %v3005
    %4549 = vmatprep.subr.mxu0 0.0
    %4550 = vmatpush1.msra.mxu0 %v3006
    %4551 = vmatprep.subr.mxu0 0.0
    %4552 = vmatpush1.msra.mxu0 %v3007
    %4553 = vmatprep.subr.mxu0 0.0
    %4554 = vmatpush1.msra.mxu0 %v3008
    %4555 = vmatprep.subr.mxu0 0.0
    %4556 = vmatpush1.msra.mxu0 %v3009
    %4557 = vmatprep.subr.mxu0 0.0
    %4558 = vmatpush1.msra.mxu0 %v3010
    %4559 = vmatprep.subr.mxu0 0.0
    %4560 = vmatpush1.msra.mxu0 %v3011
    %4561 = vmatprep.subr.mxu0 0.0
    %4562 = vmatpush1.msra.mxu0 %v3012
    %4563 = vmatprep.subr.mxu0 0.0
    %4564 = vmatpush1.msra.mxu0 %v3013
    %4565 = vmatprep.subr.mxu0 0.0
    %4566 = vmatpush1.msra.mxu0 %v3014
    %4567 = vmatprep.subr.mxu0 0.0
    %4568 = vmatpush1.msra.mxu0 %v3015
    %4569 = vmatprep.subr.mxu0 0.0
    %4570 = vmatpush1.msra.mxu0 %v3016
    %4571 = vmatprep.subr.mxu0 0.0
    %4572 = vmatpush1.msra.mxu0 %v3017
    %4573 = vmatprep.subr.mxu0 0.0
    %4574 = vmatpush1.msra.mxu0 %v3018
    %4575 = vmatprep.subr.mxu0 0.0
    %4576 = vmatpush1.msra.mxu0 %v3019
    %4577 = vmatprep.subr.mxu0 0.0
    %4578 = vmatpush1.msra.mxu0 %v3020
    %4579 = vmatprep.subr.mxu0 0.0
    %4580 = vmatpush1.msra.mxu0 %v3021
    %4581 = vmatprep.subr.mxu0 0.0
    %4582 = vmatpush1.msra.mxu0 %v3022
    %4583 = vmatprep.mubr.f32.mxu0 %v4279
    %4584 = vmatmul.mubr.f32.gmra.mrb[0].mxu0 %v4277
    %v4585 = vpop.f32.mrb[0].mxu0
    %v4586 = vadd.f32 %v4516, %v4585
    %v4587 = vpop.f32.mrb[0].mxu0
    %4588 = vdwg.mxu0
    %4589 = vmatprep.subr.mxu0 0.0
    %4590 = vmatpush1.msra.mxu0 %v3023
    %4591 = vmatprep.subr.mxu0 0.0
    %4592 = vmatpush1.msra.mxu0 %v3024
    %4593 = vmatprep.subr.mxu0 0.0
    %4594 = vmatpush1.msra.mxu0 %v3025
    %4595 = vmatprep.subr.mxu0 0.0
    %4596 = vmatpush1.msra.mxu0 %v3026
    %4597 = vmatprep.subr.mxu0 0.0
    %4598 = vmatpush1.msra.mxu0 %v3027
    %4599 = vmatprep.subr.mxu0 0.0
    %4600 = vmatpush1.msra.mxu0 %v3028
    %4601 = vmatprep.subr.mxu0 0.0
    %4602 = vmatpush1.msra.mxu0 %v3029
    %4603 = vmatprep.subr.mxu0 0.0
    %4604 = vmatpush1.msra.mxu0 %v3030
    %4605 = vmatprep.subr.mxu0 0.0
    %4606 = vmatpush1.msra.mxu0 %v3031
    %4607 = vmatprep.subr.mxu0 0.0
    %4608 = vmatpush1.msra.mxu0 %v3032
    %4609 = vmatprep.subr.mxu0 0.0
    %4610 = vmatpush1.msra.mxu0 %v3033
    %4611 = vmatprep.subr.mxu0 0.0
    %4612 = vmatpush1.msra.mxu0 %v3034
    %4613 = vmatprep.subr.mxu0 0.0
    %4614 = vmatpush1.msra.mxu0 %v3035
    %4615 = vmatprep.subr.mxu0 0.0
    %4616 = vmatpush1.msra.mxu0 %v3036
    %4617 = vmatprep.subr.mxu0 0.0
    %4618 = vmatpush1.msra.mxu0 %v3037
    %4619 = vmatprep.subr.mxu0 0.0
    %4620 = vmatpush1.msra.mxu0 %v3038
    %4621 = vmatprep.subr.mxu0 0.0
    %4622 = vmatpush1.msra.mxu0 %v3039
    %4623 = vmatprep.subr.mxu0 0.0
    %4624 = vmatpush1.msra.mxu0 %v3040
    %4625 = vmatprep.subr.mxu0 0.0
    %4626 = vmatpush1.msra.mxu0 %v3041
    %4627 = vmatprep.subr.mxu0 0.0
    %4628 = vmatpush1.msra.mxu0 %v3042
    %4629 = vmatprep.subr.mxu0 0.0
    %4630 = vmatpush1.msra.mxu0 %v3043
    %4631 = vmatprep.subr.mxu0 0.0
    %4632 = vmatpush1.msra.mxu0 %v3044
    %4633 = vmatprep.subr.mxu0 0.0
    %4634 = vmatpush1.msra.mxu0 %v3045
    %4635 = vmatprep.subr.mxu0 0.0
    %4636 = vmatpush1.msra.mxu0 %v3046
    %4637 = vmatprep.subr.mxu0 0.0
    %4638 = vmatpush1.msra.mxu0 %v3047
    %4639 = vmatprep.subr.mxu0 0.0
    %4640 = vmatpush1.msra.mxu0 %v3048
    %4641 = vmatprep.subr.mxu0 0.0
    %4642 = vmatpush1.msra.mxu0 %v3049
    %4643 = vmatprep.subr.mxu0 0.0
    %4644 = vmatpush1.msra.mxu0 %v3050
    %4645 = vmatprep.subr.mxu0 0.0
    %4646 = vmatpush1.msra.mxu0 %v3051
    %4647 = vmatprep.subr.mxu0 0.0
    %4648 = vmatpush1.msra.mxu0 %v3052
    %4649 = vmatprep.subr.mxu0 0.0
    %4650 = vmatpush1.msra.mxu0 %v3053
    %4651 = vmatprep.subr.mxu0 0.0
    %4652 = vmatpush1.msra.mxu0 %v3054
    %4653 = vmatprep.mubr.f32.mxu0 %v4295
    %4654 = vmatmul.mubr.f32.gmra.mrb[0].mxu0 %v4287
    %v4655 = vpop.f32.mrb[0].mxu0
    %v4656 = vadd.f32 %v4586, %v4655
    %v4657 = vpop.f32.mrb[0].mxu0
    %4658 = vdwg.mxu0
    %4659 = vmatprep.subr.mxu0 0.0
    %4660 = vmatpush1.msra.mxu0 %v3055
    %4661 = vmatprep.subr.mxu0 0.0
    %4662 = vmatpush1.msra.mxu0 %v3056
    %4663 = vmatprep.subr.mxu0 0.0
    %4664 = vmatpush1.msra.mxu0 %v3057
    %4665 = vmatprep.subr.mxu0 0.0
    %4666 = vmatpush1.msra.mxu0 %v3058
    %4667 = vmatprep.subr.mxu0 0.0
    %4668 = vmatpush1.msra.mxu0 %v3059
    %4669 = vmatprep.subr.mxu0 0.0
    %4670 = vmatpush1.msra.mxu0 %v3060
    %4671 = vmatprep.subr.mxu0 0.0
    %4672 = vmatpush1.msra.mxu0 %v3061
    %4673 = vmatprep.subr.mxu0 0.0
    %4674 = vmatpush1.msra.mxu0 %v3062
    %4675 = vmatprep.subr.mxu0 0.0
    %4676 = vmatpush1.msra.mxu0 %v3063
    %4677 = vmatprep.subr.mxu0 0.0
    %4678 = vmatpush1.msra.mxu0 %v3064
    %4679 = vmatprep.subr.mxu0 0.0
    %4680 = vmatpush1.msra.mxu0 %v3065
    %4681 = vmatprep.subr.mxu0 0.0
    %4682 = vmatpush1.msra.mxu0 %v3066
    %4683 = vmatprep.subr.mxu0 0.0
    %4684 = vmatpush1.msra.mxu0 %v3067
    %4685 = vmatprep.subr.mxu0 0.0
    %4686 = vmatpush1.msra.mxu0 %v3068
    %4687 = vmatprep.subr.mxu0 0.0
    %4688 = vmatpush1.msra.mxu0 %v3069
    %4689 = vmatprep.subr.mxu0 0.0
    %4690 = vmatpush1.msra.mxu0 %v3070
    %4691 = vmatprep.subr.mxu0 0.0
    %4692 = vmatpush1.msra.mxu0 %v3071
    %4693 = vmatprep.subr.mxu0 0.0
    %4694 = vmatpush1.msra.mxu0 %v3072
    %4695 = vmatprep.subr.mxu0 0.0
    %4696 = vmatpush1.msra.mxu0 %v3073
    %4697 = vmatprep.subr.mxu0 0.0
    %4698 = vmatpush1.msra.mxu0 %v3074
    %4699 = vmatprep.subr.mxu0 0.0
    %4700 = vmatpush1.msra.mxu0 %v3075
    %4701 = vmatprep.subr.mxu0 0.0
    %4702 = vmatpush1.msra.mxu0 %v3076
    %4703 = vmatprep.subr.mxu0 0.0
    %4704 = vmatpush1.msra.mxu0 %v3077
    %4705 = vmatprep.subr.mxu0 0.0
    %4706 = vmatpush1.msra.mxu0 %v3078
    %4707 = vmatprep.subr.mxu0 0.0
    %4708 = vmatpush1.msra.mxu0 %v3079
    %4709 = vmatprep.subr.mxu0 0.0
    %4710 = vmatpush1.msra.mxu0 %v3080
    %4711 = vmatprep.subr.mxu0 0.0
    %4712 = vmatpush1.msra.mxu0 %v3081
    %4713 = vmatprep.subr.mxu0 0.0
    %4714 = vmatpush1.msra.mxu0 %v3082
    %4715 = vmatprep.subr.mxu0 0.0
    %4716 = vmatpush1.msra.mxu0 %v3083
    %4717 = vmatprep.subr.mxu0 0.0
    %4718 = vmatpush1.msra.mxu0 %v3084
    %4719 = vmatprep.subr.mxu0 0.0
    %4720 = vmatpush1.msra.mxu0 %v3085
    %4721 = vmatprep.subr.mxu0 0.0
    %4722 = vmatpush1.msra.mxu0 %v3086
    %4723 = vmatprep.mubr.f32.mxu0 %v4296
    %4724 = vmatmul.mubr.f32.gmra.mrb[0].mxu0 %v4294
    %v4725 = vpop.f32.mrb[0].mxu0
    %v4726 = vadd.f32 %v4656, %v4725
    %v4727 = vpop.f32.mrb[0].mxu0
    %4728 = vdwg.mxu0
    %s4729 = scalar_lea.vmem [#allocation10], 256
    %v4730 = vld [vmem:[%s4729] sm:$0xff]
    %v4731 = vld [vmem:[%s4729 + $0x8] sm:$0xff]
    %v4732 = vld [vmem:[%s4729 + $0x10] sm:$0xff]
    %v4733 = vld [vmem:[%s4729 + $0x18] sm:$0xff]
    %v4734 = vld [vmem:[%s4729 + $0x20] sm:$0xff]
    %v4735 = vld [vmem:[%s4729 + $0x28] sm:$0xff]
    %v4736 = vld [vmem:[%s4729 + $0x30] sm:$0xff]
    %v4737 = vld [vmem:[%s4729 + $0x38] sm:$0xff]
    %v4738 = vld [vmem:[%s4729 + $0x40] sm:$0xff]
    %v4739 = vld [vmem:[%s4729 + $0x48] sm:$0xff]
    %v4740 = vld [vmem:[%s4729 + $0x50] sm:$0xff]
    %v4741 = vld [vmem:[%s4729 + $0x58] sm:$0xff]
    %v4742 = vld [vmem:[%s4729 + $0x60] sm:$0xff]
    %v4743 = vld [vmem:[%s4729 + $0x68] sm:$0xff]
    %v4744 = vld [vmem:[%s4729 + $0x70] sm:$0xff]
    %v4745 = vld [vmem:[%s4729 + $0x78] sm:$0xff]
    %4746 = vmatprep.subr.mxu0 0.0
    %4747 = vmatpush1.msra.mxu0 %v4730
    %4748 = vmatprep.subr.mxu0 0.0
    %4749 = vmatpush1.msra.mxu0 %v4731
    %4750 = vmatprep.subr.mxu0 0.0
    %4751 = vmatpush1.msra.mxu0 %v4732
    %4752 = vmatprep.subr.mxu0 0.0
    %4753 = vmatpush1.msra.mxu0 %v4733
    %4754 = vmatprep.subr.mxu0 0.0
    %4755 = vmatpush1.msra.mxu0 %v4734
    %4756 = vmatprep.subr.mxu0 0.0
    %4757 = vmatpush1.msra.mxu0 %v4735
    %4758 = vmatprep.subr.mxu0 0.0
    %4759 = vmatpush1.msra.mxu0 %v4736
    %4760 = vmatprep.subr.mxu0 0.0
    %4761 = vmatpush1.msra.mxu0 %v4737
    %4762 = vmatprep.subr.mxu0 0.0
    %4763 = vmatpush1.msra.mxu0 %v4738
    %4764 = vmatprep.subr.mxu0 0.0
    %4765 = vmatpush1.msra.mxu0 %v4739
    %4766 = vmatprep.subr.mxu0 0.0
    %4767 = vmatpush1.msra.mxu0 %v4740
    %4768 = vmatprep.subr.mxu0 0.0
    %4769 = vmatpush1.msra.mxu0 %v4741
    %4770 = vmatprep.subr.mxu0 0.0
    %4771 = vmatpush1.msra.mxu0 %v4742
    %4772 = vmatprep.subr.mxu0 0.0
    %4773 = vmatpush1.msra.mxu0 %v4743
    %4774 = vmatprep.subr.mxu0 0.0
    %4775 = vmatpush1.msra.mxu0 %v4744
    %4776 = vmatprep.subr.mxu0 0.0
    %4777 = vmatpush1.msra.mxu0 %v4745
    %4778 = vmatprep.subr.mxu0 0.0
    %4779 = vmatpush1.msra.mxu0 0.0
    %4780 = vmatprep.subr.mxu0 0.0
    %4781 = vmatpush1.msra.mxu0 0.0
    %4782 = vmatprep.subr.mxu0 0.0
    %4783 = vmatpush1.msra.mxu0 0.0
    %4784 = vmatprep.subr.mxu0 0.0
    %4785 = vmatpush1.msra.mxu0 0.0
    %4786 = vmatprep.subr.mxu0 0.0
    %4787 = vmatpush1.msra.mxu0 0.0
    %4788 = vmatprep.subr.mxu0 0.0
    %4789 = vmatpush1.msra.mxu0 0.0
    %4790 = vmatprep.subr.mxu0 0.0
    %4791 = vmatpush1.msra.mxu0 0.0
    %4792 = vmatprep.subr.mxu0 0.0
    %4793 = vmatpush1.msra.mxu0 0.0
    %4794 = vmatprep.subr.mxu0 0.0
    %4795 = vmatpush1.msra.mxu0 0.0
    %4796 = vmatprep.subr.mxu0 0.0
    %4797 = vmatpush1.msra.mxu0 0.0
    %4798 = vmatprep.subr.mxu0 0.0
    %4799 = vmatpush1.msra.mxu0 0.0
    %4800 = vmatprep.subr.mxu0 0.0
    %4801 = vmatpush1.msra.mxu0 0.0
    %4802 = vmatprep.subr.mxu0 0.0
    %4803 = vmatpush1.msra.mxu0 0.0
    %4804 = vmatprep.subr.mxu0 0.0
    %4805 = vmatpush1.msra.mxu0 0.0
    %4806 = vmatprep.subr.mxu0 0.0
    %4807 = vmatpush1.msra.mxu0 0.0
    %4808 = vmatprep.subr.mxu0 0.0
    %4809 = vmatpush1.msra.mxu0 0.0
    %4810 = vmatprep.mubr.f32.mxu0 0.0
    %4811 = vmatmul.mubr.f32.gmra.mrb[0].mxu0 %v4726
    %v4812 = vpop.f32.mrb[0].mxu0
    %v4813 = vadd.f32 0.0, %v4812
    %v4814 = vpop.f32.mrb[0].mxu0
    %4815 = vdwg.mxu0
    %v4816 = vadd.f32 %v4236, %v4813
    %v4817 = vld [vmem:[#allocation11] sm:$0x1]
    %v4819 = vlaneseq
    %v4820 = vshrl.u32 %v4819, 7
    %v4821 = vsub.s32 0, %v4820
    %v4822 = vrot.slane %v4817, %v4821
    %v4824 = vadd.f32 %v4816, %v4822
    %vm4825 = vcmask 33792
    %4826 = vst.msk [vmem:[#allocation13] sm:$0x3] %vm4825, %v4824
    // Predicated region
    $region50: #{tpu_custom_call.1} parent=1 // pred_check
      _
    $region51: #{tpu_custom_call.1} parent=1 // pred_check_branch
      %4828 = sbr.rel (0) target = $region53
    $region52: #{tpu_custom_call.1} parent=1 // pred_region
      %s4830 = ssub.s32 32, 32
      %4831 = vsyncadd [#allocation4], %s4830
      %s4833 = sshll.u32 [#allocation13], 4
      %s4834 = int_to_ptr.vmem [resolvable:$true] %s4833
      %4836 = dma.vmem_to_hbm [thread:$0]  %s4834, 32, %s6, [#allocation4]
    $region53: #{tpu_custom_call.1} parent=1 // pred_fallthru
      _
    // Predicated region
    $region54: #{tpu_custom_call.1} parent=1 // pred_check
      _
    $region55: #{tpu_custom_call.1} parent=1 // pred_check_branch
      %4838 = sbr.rel (0) target = $region57
    $region56: #{tpu_custom_call.1} parent=1 // pred_region
      %4839 = dma.done [#allocation4], 32
    $region57: #{tpu_custom_call.1} parent=1 // pred_fallthru
      _
    %4840 = vsyncpa [#allocation3], 1
    %4841 = vsyncpa [#allocation6], 1
    %4842 = vsyncpa [#allocation9], 1
    %4843 = vsyncpa [#allocation12], 1
    %4844 = vsyncpa [#allocation4], 1

</llo_original>
